<compile_context>
chip_gen: v5e
topology: v5e:2x2
jax: 0.10.0
libtpu: 0.0.40
codegen_flags: <defaults>
</compile_context>

<pallas_src>
import functools

import jax
import jax.numpy as jnp
from jax import lax
from jax.experimental import pallas as pl
from jax.experimental.pallas import tpu as pltpu


# ----------------------------------------------------------------------------
# Kernel: one grid step == one batch element.
# ----------------------------------------------------------------------------
def _encoder_block_kernel(
    x_ref,                                    # (1, S, 1)        f32 raw audio
    a2t_w_ref, a2t_b_ref,                     # (1, D)           f32
    a2t_lnw_ref, a2t_lnb_ref,                 # (1, D)           f32
    rpl_wqkv_ref,                             # (L, D, 3*H*Dh)   bf16
    rpl_wo_ref,                               # (L, H*Dh, D)     bf16
    rpl_gq_ref, rpl_gk_ref,                   # (L, H, 1, Dh)    f32
    ln1w_ref, ln1b_ref, lncw_ref, lncb_ref,   # (1, D)           f32
    xc_wq_ref,                                # (D, H*Dh)        bf16
    xc_wkv_ref,                               # (D, 2*Dh)        bf16
    xc_wo_ref,                                # (H*Dh, D)        bf16
    ff1_ref,                                  # (D, 8*D)         bf16 (value|gate)
    ff2_ref,                                  # (4*D, D)         bf16
    xcw_ref, xcb_ref,                         # (1, D)           f32
    dense_w_ref, dense_b_ref,                 # (D, D) bf16, (1, D) f32
    fln_w_ref, fln_b_ref,                     # (1, D)           f32
    o_ref,                                    # (1, S, D)        f32
    *, seq, heads, dim_head, depth):
    S, H, Dh, L = seq, heads, dim_head, depth
    HDh = H * Dh
    D = o_ref.shape[-1]
    scale = Dh ** -0.5
    bf16 = jnp.bfloat16

    # ---- helpers -------------------------------------------------------------
    def layernorm(x, w, b, eps=1e-5):
        mu = jnp.mean(x, axis=-1, keepdims=True)
        var = jnp.mean((x - mu) ** 2, axis=-1, keepdims=True)
        return (x - mu) * lax.rsqrt(var + eps) * w + b

    def mm(a, b):  # MXU matmul, f32 accumulation (operands already bf16)
        return jnp.dot(a, b, preferred_element_type=jnp.float32)

    def softmax(sim):  # over last axis, batched over heads
        sim = sim - jnp.max(sim, axis=-1, keepdims=True)
        p = jnp.exp(sim)
        return p * pl.reciprocal(jnp.sum(p, axis=-1, keepdims=True), approx=True)

    def split_heads(flat, base):
        # flat (S, *) -> (H, S, Dh): static lane slices stacked on a new
        # leading axis (no lane-splitting reshapes / transposes).
        return jnp.stack(
            [flat[:, base + h * Dh: base + (h + 1) * Dh] for h in range(H)],
            axis=0)

    def merge_heads(x3):
        # (H, S, Dh) -> (S, H*Dh) for the single fused output projection.
        return jnp.concatenate([x3[h] for h in range(H)], axis=-1)

    # additive causal bias built once per grid step (tiny (S, S) f32)
    row = lax.broadcasted_iota(jnp.int32, (S, S), 0)
    col = lax.broadcasted_iota(jnp.int32, (S, S), 1)
    causal_bias = jnp.where(col <= row, 0.0, -1e30).astype(jnp.float32)

    # ---- audio_to_text: Linear(1, D) + LayerNorm (approximation) ------------
    xa = x_ref[0]                                               # (S, 1)
    y = xa * a2t_w_ref[...] + a2t_b_ref[...]                    # (S, D)
    skip = layernorm(y, a2t_lnw_ref[...], a2t_lnb_ref[...])
    x = skip

    # ---- 3 causal self-attention layers with qk-norm (rpl_layers) -----------
    for l in range(L):
        xb = x.astype(bf16)
        qkv = mm(xb, rpl_wqkv_ref[l])                           # (S, 3*H*Dh) f32
        q = split_heads(qkv, 0)                                 # (H, S, Dh)
        k = split_heads(qkv, HDh)
        v = split_heads(qkv, 2 * HDh)
        # l2 qk-norm with learned per-head scales
        q = q * lax.rsqrt(jnp.sum(q * q, -1, keepdims=True) + 1e-8) * rpl_gq_ref[l]
        k = k * lax.rsqrt(jnp.sum(k * k, -1, keepdims=True) + 1e-8) * rpl_gk_ref[l]
        sim = jnp.einsum('hid,hjd->hij', q.astype(bf16), k.astype(bf16),
                         preferred_element_type=jnp.float32) * scale
        attn = softmax(sim + causal_bias)                       # (H, S, S)
        oh = jnp.einsum('hij,hjd->hid', attn.astype(bf16), v.astype(bf16),
                        preferred_element_type=jnp.float32)     # (H, S, Dh)
        x = mm(merge_heads(oh).astype(bf16), rpl_wo_ref[l])     # (S, D)

    # ---- XCAttention: CrossAttention(x, x) + parallel SwiGLU FF -------------
    xn = layernorm(x, ln1w_ref[...], ln1b_ref[...])             # cross_attn.norm
    ctx = layernorm(x, lncw_ref[...], lncb_ref[...])            # context_norm
    xnb = xn.astype(bf16)
    ctxb = ctx.astype(bf16)

    q_all = mm(xnb, xc_wq_ref[...]) * scale                     # (S, H*Dh)
    kv = mm(ctxb, xc_wkv_ref[...])                              # (S, 2*Dh)
    k1 = kv[:, :Dh].astype(bf16)                                # shared across heads
    v1 = kv[:, Dh:].astype(bf16)
    q = split_heads(q_all, 0).astype(bf16)                      # (H, S, Dh)
    kb = jnp.broadcast_to(k1, (H, S, Dh))
    vb = jnp.broadcast_to(v1, (H, S, Dh))
    sim = jnp.einsum('hid,hjd->hij', q, kb,
                     preferred_element_type=jnp.float32)        # (H, S, S)
    attn = softmax(sim)                                         # no causal mask
    oh = jnp.einsum('hij,hjd->hid', attn.astype(bf16), vb,
                    preferred_element_type=jnp.float32)         # (H, S, Dh)
    attn_out = mm(merge_heads(oh).astype(bf16), xc_wo_ref[...]) # (S, D)

    # parallel SwiGLU feed-forward on the normed input (fused value|gate matmul)
    ag = mm(xnb, ff1_ref[...])                                  # (S, 8*D) f32
    a = ag[:, :4 * D]
    g = ag[:, 4 * D:]
    ff = mm((a * jax.nn.silu(g)).astype(bf16), ff2_ref[...])    # (S, D)

    ca = attn_out + ff                                          # CrossAttention out
    yx = layernorm(ca, xcw_ref[...], xcb_ref[...])              # XCAttention.norm
    yx = jnp.tanh(yx) + x                                       # tanh + skip
    yx = mm(yx.astype(bf16), dense_w_ref[...]) + dense_b_ref[...]
    x = jnp.tanh(yx)

    # ---- block-level final LayerNorm + residual skip -------------------------
    o_ref[0] = layernorm(x, fln_w_ref[...], fln_b_ref[...]) + skip


# ----------------------------------------------------------------------------
# Wrapper
# ----------------------------------------------------------------------------
def audio_flamingo_encoder_block(x, params, *, heads, dim_head, depth=3):
    B, S = x.shape
    D = params["a2t_w"].shape[-1]
    HDh = heads * dim_head

    kern = functools.partial(_encoder_block_kernel, seq=S, heads=heads,
                             dim_head=dim_head, depth=depth)

    x3 = x.reshape(B, S, 1).astype(jnp.float32)

    args = (
        x3,
        params["a2t_w"], params["a2t_b"], params["a2t_ln_w"], params["a2t_ln_b"],
        params["rpl_wqkv"], params["rpl_wo"], params["rpl_gq"], params["rpl_gk"],
        params["ln1_w"], params["ln1_b"], params["lnc_w"], params["lnc_b"],
        params["xc_wq"], params["xc_wkv"], params["xc_wo"],
        params["ff1"], params["ff2"],
        params["xc_w"], params["xc_b"],
        params["dense_w"], params["dense_b"],
        params["final_ln_w"], params["final_ln_b"],
    )

    def weight_spec(a):
        nd = a.ndim
        # full-array block, constant index map -> stays VMEM-resident across grid
        return pl.BlockSpec(a.shape, lambda b: (0,) * nd)

    in_specs = [pl.BlockSpec((1, S, 1), lambda b: (b, 0, 0))]
    in_specs += [weight_spec(a) for a in args[1:]]
    out_spec = pl.BlockSpec((1, S, D), lambda b: (b, 0, 0))

    # advisory cost estimate for the single custom call
    flops_rpl = depth * (2 * S * D * 3 * HDh + 4 * heads * S * S * dim_head
                         + 2 * S * HDh * D)
    flops_xc = (2 * S * D * HDh + 2 * S * D * 2 * dim_head
                + 4 * heads * S * S * dim_head + 2 * S * HDh * D
                + 2 * S * D * 8 * D + 2 * S * 4 * D * D + 2 * S * D * D)
    flops = B * (flops_rpl + flops_xc + 2 * S * D)
    transcendentals = B * ((depth + 1) * heads * S * S + S * 4 * D + 2 * S * D)
    bytes_accessed = (sum(int(a.size) * a.dtype.itemsize for a in args)
                      + B * S * D * 4)

    out = pl.pallas_call(
        kern,
        out_shape=jax.ShapeDtypeStruct((B, S, D), jnp.float32),
        grid=(B,),
        in_specs=in_specs,
        out_specs=out_spec,
        compiler_params=pltpu.CompilerParams(
            dimension_semantics=("parallel",),
            vmem_limit_bytes=32 * 1024 * 1024),
        cost_estimate=pl.CostEstimate(
            flops=flops, transcendentals=transcendentals,
            bytes_accessed=bytes_accessed),
    )(*args)
    return out


# ----------------------------------------------------------------------------
# Parameter construction (MXU-feeding weights stored bf16; LayerNorm / bias /
# qk-norm scale parameters stay f32).
# ----------------------------------------------------------------------------
def init_params(key, dim, heads, dim_head, depth=3):
    H, Dh, L = heads, dim_head, depth
    HDh = H * Dh
    keys = iter(jax.random.split(key, 32))

    def rnd(shape, scale=0.02, dtype=jnp.bfloat16):
        return (scale * jax.random.normal(next(keys), shape, jnp.float32)).astype(dtype)

    return {
        # audio_to_text (approximation)
        "a2t_w": rnd((1, dim), 1.0, jnp.float32),
        "a2t_b": jnp.zeros((1, dim), jnp.float32),
        "a2t_ln_w": jnp.ones((1, dim), jnp.float32),
        "a2t_ln_b": jnp.zeros((1, dim), jnp.float32),
        # rpl: fused QKV per layer (lane-dense trailing 3*H*Dh) + fused out proj
        "rpl_wqkv": rnd((L, dim, 3 * HDh)),
        "rpl_wo": rnd((L, HDh, dim)),
        "rpl_gq": jnp.ones((L, H, 1, Dh), jnp.float32),
        "rpl_gk": jnp.ones((L, H, 1, Dh), jnp.float32),
        # XCAttention / CrossAttention
        "ln1_w": jnp.ones((1, dim), jnp.float32),
        "ln1_b": jnp.zeros((1, dim), jnp.float32),
        "lnc_w": jnp.ones((1, dim), jnp.float32),
        "lnc_b": jnp.zeros((1, dim), jnp.float32),
        "xc_wq": rnd((dim, HDh)),
        "xc_wkv": rnd((dim, 2 * Dh)),            # to_kv fused: [k | v]
        "xc_wo": rnd((HDh, dim)),
        "ff1": rnd((dim, 8 * dim)),              # SwiGLU fused: [value | gate]
        "ff2": rnd((4 * dim, dim)),
        "xc_w": jnp.ones((1, dim), jnp.float32),
        "xc_b": jnp.zeros((1, dim), jnp.float32),
        "dense_w": rnd((dim, dim)),
        "dense_b": jnp.zeros((1, dim), jnp.float32),
        # block-level final LayerNorm
        "final_ln_w": jnp.ones((1, dim), jnp.float32),
        "final_ln_b": jnp.zeros((1, dim), jnp.float32),
    }


# ----------------------------------------------------------------------------
if __name__ == "__main__":
    B, S = 2, 16
    dim, heads, dim_head = 32, 4, 16      # context_dim == dim (required by ref code)

    key = jax.random.PRNGKey(0)
    kx, kp = jax.random.split(key)
    x = jax.random.normal(kx, (B, S), jnp.float32)
    params = init_params(kp, dim, heads, dim_head)

    out = audio_flamingo_encoder_block(x, params, heads=heads, dim_head=dim_head)
    out = jax.block_until_ready(out)

    assert out.shape == (B, S, dim), out.shape
    assert bool(jnp.all(jnp.isfinite(out)))
    print("KERNEL_OK")
</pallas_src>

<mosaic_0001>
module attributes {stable_mosaic.version = 11 : i64} {
  func.func @_encoder_block_kernel(%arg0: i32, %arg1: memref<1x16x1xf32, #tpu.memory_space<vmem>>, %arg2: memref<1x32xf32, #tpu.memory_space<vmem>>, %arg3: memref<1x32xf32, #tpu.memory_space<vmem>>, %arg4: memref<1x32xf32, #tpu.memory_space<vmem>>, %arg5: memref<1x32xf32, #tpu.memory_space<vmem>>, %arg6: memref<3x32x192xbf16, #tpu.memory_space<vmem>>, %arg7: memref<3x64x32xbf16, #tpu.memory_space<vmem>>, %arg8: memref<3x4x1x16xf32, #tpu.memory_space<vmem>>, %arg9: memref<3x4x1x16xf32, #tpu.memory_space<vmem>>, %arg10: memref<1x32xf32, #tpu.memory_space<vmem>>, %arg11: memref<1x32xf32, #tpu.memory_space<vmem>>, %arg12: memref<1x32xf32, #tpu.memory_space<vmem>>, %arg13: memref<1x32xf32, #tpu.memory_space<vmem>>, %arg14: memref<32x64xbf16, #tpu.memory_space<vmem>>, %arg15: memref<32x32xbf16, #tpu.memory_space<vmem>>, %arg16: memref<64x32xbf16, #tpu.memory_space<vmem>>, %arg17: memref<32x256xbf16, #tpu.memory_space<vmem>>, %arg18: memref<128x32xbf16, #tpu.memory_space<vmem>>, %arg19: memref<1x32xf32, #tpu.memory_space<vmem>>, %arg20: memref<1x32xf32, #tpu.memory_space<vmem>>, %arg21: memref<32x32xbf16, #tpu.memory_space<vmem>>, %arg22: memref<1x32xf32, #tpu.memory_space<vmem>>, %arg23: memref<1x32xf32, #tpu.memory_space<vmem>>, %arg24: memref<1x32xf32, #tpu.memory_space<vmem>>, %arg25: memref<1x16x32xf32, #tpu.memory_space<vmem>>) attributes {dimension_semantics = [#tpu.dimension_semantics<parallel>], iteration_bounds = array<i64: 2>, scalar_prefetch = 0 : i64, scratch_operands = 0 : i64, tpu.core_type = #tpu.core_type<tc>, window_params = [{transform_indices = @transform_0, window_bounds = array<i64: 1, 16, 1>}, {pipeline_mode = #tpu.pipeline_mode<synchronous>, transform_indices = @transform_1, window_bounds = array<i64: 1, 32>}, {pipeline_mode = #tpu.pipeline_mode<synchronous>, transform_indices = @transform_2, window_bounds = array<i64: 1, 32>}, {pipeline_mode = #tpu.pipeline_mode<synchronous>, transform_indices = @transform_3, window_bounds = array<i64: 1, 32>}, {pipeline_mode = #tpu.pipeline_mode<synchronous>, transform_indices = @transform_4, window_bounds = array<i64: 1, 32>}, {pipeline_mode = #tpu.pipeline_mode<synchronous>, transform_indices = @transform_5, window_bounds = array<i64: 3, 32, 192>}, {pipeline_mode = #tpu.pipeline_mode<synchronous>, transform_indices = @transform_6, window_bounds = array<i64: 3, 64, 32>}, {pipeline_mode = #tpu.pipeline_mode<synchronous>, transform_indices = @transform_7, window_bounds = array<i64: 3, 4, 1, 16>}, {pipeline_mode = #tpu.pipeline_mode<synchronous>, transform_indices = @transform_8, window_bounds = array<i64: 3, 4, 1, 16>}, {pipeline_mode = #tpu.pipeline_mode<synchronous>, transform_indices = @transform_9, window_bounds = array<i64: 1, 32>}, {pipeline_mode = #tpu.pipeline_mode<synchronous>, transform_indices = @transform_10, window_bounds = array<i64: 1, 32>}, {pipeline_mode = #tpu.pipeline_mode<synchronous>, transform_indices = @transform_11, window_bounds = array<i64: 1, 32>}, {pipeline_mode = #tpu.pipeline_mode<synchronous>, transform_indices = @transform_12, window_bounds = array<i64: 1, 32>}, {pipeline_mode = #tpu.pipeline_mode<synchronous>, transform_indices = @transform_13, window_bounds = array<i64: 32, 64>}, {pipeline_mode = #tpu.pipeline_mode<synchronous>, transform_indices = @transform_14, window_bounds = array<i64: 32, 32>}, {pipeline_mode = #tpu.pipeline_mode<synchronous>, transform_indices = @transform_15, window_bounds = array<i64: 64, 32>}, {pipeline_mode = #tpu.pipeline_mode<synchronous>, transform_indices = @transform_16, window_bounds = array<i64: 32, 256>}, {pipeline_mode = #tpu.pipeline_mode<synchronous>, transform_indices = @transform_17, window_bounds = array<i64: 128, 32>}, {pipeline_mode = #tpu.pipeline_mode<synchronous>, transform_indices = @transform_18, window_bounds = array<i64: 1, 32>}, {pipeline_mode = #tpu.pipeline_mode<synchronous>, transform_indices = @transform_19, window_bounds = array<i64: 1, 32>}, {pipeline_mode = #tpu.pipeline_mode<synchronous>, transform_indices = @transform_20, window_bounds = array<i64: 32, 32>}, {pipeline_mode = #tpu.pipeline_mode<synchronous>, transform_indices = @transform_21, window_bounds = array<i64: 1, 32>}, {pipeline_mode = #tpu.pipeline_mode<synchronous>, transform_indices = @transform_22, window_bounds = array<i64: 1, 32>}, {pipeline_mode = #tpu.pipeline_mode<synchronous>, transform_indices = @transform_23, window_bounds = array<i64: 1, 32>}, {transform_indices = @transform_24, window_bounds = array<i64: 1, 16, 32>}]} {
    %0 = tpu.iota {dimensions = array<i32: 0>} : vector<16x16xi32>
    %1 = tpu.iota {dimensions = array<i32: 1>} : vector<16x16xi32>
    %2 = arith.cmpi sle, %1, %0 : vector<16x16xi32>
    %cst = arith.constant 0.000000e+00 : f32
    %cst_0 = arith.constant -1.000000e+30 : f32
    %3 = vector.broadcast %cst : f32 to vector<16x16xf32>
    %4 = vector.broadcast %cst_0 : f32 to vector<16x16xf32>
    %5 = arith.select %2, %3, %4 : vector<16x16xi1>, vector<16x16xf32>
    %c0 = arith.constant 0 : index
    %c0_1 = arith.constant 0 : index
    %c0_2 = arith.constant 0 : index
    %6 = vector.load %arg1[%c0, %c0_1, %c0_2] : memref<1x16x1xf32, #tpu.memory_space<vmem>>, vector<1x16x1xf32>
    %7 = vector.shape_cast %6 : vector<1x16x1xf32> to vector<16x1xf32>
    %c0_3 = arith.constant 0 : index
    %c0_4 = arith.constant 0 : index
    %8 = vector.load %arg2[%c0_3, %c0_4] : memref<1x32xf32, #tpu.memory_space<vmem>>, vector<1x32xf32>
    %9 = vector.broadcast %7 : vector<16x1xf32> to vector<16x32xf32>
    %10 = vector.broadcast %8 : vector<1x32xf32> to vector<16x32xf32>
    %11 = arith.mulf %9, %10 : vector<16x32xf32>
    %c0_5 = arith.constant 0 : index
    %c0_6 = arith.constant 0 : index
    %12 = vector.load %arg3[%c0_5, %c0_6] : memref<1x32xf32, #tpu.memory_space<vmem>>, vector<1x32xf32>
    %13 = vector.broadcast %12 : vector<1x32xf32> to vector<16x32xf32>
    %14 = arith.addf %11, %13 : vector<16x32xf32>
    %c0_7 = arith.constant 0 : index
    %c0_8 = arith.constant 0 : index
    %15 = vector.load %arg4[%c0_7, %c0_8] : memref<1x32xf32, #tpu.memory_space<vmem>>, vector<1x32xf32>
    %c0_9 = arith.constant 0 : index
    %c0_10 = arith.constant 0 : index
    %16 = vector.load %arg5[%c0_9, %c0_10] : memref<1x32xf32, #tpu.memory_space<vmem>>, vector<1x32xf32>
    %cst_11 = arith.constant dense<0.000000e+00> : vector<16xf32>
    %17 = vector.multi_reduction <add>, %14, %cst_11 [1] : vector<16x32xf32> to vector<16xf32>
    %18 = vector.shape_cast %17 : vector<16xf32> to vector<16x1xf32>
    %cst_12 = arith.constant 3.200000e+01 : f32
    %19 = vector.broadcast %cst_12 : f32 to vector<16x1xf32>
    %20 = arith.divf %18, %19 : vector<16x1xf32>
    %21 = vector.broadcast %20 : vector<16x1xf32> to vector<16x32xf32>
    %22 = arith.subf %14, %21 : vector<16x32xf32>
    %23 = arith.mulf %22, %22 : vector<16x32xf32>
    %cst_13 = arith.constant dense<0.000000e+00> : vector<16xf32>
    %24 = vector.multi_reduction <add>, %23, %cst_13 [1] : vector<16x32xf32> to vector<16xf32>
    %25 = vector.shape_cast %24 : vector<16xf32> to vector<16x1xf32>
    %cst_14 = arith.constant 3.200000e+01 : f32
    %26 = vector.broadcast %cst_14 : f32 to vector<16x1xf32>
    %27 = arith.divf %25, %26 : vector<16x1xf32>
    %28 = vector.broadcast %20 : vector<16x1xf32> to vector<16x32xf32>
    %29 = arith.subf %14, %28 : vector<16x32xf32>
    %cst_15 = arith.constant 9.99999974E-6 : f32
    %30 = vector.broadcast %cst_15 : f32 to vector<16x1xf32>
    %31 = arith.addf %27, %30 : vector<16x1xf32>
    %32 = math.rsqrt %31 : vector<16x1xf32>
    %33 = vector.broadcast %32 : vector<16x1xf32> to vector<16x32xf32>
    %34 = arith.mulf %29, %33 : vector<16x32xf32>
    %35 = vector.broadcast %15 : vector<1x32xf32> to vector<16x32xf32>
    %36 = arith.mulf %34, %35 : vector<16x32xf32>
    %37 = vector.broadcast %16 : vector<1x32xf32> to vector<16x32xf32>
    %38 = arith.addf %36, %37 : vector<16x32xf32>
    %39 = arith.truncf %38 : vector<16x32xf32> to vector<16x32xbf16>
    %c0_16 = arith.constant 0 : index
    %c0_17 = arith.constant 0 : index
    %c0_18 = arith.constant 0 : index
    %40 = vector.load %arg6[%c0_16, %c0_17, %c0_18] : memref<3x32x192xbf16, #tpu.memory_space<vmem>>, vector<1x32x192xbf16>
    %41 = vector.shape_cast %40 : vector<1x32x192xbf16> to vector<32x192xbf16>
    %cst_19 = arith.constant dense<0.000000e+00> : vector<16x192xf32>
    %42 = tpu.matmul %39, %41, %cst_19 {dimension_numbers = #tpu.dot_dimension_numbers<[1], [0], [0], [1], [0, 0, 1, 1], [], []>} : vector<16x32xbf16>, vector<32x192xbf16>, vector<16x192xf32> -> vector<16x192xf32>
    %43 = vector.extract_strided_slice %42 {offsets = [0, 0], sizes = [16, 16], strides = [1, 1]} : vector<16x192xf32> to vector<16x16xf32>
    %44 = vector.extract_strided_slice %42 {offsets = [0, 16], sizes = [16, 16], strides = [1, 1]} : vector<16x192xf32> to vector<16x16xf32>
    %45 = vector.extract_strided_slice %42 {offsets = [0, 32], sizes = [16, 16], strides = [1, 1]} : vector<16x192xf32> to vector<16x16xf32>
    %46 = vector.extract_strided_slice %42 {offsets = [0, 48], sizes = [16, 16], strides = [1, 1]} : vector<16x192xf32> to vector<16x16xf32>
    %47 = vector.shape_cast %43 : vector<16x16xf32> to vector<1x16x16xf32>
    %48 = vector.shape_cast %44 : vector<16x16xf32> to vector<1x16x16xf32>
    %49 = vector.shape_cast %45 : vector<16x16xf32> to vector<1x16x16xf32>
    %50 = vector.shape_cast %46 : vector<16x16xf32> to vector<1x16x16xf32>
    %51 = tpu.concatenate %47, %48, %49, %50 in 0 : vector<1x16x16xf32>, vector<1x16x16xf32>, vector<1x16x16xf32>, vector<1x16x16xf32> -> vector<4x16x16xf32>
    %52 = vector.extract_strided_slice %42 {offsets = [0, 64], sizes = [16, 16], strides = [1, 1]} : vector<16x192xf32> to vector<16x16xf32>
    %53 = vector.extract_strided_slice %42 {offsets = [0, 80], sizes = [16, 16], strides = [1, 1]} : vector<16x192xf32> to vector<16x16xf32>
    %54 = vector.extract_strided_slice %42 {offsets = [0, 96], sizes = [16, 16], strides = [1, 1]} : vector<16x192xf32> to vector<16x16xf32>
    %55 = vector.extract_strided_slice %42 {offsets = [0, 112], sizes = [16, 16], strides = [1, 1]} : vector<16x192xf32> to vector<16x16xf32>
    %56 = vector.shape_cast %52 : vector<16x16xf32> to vector<1x16x16xf32>
    %57 = vector.shape_cast %53 : vector<16x16xf32> to vector<1x16x16xf32>
    %58 = vector.shape_cast %54 : vector<16x16xf32> to vector<1x16x16xf32>
    %59 = vector.shape_cast %55 : vector<16x16xf32> to vector<1x16x16xf32>
    %60 = tpu.concatenate %56, %57, %58, %59 in 0 : vector<1x16x16xf32>, vector<1x16x16xf32>, vector<1x16x16xf32>, vector<1x16x16xf32> -> vector<4x16x16xf32>
    %61 = vector.extract_strided_slice %42 {offsets = [0, 128], sizes = [16, 16], strides = [1, 1]} : vector<16x192xf32> to vector<16x16xf32>
    %62 = vector.extract_strided_slice %42 {offsets = [0, 144], sizes = [16, 16], strides = [1, 1]} : vector<16x192xf32> to vector<16x16xf32>
    %63 = vector.extract_strided_slice %42 {offsets = [0, 160], sizes = [16, 16], strides = [1, 1]} : vector<16x192xf32> to vector<16x16xf32>
    %64 = vector.extract_strided_slice %42 {offsets = [0, 176], sizes = [16, 16], strides = [1, 1]} : vector<16x192xf32> to vector<16x16xf32>
    %65 = vector.shape_cast %61 : vector<16x16xf32> to vector<1x16x16xf32>
    %66 = vector.shape_cast %62 : vector<16x16xf32> to vector<1x16x16xf32>
    %67 = vector.shape_cast %63 : vector<16x16xf32> to vector<1x16x16xf32>
    %68 = vector.shape_cast %64 : vector<16x16xf32> to vector<1x16x16xf32>
    %69 = tpu.concatenate %65, %66, %67, %68 in 0 : vector<1x16x16xf32>, vector<1x16x16xf32>, vector<1x16x16xf32>, vector<1x16x16xf32> -> vector<4x16x16xf32>
    %70 = arith.mulf %51, %51 : vector<4x16x16xf32>
    %cst_20 = arith.constant dense<0.000000e+00> : vector<4x16xf32>
    %71 = vector.multi_reduction <add>, %70, %cst_20 [2] : vector<4x16x16xf32> to vector<4x16xf32>
    %72 = vector.shape_cast %71 : vector<4x16xf32> to vector<4x16x1xf32>
    %cst_21 = arith.constant 9.99999993E-9 : f32
    %73 = vector.broadcast %cst_21 : f32 to vector<4x16x1xf32>
    %74 = arith.addf %72, %73 : vector<4x16x1xf32>
    %75 = math.rsqrt %74 : vector<4x16x1xf32>
    %76 = vector.broadcast %75 : vector<4x16x1xf32> to vector<4x16x16xf32>
    %77 = arith.mulf %51, %76 : vector<4x16x16xf32>
    %c0_22 = arith.constant 0 : index
    %c0_23 = arith.constant 0 : index
    %c0_24 = arith.constant 0 : index
    %c0_25 = arith.constant 0 : index
    %78 = vector.load %arg8[%c0_22, %c0_23, %c0_24, %c0_25] : memref<3x4x1x16xf32, #tpu.memory_space<vmem>>, vector<1x4x1x16xf32>
    %79 = vector.shape_cast %78 : vector<1x4x1x16xf32> to vector<4x1x16xf32>
    %80 = vector.broadcast %79 : vector<4x1x16xf32> to vector<4x16x16xf32>
    %81 = arith.mulf %77, %80 : vector<4x16x16xf32>
    %82 = arith.mulf %60, %60 : vector<4x16x16xf32>
    %cst_26 = arith.constant dense<0.000000e+00> : vector<4x16xf32>
    %83 = vector.multi_reduction <add>, %82, %cst_26 [2] : vector<4x16x16xf32> to vector<4x16xf32>
    %84 = vector.shape_cast %83 : vector<4x16xf32> to vector<4x16x1xf32>
    %cst_27 = arith.constant 9.99999993E-9 : f32
    %85 = vector.broadcast %cst_27 : f32 to vector<4x16x1xf32>
    %86 = arith.addf %84, %85 : vector<4x16x1xf32>
    %87 = math.rsqrt %86 : vector<4x16x1xf32>
    %88 = vector.broadcast %87 : vector<4x16x1xf32> to vector<4x16x16xf32>
    %89 = arith.mulf %60, %88 : vector<4x16x16xf32>
    %c0_28 = arith.constant 0 : index
    %c0_29 = arith.constant 0 : index
    %c0_30 = arith.constant 0 : index
    %c0_31 = arith.constant 0 : index
    %90 = vector.load %arg9[%c0_28, %c0_29, %c0_30, %c0_31] : memref<3x4x1x16xf32, #tpu.memory_space<vmem>>, vector<1x4x1x16xf32>
    %91 = vector.shape_cast %90 : vector<1x4x1x16xf32> to vector<4x1x16xf32>
    %92 = vector.broadcast %91 : vector<4x1x16xf32> to vector<4x16x16xf32>
    %93 = arith.mulf %89, %92 : vector<4x16x16xf32>
    %94 = arith.truncf %81 : vector<4x16x16xf32> to vector<4x16x16xbf16>
    %95 = arith.truncf %93 : vector<4x16x16xf32> to vector<4x16x16xbf16>
    "tpu.trace_start"() <{level = 10 : i32, message = "hid,hjd->hij"}> : () -> ()
    %cst_32 = arith.constant dense<0.000000e+00> : vector<4x16x16xf32>
    %96 = tpu.matmul %94, %95, %cst_32 {dimension_numbers = #tpu.dot_dimension_numbers<[2], [2], [1], [1], [0, 0, 0, 1, 1, 1], [0], [0]>} : vector<4x16x16xbf16>, vector<4x16x16xbf16>, vector<4x16x16xf32> -> vector<4x16x16xf32>
    "tpu.trace_stop"() : () -> ()
    %cst_33 = arith.constant 2.500000e-01 : f32
    %97 = vector.broadcast %cst_33 : f32 to vector<4x16x16xf32>
    %98 = arith.mulf %96, %97 : vector<4x16x16xf32>
    %99 = vector.shape_cast %5 : vector<16x16xf32> to vector<1x16x16xf32>
    %100 = vector.broadcast %99 : vector<1x16x16xf32> to vector<4x16x16xf32>
    %101 = arith.addf %98, %100 : vector<4x16x16xf32>
    %cst_34 = arith.constant dense<0xFF800000> : vector<4x16xf32>
    %102 = vector.multi_reduction <maximumf>, %101, %cst_34 [2] : vector<4x16x16xf32> to vector<4x16xf32>
    %103 = vector.shape_cast %102 : vector<4x16xf32> to vector<4x16x1xf32>
    %104 = vector.broadcast %103 : vector<4x16x1xf32> to vector<4x16x16xf32>
    %105 = arith.subf %101, %104 : vector<4x16x16xf32>
    %106 = math.exp %105 : vector<4x16x16xf32>
    %cst_35 = arith.constant dense<0.000000e+00> : vector<4x16xf32>
    %107 = vector.multi_reduction <add>, %106, %cst_35 [2] : vector<4x16x16xf32> to vector<4x16xf32>
    %108 = vector.shape_cast %107 : vector<4x16xf32> to vector<4x16x1xf32>
    %109 = tpu.reciprocal %108 {approx = true} : vector<4x16x1xf32> -> vector<4x16x1xf32>
    %110 = vector.broadcast %109 : vector<4x16x1xf32> to vector<4x16x16xf32>
    %111 = arith.mulf %106, %110 : vector<4x16x16xf32>
    %112 = arith.truncf %111 : vector<4x16x16xf32> to vector<4x16x16xbf16>
    %113 = arith.truncf %69 : vector<4x16x16xf32> to vector<4x16x16xbf16>
    "tpu.trace_start"() <{level = 10 : i32, message = "hij,hjd->hid"}> : () -> ()
    %cst_36 = arith.constant dense<0.000000e+00> : vector<4x16x16xf32>
    %114 = tpu.matmul %112, %113, %cst_36 {dimension_numbers = #tpu.dot_dimension_numbers<[2], [1], [1], [2], [0, 0, 0, 1, 1, 2], [0], [0]>} : vector<4x16x16xbf16>, vector<4x16x16xbf16>, vector<4x16x16xf32> -> vector<4x16x16xf32>
    "tpu.trace_stop"() : () -> ()
    %115 = vector.extract_strided_slice %114 {offsets = [0, 0, 0], sizes = [1, 16, 16], strides = [1, 1, 1]} : vector<4x16x16xf32> to vector<1x16x16xf32>
    %116 = vector.shape_cast %115 : vector<1x16x16xf32> to vector<16x16xf32>
    %117 = vector.extract_strided_slice %114 {offsets = [1, 0, 0], sizes = [1, 16, 16], strides = [1, 1, 1]} : vector<4x16x16xf32> to vector<1x16x16xf32>
    %118 = vector.shape_cast %117 : vector<1x16x16xf32> to vector<16x16xf32>
    %119 = vector.extract_strided_slice %114 {offsets = [2, 0, 0], sizes = [1, 16, 16], strides = [1, 1, 1]} : vector<4x16x16xf32> to vector<1x16x16xf32>
    %120 = vector.shape_cast %119 : vector<1x16x16xf32> to vector<16x16xf32>
    %121 = vector.extract_strided_slice %114 {offsets = [3, 0, 0], sizes = [1, 16, 16], strides = [1, 1, 1]} : vector<4x16x16xf32> to vector<1x16x16xf32>
    %122 = vector.shape_cast %121 : vector<1x16x16xf32> to vector<16x16xf32>
    %123 = tpu.concatenate %116, %118, %120, %122 in 1 : vector<16x16xf32>, vector<16x16xf32>, vector<16x16xf32>, vector<16x16xf32> -> vector<16x64xf32>
    %124 = arith.truncf %123 : vector<16x64xf32> to vector<16x64xbf16>
    %c0_37 = arith.constant 0 : index
    %c0_38 = arith.constant 0 : index
    %c0_39 = arith.constant 0 : index
    %125 = vector.load %arg7[%c0_37, %c0_38, %c0_39] : memref<3x64x32xbf16, #tpu.memory_space<vmem>>, vector<1x64x32xbf16>
    %126 = vector.shape_cast %125 : vector<1x64x32xbf16> to vector<64x32xbf16>
    %cst_40 = arith.constant dense<0.000000e+00> : vector<16x32xf32>
    %127 = tpu.matmul %124, %126, %cst_40 {dimension_numbers = #tpu.dot_dimension_numbers<[1], [0], [0], [1], [0, 0, 1, 1], [], []>} : vector<16x64xbf16>, vector<64x32xbf16>, vector<16x32xf32> -> vector<16x32xf32>
    %128 = arith.truncf %127 : vector<16x32xf32> to vector<16x32xbf16>
    %c1 = arith.constant 1 : index
    %c0_41 = arith.constant 0 : index
    %c0_42 = arith.constant 0 : index
    %129 = vector.load %arg6[%c1, %c0_41, %c0_42] : memref<3x32x192xbf16, #tpu.memory_space<vmem>>, vector<1x32x192xbf16>
    %130 = vector.shape_cast %129 : vector<1x32x192xbf16> to vector<32x192xbf16>
    %cst_43 = arith.constant dense<0.000000e+00> : vector<16x192xf32>
    %131 = tpu.matmul %128, %130, %cst_43 {dimension_numbers = #tpu.dot_dimension_numbers<[1], [0], [0], [1], [0, 0, 1, 1], [], []>} : vector<16x32xbf16>, vector<32x192xbf16>, vector<16x192xf32> -> vector<16x192xf32>
    %132 = vector.extract_strided_slice %131 {offsets = [0, 0], sizes = [16, 16], strides = [1, 1]} : vector<16x192xf32> to vector<16x16xf32>
    %133 = vector.extract_strided_slice %131 {offsets = [0, 16], sizes = [16, 16], strides = [1, 1]} : vector<16x192xf32> to vector<16x16xf32>
    %134 = vector.extract_strided_slice %131 {offsets = [0, 32], sizes = [16, 16], strides = [1, 1]} : vector<16x192xf32> to vector<16x16xf32>
    %135 = vector.extract_strided_slice %131 {offsets = [0, 48], sizes = [16, 16], strides = [1, 1]} : vector<16x192xf32> to vector<16x16xf32>
    %136 = vector.shape_cast %132 : vector<16x16xf32> to vector<1x16x16xf32>
    %137 = vector.shape_cast %133 : vector<16x16xf32> to vector<1x16x16xf32>
    %138 = vector.shape_cast %134 : vector<16x16xf32> to vector<1x16x16xf32>
    %139 = vector.shape_cast %135 : vector<16x16xf32> to vector<1x16x16xf32>
    %140 = tpu.concatenate %136, %137, %138, %139 in 0 : vector<1x16x16xf32>, vector<1x16x16xf32>, vector<1x16x16xf32>, vector<1x16x16xf32> -> vector<4x16x16xf32>
    %141 = vector.extract_strided_slice %131 {offsets = [0, 64], sizes = [16, 16], strides = [1, 1]} : vector<16x192xf32> to vector<16x16xf32>
    %142 = vector.extract_strided_slice %131 {offsets = [0, 80], sizes = [16, 16], strides = [1, 1]} : vector<16x192xf32> to vector<16x16xf32>
    %143 = vector.extract_strided_slice %131 {offsets = [0, 96], sizes = [16, 16], strides = [1, 1]} : vector<16x192xf32> to vector<16x16xf32>
    %144 = vector.extract_strided_slice %131 {offsets = [0, 112], sizes = [16, 16], strides = [1, 1]} : vector<16x192xf32> to vector<16x16xf32>
    %145 = vector.shape_cast %141 : vector<16x16xf32> to vector<1x16x16xf32>
    %146 = vector.shape_cast %142 : vector<16x16xf32> to vector<1x16x16xf32>
    %147 = vector.shape_cast %143 : vector<16x16xf32> to vector<1x16x16xf32>
    %148 = vector.shape_cast %144 : vector<16x16xf32> to vector<1x16x16xf32>
    %149 = tpu.concatenate %145, %146, %147, %148 in 0 : vector<1x16x16xf32>, vector<1x16x16xf32>, vector<1x16x16xf32>, vector<1x16x16xf32> -> vector<4x16x16xf32>
    %150 = vector.extract_strided_slice %131 {offsets = [0, 128], sizes = [16, 16], strides = [1, 1]} : vector<16x192xf32> to vector<16x16xf32>
    %151 = vector.extract_strided_slice %131 {offsets = [0, 144], sizes = [16, 16], strides = [1, 1]} : vector<16x192xf32> to vector<16x16xf32>
    %152 = vector.extract_strided_slice %131 {offsets = [0, 160], sizes = [16, 16], strides = [1, 1]} : vector<16x192xf32> to vector<16x16xf32>
    %153 = vector.extract_strided_slice %131 {offsets = [0, 176], sizes = [16, 16], strides = [1, 1]} : vector<16x192xf32> to vector<16x16xf32>
    %154 = vector.shape_cast %150 : vector<16x16xf32> to vector<1x16x16xf32>
    %155 = vector.shape_cast %151 : vector<16x16xf32> to vector<1x16x16xf32>
    %156 = vector.shape_cast %152 : vector<16x16xf32> to vector<1x16x16xf32>
    %157 = vector.shape_cast %153 : vector<16x16xf32> to vector<1x16x16xf32>
    %158 = tpu.concatenate %154, %155, %156, %157 in 0 : vector<1x16x16xf32>, vector<1x16x16xf32>, vector<1x16x16xf32>, vector<1x16x16xf32> -> vector<4x16x16xf32>
    %159 = arith.mulf %140, %140 : vector<4x16x16xf32>
    %cst_44 = arith.constant dense<0.000000e+00> : vector<4x16xf32>
    %160 = vector.multi_reduction <add>, %159, %cst_44 [2] : vector<4x16x16xf32> to vector<4x16xf32>
    %161 = vector.shape_cast %160 : vector<4x16xf32> to vector<4x16x1xf32>
    %cst_45 = arith.constant 9.99999993E-9 : f32
    %162 = vector.broadcast %cst_45 : f32 to vector<4x16x1xf32>
    %163 = arith.addf %161, %162 : vector<4x16x1xf32>
    %164 = math.rsqrt %163 : vector<4x16x1xf32>
    %165 = vector.broadcast %164 : vector<4x16x1xf32> to vector<4x16x16xf32>
    %166 = arith.mulf %140, %165 : vector<4x16x16xf32>
    %c1_46 = arith.constant 1 : index
    %c0_47 = arith.constant 0 : index
    %c0_48 = arith.constant 0 : index
    %c0_49 = arith.constant 0 : index
    %167 = vector.load %arg8[%c1_46, %c0_47, %c0_48, %c0_49] : memref<3x4x1x16xf32, #tpu.memory_space<vmem>>, vector<1x4x1x16xf32>
    %168 = vector.shape_cast %167 : vector<1x4x1x16xf32> to vector<4x1x16xf32>
    %169 = vector.broadcast %168 : vector<4x1x16xf32> to vector<4x16x16xf32>
    %170 = arith.mulf %166, %169 : vector<4x16x16xf32>
    %171 = arith.mulf %149, %149 : vector<4x16x16xf32>
    %cst_50 = arith.constant dense<0.000000e+00> : vector<4x16xf32>
    %172 = vector.multi_reduction <add>, %171, %cst_50 [2] : vector<4x16x16xf32> to vector<4x16xf32>
    %173 = vector.shape_cast %172 : vector<4x16xf32> to vector<4x16x1xf32>
    %cst_51 = arith.constant 9.99999993E-9 : f32
    %174 = vector.broadcast %cst_51 : f32 to vector<4x16x1xf32>
    %175 = arith.addf %173, %174 : vector<4x16x1xf32>
    %176 = math.rsqrt %175 : vector<4x16x1xf32>
    %177 = vector.broadcast %176 : vector<4x16x1xf32> to vector<4x16x16xf32>
    %178 = arith.mulf %149, %177 : vector<4x16x16xf32>
    %c1_52 = arith.constant 1 : index
    %c0_53 = arith.constant 0 : index
    %c0_54 = arith.constant 0 : index
    %c0_55 = arith.constant 0 : index
    %179 = vector.load %arg9[%c1_52, %c0_53, %c0_54, %c0_55] : memref<3x4x1x16xf32, #tpu.memory_space<vmem>>, vector<1x4x1x16xf32>
    %180 = vector.shape_cast %179 : vector<1x4x1x16xf32> to vector<4x1x16xf32>
    %181 = vector.broadcast %180 : vector<4x1x16xf32> to vector<4x16x16xf32>
    %182 = arith.mulf %178, %181 : vector<4x16x16xf32>
    %183 = arith.truncf %170 : vector<4x16x16xf32> to vector<4x16x16xbf16>
    %184 = arith.truncf %182 : vector<4x16x16xf32> to vector<4x16x16xbf16>
    "tpu.trace_start"() <{level = 10 : i32, message = "hid,hjd->hij"}> : () -> ()
    %cst_56 = arith.constant dense<0.000000e+00> : vector<4x16x16xf32>
    %185 = tpu.matmul %183, %184, %cst_56 {dimension_numbers = #tpu.dot_dimension_numbers<[2], [2], [1], [1], [0, 0, 0, 1, 1, 1], [0], [0]>} : vector<4x16x16xbf16>, vector<4x16x16xbf16>, vector<4x16x16xf32> -> vector<4x16x16xf32>
    "tpu.trace_stop"() : () -> ()
    %cst_57 = arith.constant 2.500000e-01 : f32
    %186 = vector.broadcast %cst_57 : f32 to vector<4x16x16xf32>
    %187 = arith.mulf %185, %186 : vector<4x16x16xf32>
    %188 = vector.shape_cast %5 : vector<16x16xf32> to vector<1x16x16xf32>
    %189 = vector.broadcast %188 : vector<1x16x16xf32> to vector<4x16x16xf32>
    %190 = arith.addf %187, %189 : vector<4x16x16xf32>
    %cst_58 = arith.constant dense<0xFF800000> : vector<4x16xf32>
    %191 = vector.multi_reduction <maximumf>, %190, %cst_58 [2] : vector<4x16x16xf32> to vector<4x16xf32>
    %192 = vector.shape_cast %191 : vector<4x16xf32> to vector<4x16x1xf32>
    %193 = vector.broadcast %192 : vector<4x16x1xf32> to vector<4x16x16xf32>
    %194 = arith.subf %190, %193 : vector<4x16x16xf32>
    %195 = math.exp %194 : vector<4x16x16xf32>
    %cst_59 = arith.constant dense<0.000000e+00> : vector<4x16xf32>
    %196 = vector.multi_reduction <add>, %195, %cst_59 [2] : vector<4x16x16xf32> to vector<4x16xf32>
    %197 = vector.shape_cast %196 : vector<4x16xf32> to vector<4x16x1xf32>
    %198 = tpu.reciprocal %197 {approx = true} : vector<4x16x1xf32> -> vector<4x16x1xf32>
    %199 = vector.broadcast %198 : vector<4x16x1xf32> to vector<4x16x16xf32>
    %200 = arith.mulf %195, %199 : vector<4x16x16xf32>
    %201 = arith.truncf %200 : vector<4x16x16xf32> to vector<4x16x16xbf16>
    %202 = arith.truncf %158 : vector<4x16x16xf32> to vector<4x16x16xbf16>
    "tpu.trace_start"() <{level = 10 : i32, message = "hij,hjd->hid"}> : () -> ()
    %cst_60 = arith.constant dense<0.000000e+00> : vector<4x16x16xf32>
    %203 = tpu.matmul %201, %202, %cst_60 {dimension_numbers = #tpu.dot_dimension_numbers<[2], [1], [1], [2], [0, 0, 0, 1, 1, 2], [0], [0]>} : vector<4x16x16xbf16>, vector<4x16x16xbf16>, vector<4x16x16xf32> -> vector<4x16x16xf32>
    "tpu.trace_stop"() : () -> ()
    %204 = vector.extract_strided_slice %203 {offsets = [0, 0, 0], sizes = [1, 16, 16], strides = [1, 1, 1]} : vector<4x16x16xf32> to vector<1x16x16xf32>
    %205 = vector.shape_cast %204 : vector<1x16x16xf32> to vector<16x16xf32>
    %206 = vector.extract_strided_slice %203 {offsets = [1, 0, 0], sizes = [1, 16, 16], strides = [1, 1, 1]} : vector<4x16x16xf32> to vector<1x16x16xf32>
    %207 = vector.shape_cast %206 : vector<1x16x16xf32> to vector<16x16xf32>
    %208 = vector.extract_strided_slice %203 {offsets = [2, 0, 0], sizes = [1, 16, 16], strides = [1, 1, 1]} : vector<4x16x16xf32> to vector<1x16x16xf32>
    %209 = vector.shape_cast %208 : vector<1x16x16xf32> to vector<16x16xf32>
    %210 = vector.extract_strided_slice %203 {offsets = [3, 0, 0], sizes = [1, 16, 16], strides = [1, 1, 1]} : vector<4x16x16xf32> to vector<1x16x16xf32>
    %211 = vector.shape_cast %210 : vector<1x16x16xf32> to vector<16x16xf32>
    %212 = tpu.concatenate %205, %207, %209, %211 in 1 : vector<16x16xf32>, vector<16x16xf32>, vector<16x16xf32>, vector<16x16xf32> -> vector<16x64xf32>
    %213 = arith.truncf %212 : vector<16x64xf32> to vector<16x64xbf16>
    %c1_61 = arith.constant 1 : index
    %c0_62 = arith.constant 0 : index
    %c0_63 = arith.constant 0 : index
    %214 = vector.load %arg7[%c1_61, %c0_62, %c0_63] : memref<3x64x32xbf16, #tpu.memory_space<vmem>>, vector<1x64x32xbf16>
    %215 = vector.shape_cast %214 : vector<1x64x32xbf16> to vector<64x32xbf16>
    %cst_64 = arith.constant dense<0.000000e+00> : vector<16x32xf32>
    %216 = tpu.matmul %213, %215, %cst_64 {dimension_numbers = #tpu.dot_dimension_numbers<[1], [0], [0], [1], [0, 0, 1, 1], [], []>} : vector<16x64xbf16>, vector<64x32xbf16>, vector<16x32xf32> -> vector<16x32xf32>
    %217 = arith.truncf %216 : vector<16x32xf32> to vector<16x32xbf16>
    %c2 = arith.constant 2 : index
    %c0_65 = arith.constant 0 : index
    %c0_66 = arith.constant 0 : index
    %218 = vector.load %arg6[%c2, %c0_65, %c0_66] : memref<3x32x192xbf16, #tpu.memory_space<vmem>>, vector<1x32x192xbf16>
    %219 = vector.shape_cast %218 : vector<1x32x192xbf16> to vector<32x192xbf16>
    %cst_67 = arith.constant dense<0.000000e+00> : vector<16x192xf32>
    %220 = tpu.matmul %217, %219, %cst_67 {dimension_numbers = #tpu.dot_dimension_numbers<[1], [0], [0], [1], [0, 0, 1, 1], [], []>} : vector<16x32xbf16>, vector<32x192xbf16>, vector<16x192xf32> -> vector<16x192xf32>
    %221 = vector.extract_strided_slice %220 {offsets = [0, 0], sizes = [16, 16], strides = [1, 1]} : vector<16x192xf32> to vector<16x16xf32>
    %222 = vector.extract_strided_slice %220 {offsets = [0, 16], sizes = [16, 16], strides = [1, 1]} : vector<16x192xf32> to vector<16x16xf32>
    %223 = vector.extract_strided_slice %220 {offsets = [0, 32], sizes = [16, 16], strides = [1, 1]} : vector<16x192xf32> to vector<16x16xf32>
    %224 = vector.extract_strided_slice %220 {offsets = [0, 48], sizes = [16, 16], strides = [1, 1]} : vector<16x192xf32> to vector<16x16xf32>
    %225 = vector.shape_cast %221 : vector<16x16xf32> to vector<1x16x16xf32>
    %226 = vector.shape_cast %222 : vector<16x16xf32> to vector<1x16x16xf32>
    %227 = vector.shape_cast %223 : vector<16x16xf32> to vector<1x16x16xf32>
    %228 = vector.shape_cast %224 : vector<16x16xf32> to vector<1x16x16xf32>
    %229 = tpu.concatenate %225, %226, %227, %228 in 0 : vector<1x16x16xf32>, vector<1x16x16xf32>, vector<1x16x16xf32>, vector<1x16x16xf32> -> vector<4x16x16xf32>
    %230 = vector.extract_strided_slice %220 {offsets = [0, 64], sizes = [16, 16], strides = [1, 1]} : vector<16x192xf32> to vector<16x16xf32>
    %231 = vector.extract_strided_slice %220 {offsets = [0, 80], sizes = [16, 16], strides = [1, 1]} : vector<16x192xf32> to vector<16x16xf32>
    %232 = vector.extract_strided_slice %220 {offsets = [0, 96], sizes = [16, 16], strides = [1, 1]} : vector<16x192xf32> to vector<16x16xf32>
    %233 = vector.extract_strided_slice %220 {offsets = [0, 112], sizes = [16, 16], strides = [1, 1]} : vector<16x192xf32> to vector<16x16xf32>
    %234 = vector.shape_cast %230 : vector<16x16xf32> to vector<1x16x16xf32>
    %235 = vector.shape_cast %231 : vector<16x16xf32> to vector<1x16x16xf32>
    %236 = vector.shape_cast %232 : vector<16x16xf32> to vector<1x16x16xf32>
    %237 = vector.shape_cast %233 : vector<16x16xf32> to vector<1x16x16xf32>
    %238 = tpu.concatenate %234, %235, %236, %237 in 0 : vector<1x16x16xf32>, vector<1x16x16xf32>, vector<1x16x16xf32>, vector<1x16x16xf32> -> vector<4x16x16xf32>
    %239 = vector.extract_strided_slice %220 {offsets = [0, 128], sizes = [16, 16], strides = [1, 1]} : vector<16x192xf32> to vector<16x16xf32>
    %240 = vector.extract_strided_slice %220 {offsets = [0, 144], sizes = [16, 16], strides = [1, 1]} : vector<16x192xf32> to vector<16x16xf32>
    %241 = vector.extract_strided_slice %220 {offsets = [0, 160], sizes = [16, 16], strides = [1, 1]} : vector<16x192xf32> to vector<16x16xf32>
    %242 = vector.extract_strided_slice %220 {offsets = [0, 176], sizes = [16, 16], strides = [1, 1]} : vector<16x192xf32> to vector<16x16xf32>
    %243 = vector.shape_cast %239 : vector<16x16xf32> to vector<1x16x16xf32>
    %244 = vector.shape_cast %240 : vector<16x16xf32> to vector<1x16x16xf32>
    %245 = vector.shape_cast %241 : vector<16x16xf32> to vector<1x16x16xf32>
    %246 = vector.shape_cast %242 : vector<16x16xf32> to vector<1x16x16xf32>
    %247 = tpu.concatenate %243, %244, %245, %246 in 0 : vector<1x16x16xf32>, vector<1x16x16xf32>, vector<1x16x16xf32>, vector<1x16x16xf32> -> vector<4x16x16xf32>
    %248 = arith.mulf %229, %229 : vector<4x16x16xf32>
    %cst_68 = arith.constant dense<0.000000e+00> : vector<4x16xf32>
    %249 = vector.multi_reduction <add>, %248, %cst_68 [2] : vector<4x16x16xf32> to vector<4x16xf32>
    %250 = vector.shape_cast %249 : vector<4x16xf32> to vector<4x16x1xf32>
    %cst_69 = arith.constant 9.99999993E-9 : f32
    %251 = vector.broadcast %cst_69 : f32 to vector<4x16x1xf32>
    %252 = arith.addf %250, %251 : vector<4x16x1xf32>
    %253 = math.rsqrt %252 : vector<4x16x1xf32>
    %254 = vector.broadcast %253 : vector<4x16x1xf32> to vector<4x16x16xf32>
    %255 = arith.mulf %229, %254 : vector<4x16x16xf32>
    %c2_70 = arith.constant 2 : index
    %c0_71 = arith.constant 0 : index
    %c0_72 = arith.constant 0 : index
    %c0_73 = arith.constant 0 : index
    %256 = vector.load %arg8[%c2_70, %c0_71, %c0_72, %c0_73] : memref<3x4x1x16xf32, #tpu.memory_space<vmem>>, vector<1x4x1x16xf32>
    %257 = vector.shape_cast %256 : vector<1x4x1x16xf32> to vector<4x1x16xf32>
    %258 = vector.broadcast %257 : vector<4x1x16xf32> to vector<4x16x16xf32>
    %259 = arith.mulf %255, %258 : vector<4x16x16xf32>
    %260 = arith.mulf %238, %238 : vector<4x16x16xf32>
    %cst_74 = arith.constant dense<0.000000e+00> : vector<4x16xf32>
    %261 = vector.multi_reduction <add>, %260, %cst_74 [2] : vector<4x16x16xf32> to vector<4x16xf32>
    %262 = vector.shape_cast %261 : vector<4x16xf32> to vector<4x16x1xf32>
    %cst_75 = arith.constant 9.99999993E-9 : f32
    %263 = vector.broadcast %cst_75 : f32 to vector<4x16x1xf32>
    %264 = arith.addf %262, %263 : vector<4x16x1xf32>
    %265 = math.rsqrt %264 : vector<4x16x1xf32>
    %266 = vector.broadcast %265 : vector<4x16x1xf32> to vector<4x16x16xf32>
    %267 = arith.mulf %238, %266 : vector<4x16x16xf32>
    %c2_76 = arith.constant 2 : index
    %c0_77 = arith.constant 0 : index
    %c0_78 = arith.constant 0 : index
    %c0_79 = arith.constant 0 : index
    %268 = vector.load %arg9[%c2_76, %c0_77, %c0_78, %c0_79] : memref<3x4x1x16xf32, #tpu.memory_space<vmem>>, vector<1x4x1x16xf32>
    %269 = vector.shape_cast %268 : vector<1x4x1x16xf32> to vector<4x1x16xf32>
    %270 = vector.broadcast %269 : vector<4x1x16xf32> to vector<4x16x16xf32>
    %271 = arith.mulf %267, %270 : vector<4x16x16xf32>
    %272 = arith.truncf %259 : vector<4x16x16xf32> to vector<4x16x16xbf16>
    %273 = arith.truncf %271 : vector<4x16x16xf32> to vector<4x16x16xbf16>
    "tpu.trace_start"() <{level = 10 : i32, message = "hid,hjd->hij"}> : () -> ()
    %cst_80 = arith.constant dense<0.000000e+00> : vector<4x16x16xf32>
    %274 = tpu.matmul %272, %273, %cst_80 {dimension_numbers = #tpu.dot_dimension_numbers<[2], [2], [1], [1], [0, 0, 0, 1, 1, 1], [0], [0]>} : vector<4x16x16xbf16>, vector<4x16x16xbf16>, vector<4x16x16xf32> -> vector<4x16x16xf32>
    "tpu.trace_stop"() : () -> ()
    %cst_81 = arith.constant 2.500000e-01 : f32
    %275 = vector.broadcast %cst_81 : f32 to vector<4x16x16xf32>
    %276 = arith.mulf %274, %275 : vector<4x16x16xf32>
    %277 = vector.shape_cast %5 : vector<16x16xf32> to vector<1x16x16xf32>
    %278 = vector.broadcast %277 : vector<1x16x16xf32> to vector<4x16x16xf32>
    %279 = arith.addf %276, %278 : vector<4x16x16xf32>
    %cst_82 = arith.constant dense<0xFF800000> : vector<4x16xf32>
    %280 = vector.multi_reduction <maximumf>, %279, %cst_82 [2] : vector<4x16x16xf32> to vector<4x16xf32>
    %281 = vector.shape_cast %280 : vector<4x16xf32> to vector<4x16x1xf32>
    %282 = vector.broadcast %281 : vector<4x16x1xf32> to vector<4x16x16xf32>
    %283 = arith.subf %279, %282 : vector<4x16x16xf32>
    %284 = math.exp %283 : vector<4x16x16xf32>
    %cst_83 = arith.constant dense<0.000000e+00> : vector<4x16xf32>
    %285 = vector.multi_reduction <add>, %284, %cst_83 [2] : vector<4x16x16xf32> to vector<4x16xf32>
    %286 = vector.shape_cast %285 : vector<4x16xf32> to vector<4x16x1xf32>
    %287 = tpu.reciprocal %286 {approx = true} : vector<4x16x1xf32> -> vector<4x16x1xf32>
    %288 = vector.broadcast %287 : vector<4x16x1xf32> to vector<4x16x16xf32>
    %289 = arith.mulf %284, %288 : vector<4x16x16xf32>
    %290 = arith.truncf %289 : vector<4x16x16xf32> to vector<4x16x16xbf16>
    %291 = arith.truncf %247 : vector<4x16x16xf32> to vector<4x16x16xbf16>
    "tpu.trace_start"() <{level = 10 : i32, message = "hij,hjd->hid"}> : () -> ()
    %cst_84 = arith.constant dense<0.000000e+00> : vector<4x16x16xf32>
    %292 = tpu.matmul %290, %291, %cst_84 {dimension_numbers = #tpu.dot_dimension_numbers<[2], [1], [1], [2], [0, 0, 0, 1, 1, 2], [0], [0]>} : vector<4x16x16xbf16>, vector<4x16x16xbf16>, vector<4x16x16xf32> -> vector<4x16x16xf32>
    "tpu.trace_stop"() : () -> ()
    %293 = vector.extract_strided_slice %292 {offsets = [0, 0, 0], sizes = [1, 16, 16], strides = [1, 1, 1]} : vector<4x16x16xf32> to vector<1x16x16xf32>
    %294 = vector.shape_cast %293 : vector<1x16x16xf32> to vector<16x16xf32>
    %295 = vector.extract_strided_slice %292 {offsets = [1, 0, 0], sizes = [1, 16, 16], strides = [1, 1, 1]} : vector<4x16x16xf32> to vector<1x16x16xf32>
    %296 = vector.shape_cast %295 : vector<1x16x16xf32> to vector<16x16xf32>
    %297 = vector.extract_strided_slice %292 {offsets = [2, 0, 0], sizes = [1, 16, 16], strides = [1, 1, 1]} : vector<4x16x16xf32> to vector<1x16x16xf32>
    %298 = vector.shape_cast %297 : vector<1x16x16xf32> to vector<16x16xf32>
    %299 = vector.extract_strided_slice %292 {offsets = [3, 0, 0], sizes = [1, 16, 16], strides = [1, 1, 1]} : vector<4x16x16xf32> to vector<1x16x16xf32>
    %300 = vector.shape_cast %299 : vector<1x16x16xf32> to vector<16x16xf32>
    %301 = tpu.concatenate %294, %296, %298, %300 in 1 : vector<16x16xf32>, vector<16x16xf32>, vector<16x16xf32>, vector<16x16xf32> -> vector<16x64xf32>
    %302 = arith.truncf %301 : vector<16x64xf32> to vector<16x64xbf16>
    %c2_85 = arith.constant 2 : index
    %c0_86 = arith.constant 0 : index
    %c0_87 = arith.constant 0 : index
    %303 = vector.load %arg7[%c2_85, %c0_86, %c0_87] : memref<3x64x32xbf16, #tpu.memory_space<vmem>>, vector<1x64x32xbf16>
    %304 = vector.shape_cast %303 : vector<1x64x32xbf16> to vector<64x32xbf16>
    %cst_88 = arith.constant dense<0.000000e+00> : vector<16x32xf32>
    %305 = tpu.matmul %302, %304, %cst_88 {dimension_numbers = #tpu.dot_dimension_numbers<[1], [0], [0], [1], [0, 0, 1, 1], [], []>} : vector<16x64xbf16>, vector<64x32xbf16>, vector<16x32xf32> -> vector<16x32xf32>
    %c0_89 = arith.constant 0 : index
    %c0_90 = arith.constant 0 : index
    %306 = vector.load %arg10[%c0_89, %c0_90] : memref<1x32xf32, #tpu.memory_space<vmem>>, vector<1x32xf32>
    %c0_91 = arith.constant 0 : index
    %c0_92 = arith.constant 0 : index
    %307 = vector.load %arg11[%c0_91, %c0_92] : memref<1x32xf32, #tpu.memory_space<vmem>>, vector<1x32xf32>
    %cst_93 = arith.constant dense<0.000000e+00> : vector<16xf32>
    %308 = vector.multi_reduction <add>, %305, %cst_93 [1] : vector<16x32xf32> to vector<16xf32>
    %309 = vector.shape_cast %308 : vector<16xf32> to vector<16x1xf32>
    %cst_94 = arith.constant 3.200000e+01 : f32
    %310 = vector.broadcast %cst_94 : f32 to vector<16x1xf32>
    %311 = arith.divf %309, %310 : vector<16x1xf32>
    %312 = vector.broadcast %311 : vector<16x1xf32> to vector<16x32xf32>
    %313 = arith.subf %305, %312 : vector<16x32xf32>
    %314 = arith.mulf %313, %313 : vector<16x32xf32>
    %cst_95 = arith.constant dense<0.000000e+00> : vector<16xf32>
    %315 = vector.multi_reduction <add>, %314, %cst_95 [1] : vector<16x32xf32> to vector<16xf32>
    %316 = vector.shape_cast %315 : vector<16xf32> to vector<16x1xf32>
    %cst_96 = arith.constant 3.200000e+01 : f32
    %317 = vector.broadcast %cst_96 : f32 to vector<16x1xf32>
    %318 = arith.divf %316, %317 : vector<16x1xf32>
    %319 = vector.broadcast %311 : vector<16x1xf32> to vector<16x32xf32>
    %320 = arith.subf %305, %319 : vector<16x32xf32>
    %cst_97 = arith.constant 9.99999974E-6 : f32
    %321 = vector.broadcast %cst_97 : f32 to vector<16x1xf32>
    %322 = arith.addf %318, %321 : vector<16x1xf32>
    %323 = math.rsqrt %322 : vector<16x1xf32>
    %324 = vector.broadcast %323 : vector<16x1xf32> to vector<16x32xf32>
    %325 = arith.mulf %320, %324 : vector<16x32xf32>
    %326 = vector.broadcast %306 : vector<1x32xf32> to vector<16x32xf32>
    %327 = arith.mulf %325, %326 : vector<16x32xf32>
    %328 = vector.broadcast %307 : vector<1x32xf32> to vector<16x32xf32>
    %329 = arith.addf %327, %328 : vector<16x32xf32>
    %c0_98 = arith.constant 0 : index
    %c0_99 = arith.constant 0 : index
    %330 = vector.load %arg12[%c0_98, %c0_99] : memref<1x32xf32, #tpu.memory_space<vmem>>, vector<1x32xf32>
    %c0_100 = arith.constant 0 : index
    %c0_101 = arith.constant 0 : index
    %331 = vector.load %arg13[%c0_100, %c0_101] : memref<1x32xf32, #tpu.memory_space<vmem>>, vector<1x32xf32>
    %cst_102 = arith.constant dense<0.000000e+00> : vector<16xf32>
    %332 = vector.multi_reduction <add>, %305, %cst_102 [1] : vector<16x32xf32> to vector<16xf32>
    %333 = vector.shape_cast %332 : vector<16xf32> to vector<16x1xf32>
    %cst_103 = arith.constant 3.200000e+01 : f32
    %334 = vector.broadcast %cst_103 : f32 to vector<16x1xf32>
    %335 = arith.divf %333, %334 : vector<16x1xf32>
    %336 = vector.broadcast %335 : vector<16x1xf32> to vector<16x32xf32>
    %337 = arith.subf %305, %336 : vector<16x32xf32>
    %338 = arith.mulf %337, %337 : vector<16x32xf32>
    %cst_104 = arith.constant dense<0.000000e+00> : vector<16xf32>
    %339 = vector.multi_reduction <add>, %338, %cst_104 [1] : vector<16x32xf32> to vector<16xf32>
    %340 = vector.shape_cast %339 : vector<16xf32> to vector<16x1xf32>
    %cst_105 = arith.constant 3.200000e+01 : f32
    %341 = vector.broadcast %cst_105 : f32 to vector<16x1xf32>
    %342 = arith.divf %340, %341 : vector<16x1xf32>
    %343 = vector.broadcast %335 : vector<16x1xf32> to vector<16x32xf32>
    %344 = arith.subf %305, %343 : vector<16x32xf32>
    %cst_106 = arith.constant 9.99999974E-6 : f32
    %345 = vector.broadcast %cst_106 : f32 to vector<16x1xf32>
    %346 = arith.addf %342, %345 : vector<16x1xf32>
    %347 = math.rsqrt %346 : vector<16x1xf32>
    %348 = vector.broadcast %347 : vector<16x1xf32> to vector<16x32xf32>
    %349 = arith.mulf %344, %348 : vector<16x32xf32>
    %350 = vector.broadcast %330 : vector<1x32xf32> to vector<16x32xf32>
    %351 = arith.mulf %349, %350 : vector<16x32xf32>
    %352 = vector.broadcast %331 : vector<1x32xf32> to vector<16x32xf32>
    %353 = arith.addf %351, %352 : vector<16x32xf32>
    %354 = arith.truncf %329 : vector<16x32xf32> to vector<16x32xbf16>
    %355 = arith.truncf %353 : vector<16x32xf32> to vector<16x32xbf16>
    %c0_107 = arith.constant 0 : index
    %c0_108 = arith.constant 0 : index
    %356 = vector.load %arg14[%c0_107, %c0_108] : memref<32x64xbf16, #tpu.memory_space<vmem>>, vector<32x64xbf16>
    %cst_109 = arith.constant dense<0.000000e+00> : vector<16x64xf32>
    %357 = tpu.matmul %354, %356, %cst_109 {dimension_numbers = #tpu.dot_dimension_numbers<[1], [0], [0], [1], [0, 0, 1, 1], [], []>} : vector<16x32xbf16>, vector<32x64xbf16>, vector<16x64xf32> -> vector<16x64xf32>
    %cst_110 = arith.constant 2.500000e-01 : f32
    %358 = vector.broadcast %cst_110 : f32 to vector<16x64xf32>
    %359 = arith.mulf %357, %358 : vector<16x64xf32>
    %c0_111 = arith.constant 0 : index
    %c0_112 = arith.constant 0 : index
    %360 = vector.load %arg15[%c0_111, %c0_112] : memref<32x32xbf16, #tpu.memory_space<vmem>>, vector<32x32xbf16>
    %cst_113 = arith.constant dense<0.000000e+00> : vector<16x32xf32>
    %361 = tpu.matmul %355, %360, %cst_113 {dimension_numbers = #tpu.dot_dimension_numbers<[1], [0], [0], [1], [0, 0, 1, 1], [], []>} : vector<16x32xbf16>, vector<32x32xbf16>, vector<16x32xf32> -> vector<16x32xf32>
    %362 = vector.extract_strided_slice %361 {offsets = [0, 0], sizes = [16, 16], strides = [1, 1]} : vector<16x32xf32> to vector<16x16xf32>
    %363 = arith.truncf %362 : vector<16x16xf32> to vector<16x16xbf16>
    %364 = vector.extract_strided_slice %361 {offsets = [0, 16], sizes = [16, 16], strides = [1, 1]} : vector<16x32xf32> to vector<16x16xf32>
    %365 = arith.truncf %364 : vector<16x16xf32> to vector<16x16xbf16>
    %366 = vector.extract_strided_slice %359 {offsets = [0, 0], sizes = [16, 16], strides = [1, 1]} : vector<16x64xf32> to vector<16x16xf32>
    %367 = vector.extract_strided_slice %359 {offsets = [0, 16], sizes = [16, 16], strides = [1, 1]} : vector<16x64xf32> to vector<16x16xf32>
    %368 = vector.extract_strided_slice %359 {offsets = [0, 32], sizes = [16, 16], strides = [1, 1]} : vector<16x64xf32> to vector<16x16xf32>
    %369 = vector.extract_strided_slice %359 {offsets = [0, 48], sizes = [16, 16], strides = [1, 1]} : vector<16x64xf32> to vector<16x16xf32>
    %370 = vector.shape_cast %366 : vector<16x16xf32> to vector<1x16x16xf32>
    %371 = vector.shape_cast %367 : vector<16x16xf32> to vector<1x16x16xf32>
    %372 = vector.shape_cast %368 : vector<16x16xf32> to vector<1x16x16xf32>
    %373 = vector.shape_cast %369 : vector<16x16xf32> to vector<1x16x16xf32>
    %374 = tpu.concatenate %370, %371, %372, %373 in 0 : vector<1x16x16xf32>, vector<1x16x16xf32>, vector<1x16x16xf32>, vector<1x16x16xf32> -> vector<4x16x16xf32>
    %375 = arith.truncf %374 : vector<4x16x16xf32> to vector<4x16x16xbf16>
    %376 = vector.shape_cast %363 : vector<16x16xbf16> to vector<1x16x16xbf16>
    %377 = vector.broadcast %376 : vector<1x16x16xbf16> to vector<4x16x16xbf16>
    %378 = vector.shape_cast %365 : vector<16x16xbf16> to vector<1x16x16xbf16>
    %379 = vector.broadcast %378 : vector<1x16x16xbf16> to vector<4x16x16xbf16>
    "tpu.trace_start"() <{level = 10 : i32, message = "hid,hjd->hij"}> : () -> ()
    %cst_114 = arith.constant dense<0.000000e+00> : vector<4x16x16xf32>
    %380 = tpu.matmul %375, %377, %cst_114 {dimension_numbers = #tpu.dot_dimension_numbers<[2], [2], [1], [1], [0, 0, 0, 1, 1, 1], [0], [0]>} : vector<4x16x16xbf16>, vector<4x16x16xbf16>, vector<4x16x16xf32> -> vector<4x16x16xf32>
    "tpu.trace_stop"() : () -> ()
    %cst_115 = arith.constant dense<0xFF800000> : vector<4x16xf32>
    %381 = vector.multi_reduction <maximumf>, %380, %cst_115 [2] : vector<4x16x16xf32> to vector<4x16xf32>
    %382 = vector.shape_cast %381 : vector<4x16xf32> to vector<4x16x1xf32>
    %383 = vector.broadcast %382 : vector<4x16x1xf32> to vector<4x16x16xf32>
    %384 = arith.subf %380, %383 : vector<4x16x16xf32>
    %385 = math.exp %384 : vector<4x16x16xf32>
    %cst_116 = arith.constant dense<0.000000e+00> : vector<4x16xf32>
    %386 = vector.multi_reduction <add>, %385, %cst_116 [2] : vector<4x16x16xf32> to vector<4x16xf32>
    %387 = vector.shape_cast %386 : vector<4x16xf32> to vector<4x16x1xf32>
    %388 = tpu.reciprocal %387 {approx = true} : vector<4x16x1xf32> -> vector<4x16x1xf32>
    %389 = vector.broadcast %388 : vector<4x16x1xf32> to vector<4x16x16xf32>
    %390 = arith.mulf %385, %389 : vector<4x16x16xf32>
    %391 = arith.truncf %390 : vector<4x16x16xf32> to vector<4x16x16xbf16>
    "tpu.trace_start"() <{level = 10 : i32, message = "hij,hjd->hid"}> : () -> ()
    %cst_117 = arith.constant dense<0.000000e+00> : vector<4x16x16xf32>
    %392 = tpu.matmul %391, %379, %cst_117 {dimension_numbers = #tpu.dot_dimension_numbers<[2], [1], [1], [2], [0, 0, 0, 1, 1, 2], [0], [0]>} : vector<4x16x16xbf16>, vector<4x16x16xbf16>, vector<4x16x16xf32> -> vector<4x16x16xf32>
    "tpu.trace_stop"() : () -> ()
    %393 = vector.extract_strided_slice %392 {offsets = [0, 0, 0], sizes = [1, 16, 16], strides = [1, 1, 1]} : vector<4x16x16xf32> to vector<1x16x16xf32>
    %394 = vector.shape_cast %393 : vector<1x16x16xf32> to vector<16x16xf32>
    %395 = vector.extract_strided_slice %392 {offsets = [1, 0, 0], sizes = [1, 16, 16], strides = [1, 1, 1]} : vector<4x16x16xf32> to vector<1x16x16xf32>
    %396 = vector.shape_cast %395 : vector<1x16x16xf32> to vector<16x16xf32>
    %397 = vector.extract_strided_slice %392 {offsets = [2, 0, 0], sizes = [1, 16, 16], strides = [1, 1, 1]} : vector<4x16x16xf32> to vector<1x16x16xf32>
    %398 = vector.shape_cast %397 : vector<1x16x16xf32> to vector<16x16xf32>
    %399 = vector.extract_strided_slice %392 {offsets = [3, 0, 0], sizes = [1, 16, 16], strides = [1, 1, 1]} : vector<4x16x16xf32> to vector<1x16x16xf32>
    %400 = vector.shape_cast %399 : vector<1x16x16xf32> to vector<16x16xf32>
    %401 = tpu.concatenate %394, %396, %398, %400 in 1 : vector<16x16xf32>, vector<16x16xf32>, vector<16x16xf32>, vector<16x16xf32> -> vector<16x64xf32>
    %402 = arith.truncf %401 : vector<16x64xf32> to vector<16x64xbf16>
    %c0_118 = arith.constant 0 : index
    %c0_119 = arith.constant 0 : index
    %403 = vector.load %arg16[%c0_118, %c0_119] : memref<64x32xbf16, #tpu.memory_space<vmem>>, vector<64x32xbf16>
    %cst_120 = arith.constant dense<0.000000e+00> : vector<16x32xf32>
    %404 = tpu.matmul %402, %403, %cst_120 {dimension_numbers = #tpu.dot_dimension_numbers<[1], [0], [0], [1], [0, 0, 1, 1], [], []>} : vector<16x64xbf16>, vector<64x32xbf16>, vector<16x32xf32> -> vector<16x32xf32>
    %c0_121 = arith.constant 0 : index
    %c0_122 = arith.constant 0 : index
    %405 = vector.load %arg17[%c0_121, %c0_122] : memref<32x256xbf16, #tpu.memory_space<vmem>>, vector<32x256xbf16>
    %cst_123 = arith.constant dense<0.000000e+00> : vector<16x256xf32>
    %406 = tpu.matmul %354, %405, %cst_123 {dimension_numbers = #tpu.dot_dimension_numbers<[1], [0], [0], [1], [0, 0, 1, 1], [], []>} : vector<16x32xbf16>, vector<32x256xbf16>, vector<16x256xf32> -> vector<16x256xf32>
    %407 = vector.extract_strided_slice %406 {offsets = [0, 0], sizes = [16, 128], strides = [1, 1]} : vector<16x256xf32> to vector<16x128xf32>
    %408 = vector.extract_strided_slice %406 {offsets = [0, 128], sizes = [16, 128], strides = [1, 1]} : vector<16x256xf32> to vector<16x128xf32>
    %409 = arith.negf %408 : vector<16x128xf32>
    %410 = math.exp %409 : vector<16x128xf32>
    %cst_124 = arith.constant 1.000000e+00 : f32
    %411 = vector.broadcast %cst_124 : f32 to vector<16x128xf32>
    %412 = arith.addf %411, %410 : vector<16x128xf32>
    %413 = arith.divf %411, %412 : vector<16x128xf32>
    %414 = arith.mulf %408, %413 : vector<16x128xf32>
    %415 = arith.mulf %407, %414 : vector<16x128xf32>
    %416 = arith.truncf %415 : vector<16x128xf32> to vector<16x128xbf16>
    %c0_125 = arith.constant 0 : index
    %c0_126 = arith.constant 0 : index
    %417 = vector.load %arg18[%c0_125, %c0_126] : memref<128x32xbf16, #tpu.memory_space<vmem>>, vector<128x32xbf16>
    %cst_127 = arith.constant dense<0.000000e+00> : vector<16x32xf32>
    %418 = tpu.matmul %416, %417, %cst_127 {dimension_numbers = #tpu.dot_dimension_numbers<[1], [0], [0], [1], [0, 0, 1, 1], [], []>} : vector<16x128xbf16>, vector<128x32xbf16>, vector<16x32xf32> -> vector<16x32xf32>
    %419 = arith.addf %404, %418 : vector<16x32xf32>
    %c0_128 = arith.constant 0 : index
    %c0_129 = arith.constant 0 : index
    %420 = vector.load %arg19[%c0_128, %c0_129] : memref<1x32xf32, #tpu.memory_space<vmem>>, vector<1x32xf32>
    %c0_130 = arith.constant 0 : index
    %c0_131 = arith.constant 0 : index
    %421 = vector.load %arg20[%c0_130, %c0_131] : memref<1x32xf32, #tpu.memory_space<vmem>>, vector<1x32xf32>
    %cst_132 = arith.constant dense<0.000000e+00> : vector<16xf32>
    %422 = vector.multi_reduction <add>, %419, %cst_132 [1] : vector<16x32xf32> to vector<16xf32>
    %423 = vector.shape_cast %422 : vector<16xf32> to vector<16x1xf32>
    %cst_133 = arith.constant 3.200000e+01 : f32
    %424 = vector.broadcast %cst_133 : f32 to vector<16x1xf32>
    %425 = arith.divf %423, %424 : vector<16x1xf32>
    %426 = vector.broadcast %425 : vector<16x1xf32> to vector<16x32xf32>
    %427 = arith.subf %419, %426 : vector<16x32xf32>
    %428 = arith.mulf %427, %427 : vector<16x32xf32>
    %cst_134 = arith.constant dense<0.000000e+00> : vector<16xf32>
    %429 = vector.multi_reduction <add>, %428, %cst_134 [1] : vector<16x32xf32> to vector<16xf32>
    %430 = vector.shape_cast %429 : vector<16xf32> to vector<16x1xf32>
    %cst_135 = arith.constant 3.200000e+01 : f32
    %431 = vector.broadcast %cst_135 : f32 to vector<16x1xf32>
    %432 = arith.divf %430, %431 : vector<16x1xf32>
    %433 = vector.broadcast %425 : vector<16x1xf32> to vector<16x32xf32>
    %434 = arith.subf %419, %433 : vector<16x32xf32>
    %cst_136 = arith.constant 9.99999974E-6 : f32
    %435 = vector.broadcast %cst_136 : f32 to vector<16x1xf32>
    %436 = arith.addf %432, %435 : vector<16x1xf32>
    %437 = math.rsqrt %436 : vector<16x1xf32>
    %438 = vector.broadcast %437 : vector<16x1xf32> to vector<16x32xf32>
    %439 = arith.mulf %434, %438 : vector<16x32xf32>
    %440 = vector.broadcast %420 : vector<1x32xf32> to vector<16x32xf32>
    %441 = arith.mulf %439, %440 : vector<16x32xf32>
    %442 = vector.broadcast %421 : vector<1x32xf32> to vector<16x32xf32>
    %443 = arith.addf %441, %442 : vector<16x32xf32>
    %444 = math.tanh %443 : vector<16x32xf32>
    %445 = arith.addf %444, %305 : vector<16x32xf32>
    %446 = arith.truncf %445 : vector<16x32xf32> to vector<16x32xbf16>
    %c0_137 = arith.constant 0 : index
    %c0_138 = arith.constant 0 : index
    %447 = vector.load %arg21[%c0_137, %c0_138] : memref<32x32xbf16, #tpu.memory_space<vmem>>, vector<32x32xbf16>
    %cst_139 = arith.constant dense<0.000000e+00> : vector<16x32xf32>
    %448 = tpu.matmul %446, %447, %cst_139 {dimension_numbers = #tpu.dot_dimension_numbers<[1], [0], [0], [1], [0, 0, 1, 1], [], []>} : vector<16x32xbf16>, vector<32x32xbf16>, vector<16x32xf32> -> vector<16x32xf32>
    %c0_140 = arith.constant 0 : index
    %c0_141 = arith.constant 0 : index
    %449 = vector.load %arg22[%c0_140, %c0_141] : memref<1x32xf32, #tpu.memory_space<vmem>>, vector<1x32xf32>
    %450 = vector.broadcast %449 : vector<1x32xf32> to vector<16x32xf32>
    %451 = arith.addf %448, %450 : vector<16x32xf32>
    %452 = math.tanh %451 : vector<16x32xf32>
    %c0_142 = arith.constant 0 : index
    %c0_143 = arith.constant 0 : index
    %453 = vector.load %arg23[%c0_142, %c0_143] : memref<1x32xf32, #tpu.memory_space<vmem>>, vector<1x32xf32>
    %c0_144 = arith.constant 0 : index
    %c0_145 = arith.constant 0 : index
    %454 = vector.load %arg24[%c0_144, %c0_145] : memref<1x32xf32, #tpu.memory_space<vmem>>, vector<1x32xf32>
    %cst_146 = arith.constant dense<0.000000e+00> : vector<16xf32>
    %455 = vector.multi_reduction <add>, %452, %cst_146 [1] : vector<16x32xf32> to vector<16xf32>
    %456 = vector.shape_cast %455 : vector<16xf32> to vector<16x1xf32>
    %cst_147 = arith.constant 3.200000e+01 : f32
    %457 = vector.broadcast %cst_147 : f32 to vector<16x1xf32>
    %458 = arith.divf %456, %457 : vector<16x1xf32>
    %459 = vector.broadcast %458 : vector<16x1xf32> to vector<16x32xf32>
    %460 = arith.subf %452, %459 : vector<16x32xf32>
    %461 = arith.mulf %460, %460 : vector<16x32xf32>
    %cst_148 = arith.constant dense<0.000000e+00> : vector<16xf32>
    %462 = vector.multi_reduction <add>, %461, %cst_148 [1] : vector<16x32xf32> to vector<16xf32>
    %463 = vector.shape_cast %462 : vector<16xf32> to vector<16x1xf32>
    %cst_149 = arith.constant 3.200000e+01 : f32
    %464 = vector.broadcast %cst_149 : f32 to vector<16x1xf32>
    %465 = arith.divf %463, %464 : vector<16x1xf32>
    %466 = vector.broadcast %458 : vector<16x1xf32> to vector<16x32xf32>
    %467 = arith.subf %452, %466 : vector<16x32xf32>
    %cst_150 = arith.constant 9.99999974E-6 : f32
    %468 = vector.broadcast %cst_150 : f32 to vector<16x1xf32>
    %469 = arith.addf %465, %468 : vector<16x1xf32>
    %470 = math.rsqrt %469 : vector<16x1xf32>
    %471 = vector.broadcast %470 : vector<16x1xf32> to vector<16x32xf32>
    %472 = arith.mulf %467, %471 : vector<16x32xf32>
    %473 = vector.broadcast %453 : vector<1x32xf32> to vector<16x32xf32>
    %474 = arith.mulf %472, %473 : vector<16x32xf32>
    %475 = vector.broadcast %454 : vector<1x32xf32> to vector<16x32xf32>
    %476 = arith.addf %474, %475 : vector<16x32xf32>
    %477 = arith.addf %476, %38 : vector<16x32xf32>
    %c0_151 = arith.constant 0 : index
    %c0_152 = arith.constant 0 : index
    %c0_153 = arith.constant 0 : index
    %478 = vector.load %arg25[%c0_151, %c0_152, %c0_153] : memref<1x16x32xf32, #tpu.memory_space<vmem>>, vector<1x16x32xf32>
    %479 = vector.shape_cast %478 : vector<1x16x32xf32> to vector<16x32xf32>
    %480 = vector.shape_cast %477 : vector<16x32xf32> to vector<1x16x32xf32>
    tpu.vector_store %arg25[%c0_151, %c0_152, %c0_153], %480 {strides = array<i32>} : memref<1x16x32xf32, #tpu.memory_space<vmem>>, vector<1x16x32xf32>,
    return
  }
  func.func @transform_0(%arg0: i32) -> (i32, i32, i32) {
    %c0_i32 = arith.constant 0 : i32
    %c0_i32_0 = arith.constant 0 : i32
    %c0_i32_1 = arith.constant 0 : i32
    return %arg0, %c0_i32, %c0_i32_0 : i32, i32, i32
  }
  func.func @transform_1(%arg0: i32) -> (i32, i32) {
    %c0_i32 = arith.constant 0 : i32
    %c0_i32_0 = arith.constant 0 : i32
    %c0_i32_1 = arith.constant 0 : i32
    return %c0_i32, %c0_i32_0 : i32, i32
  }
  func.func @transform_2(%arg0: i32) -> (i32, i32) {
    %c0_i32 = arith.constant 0 : i32
    %c0_i32_0 = arith.constant 0 : i32
    %c0_i32_1 = arith.constant 0 : i32
    return %c0_i32, %c0_i32_0 : i32, i32
  }
  func.func @transform_3(%arg0: i32) -> (i32, i32) {
    %c0_i32 = arith.constant 0 : i32
    %c0_i32_0 = arith.constant 0 : i32
    %c0_i32_1 = arith.constant 0 : i32
    return %c0_i32, %c0_i32_0 : i32, i32
  }
  func.func @transform_4(%arg0: i32) -> (i32, i32) {
    %c0_i32 = arith.constant 0 : i32
    %c0_i32_0 = arith.constant 0 : i32
    %c0_i32_1 = arith.constant 0 : i32
    return %c0_i32, %c0_i32_0 : i32, i32
  }
  func.func @transform_5(%arg0: i32) -> (i32, i32, i32) {
    %c0_i32 = arith.constant 0 : i32
    %c0_i32_0 = arith.constant 0 : i32
    %c0_i32_1 = arith.constant 0 : i32
    %c0_i32_2 = arith.constant 0 : i32
    return %c0_i32, %c0_i32_0, %c0_i32_1 : i32, i32, i32
  }
  func.func @transform_6(%arg0: i32) -> (i32, i32, i32) {
    %c0_i32 = arith.constant 0 : i32
    %c0_i32_0 = arith.constant 0 : i32
    %c0_i32_1 = arith.constant 0 : i32
    %c0_i32_2 = arith.constant 0 : i32
    return %c0_i32, %c0_i32_0, %c0_i32_1 : i32, i32, i32
  }
  func.func @transform_7(%arg0: i32) -> (i32, i32, i32, i32) {
    %c0_i32 = arith.constant 0 : i32
    %c0_i32_0 = arith.constant 0 : i32
    %c0_i32_1 = arith.constant 0 : i32
    %c0_i32_2 = arith.constant 0 : i32
    %c0_i32_3 = arith.constant 0 : i32
    return %c0_i32, %c0_i32_0, %c0_i32_1, %c0_i32_2 : i32, i32, i32, i32
  }
  func.func @transform_8(%arg0: i32) -> (i32, i32, i32, i32) {
    %c0_i32 = arith.constant 0 : i32
    %c0_i32_0 = arith.constant 0 : i32
    %c0_i32_1 = arith.constant 0 : i32
    %c0_i32_2 = arith.constant 0 : i32
    %c0_i32_3 = arith.constant 0 : i32
    return %c0_i32, %c0_i32_0, %c0_i32_1, %c0_i32_2 : i32, i32, i32, i32
  }
  func.func @transform_9(%arg0: i32) -> (i32, i32) {
    %c0_i32 = arith.constant 0 : i32
    %c0_i32_0 = arith.constant 0 : i32
    %c0_i32_1 = arith.constant 0 : i32
    return %c0_i32, %c0_i32_0 : i32, i32
  }
  func.func @transform_10(%arg0: i32) -> (i32, i32) {
    %c0_i32 = arith.constant 0 : i32
    %c0_i32_0 = arith.constant 0 : i32
    %c0_i32_1 = arith.constant 0 : i32
    return %c0_i32, %c0_i32_0 : i32, i32
  }
  func.func @transform_11(%arg0: i32) -> (i32, i32) {
    %c0_i32 = arith.constant 0 : i32
    %c0_i32_0 = arith.constant 0 : i32
    %c0_i32_1 = arith.constant 0 : i32
    return %c0_i32, %c0_i32_0 : i32, i32
  }
  func.func @transform_12(%arg0: i32) -> (i32, i32) {
    %c0_i32 = arith.constant 0 : i32
    %c0_i32_0 = arith.constant 0 : i32
    %c0_i32_1 = arith.constant 0 : i32
    return %c0_i32, %c0_i32_0 : i32, i32
  }
  func.func @transform_13(%arg0: i32) -> (i32, i32) {
    %c0_i32 = arith.constant 0 : i32
    %c0_i32_0 = arith.constant 0 : i32
    %c0_i32_1 = arith.constant 0 : i32
    return %c0_i32, %c0_i32_0 : i32, i32
  }
  func.func @transform_14(%arg0: i32) -> (i32, i32) {
    %c0_i32 = arith.constant 0 : i32
    %c0_i32_0 = arith.constant 0 : i32
    %c0_i32_1 = arith.constant 0 : i32
    return %c0_i32, %c0_i32_0 : i32, i32
  }
  func.func @transform_15(%arg0: i32) -> (i32, i32) {
    %c0_i32 = arith.constant 0 : i32
    %c0_i32_0 = arith.constant 0 : i32
    %c0_i32_1 = arith.constant 0 : i32
    return %c0_i32, %c0_i32_0 : i32, i32
  }
  func.func @transform_16(%arg0: i32) -> (i32, i32) {
    %c0_i32 = arith.constant 0 : i32
    %c0_i32_0 = arith.constant 0 : i32
    %c0_i32_1 = arith.constant 0 : i32
    return %c0_i32, %c0_i32_0 : i32, i32
  }
  func.func @transform_17(%arg0: i32) -> (i32, i32) {
    %c0_i32 = arith.constant 0 : i32
    %c0_i32_0 = arith.constant 0 : i32
    %c0_i32_1 = arith.constant 0 : i32
    return %c0_i32, %c0_i32_0 : i32, i32
  }
  func.func @transform_18(%arg0: i32) -> (i32, i32) {
    %c0_i32 = arith.constant 0 : i32
    %c0_i32_0 = arith.constant 0 : i32
    %c0_i32_1 = arith.constant 0 : i32
    return %c0_i32, %c0_i32_0 : i32, i32
  }
  func.func @transform_19(%arg0: i32) -> (i32, i32) {
    %c0_i32 = arith.constant 0 : i32
    %c0_i32_0 = arith.constant 0 : i32
    %c0_i32_1 = arith.constant 0 : i32
    return %c0_i32, %c0_i32_0 : i32, i32
  }
  func.func @transform_20(%arg0: i32) -> (i32, i32) {
    %c0_i32 = arith.constant 0 : i32
    %c0_i32_0 = arith.constant 0 : i32
    %c0_i32_1 = arith.constant 0 : i32
    return %c0_i32, %c0_i32_0 : i32, i32
  }
  func.func @transform_21(%arg0: i32) -> (i32, i32) {
    %c0_i32 = arith.constant 0 : i32
    %c0_i32_0 = arith.constant 0 : i32
    %c0_i32_1 = arith.constant 0 : i32
    return %c0_i32, %c0_i32_0 : i32, i32
  }
  func.func @transform_22(%arg0: i32) -> (i32, i32) {
    %c0_i32 = arith.constant 0 : i32
    %c0_i32_0 = arith.constant 0 : i32
    %c0_i32_1 = arith.constant 0 : i32
    return %c0_i32, %c0_i32_0 : i32, i32
  }
  func.func @transform_23(%arg0: i32) -> (i32, i32) {
    %c0_i32 = arith.constant 0 : i32
    %c0_i32_0 = arith.constant 0 : i32
    %c0_i32_1 = arith.constant 0 : i32
    return %c0_i32, %c0_i32_0 : i32, i32
  }
  func.func @transform_24(%arg0: i32) -> (i32, i32, i32) {
    %c0_i32 = arith.constant 0 : i32
    %c0_i32_0 = arith.constant 0 : i32
    %c0_i32_1 = arith.constant 0 : i32
    return %arg0, %c0_i32, %c0_i32_0 : i32, i32, i32
  }
}

</mosaic_0001>

<llo_original>
// kernel: tpu_custom_call.1
$region0: #{tpu_custom_call.1}
  #allocation0 [shape = 'u32[]', space=smem, size = 0x4, offset = 0x4, fixed_abs, tag = 'smem constant byte address 0x4 - core index']
  #allocation1 [shape = 'u32[72,128]{1,0:T(1,128)}', space=vmem, size = 0x9000, scoped, tag = 'internal scratch']
  %s0 = inlined_call_operand.vmem [shape: f32[2,16,1], index: 0, kind: input, shape index: {}]
  %s1 = inlined_call_operand.vmem [shape: f32[1,32], index: 1, kind: input, shape index: {}]
  %s2 = inlined_call_operand.vmem [shape: f32[1,32], index: 2, kind: input, shape index: {}]
  %s3 = inlined_call_operand.vmem [shape: f32[1,32], index: 3, kind: input, shape index: {}]
  %s4 = inlined_call_operand.vmem [shape: f32[1,32], index: 4, kind: input, shape index: {}]
  %s5 = inlined_call_operand.vmem [shape: bf16[3,32,192], index: 5, kind: input, shape index: {}]
  %s6 = inlined_call_operand.vmem [shape: bf16[3,64,32], index: 6, kind: input, shape index: {}]
  %s7 = inlined_call_operand.vmem [shape: f32[3,4,1,16], index: 7, kind: input, shape index: {}]
  %s8 = inlined_call_operand.vmem [shape: f32[3,4,1,16], index: 8, kind: input, shape index: {}]
  %s9 = inlined_call_operand.vmem [shape: f32[1,32], index: 9, kind: input, shape index: {}]
  %s10 = inlined_call_operand.vmem [shape: f32[1,32], index: 10, kind: input, shape index: {}]
  %s11 = inlined_call_operand.vmem [shape: f32[1,32], index: 11, kind: input, shape index: {}]
  %s12 = inlined_call_operand.vmem [shape: f32[1,32], index: 12, kind: input, shape index: {}]
  %s13 = inlined_call_operand.vmem [shape: bf16[32,64], index: 13, kind: input, shape index: {}]
  %s14 = inlined_call_operand.vmem [shape: bf16[32,32], index: 14, kind: input, shape index: {}]
  %s15 = inlined_call_operand.vmem [shape: bf16[64,32], index: 15, kind: input, shape index: {}]
  %s16 = inlined_call_operand.vmem [shape: bf16[32,256], index: 16, kind: input, shape index: {}]
  %s17 = inlined_call_operand.vmem [shape: bf16[128,32], index: 17, kind: input, shape index: {}]
  %s18 = inlined_call_operand.vmem [shape: f32[1,32], index: 18, kind: input, shape index: {}]
  %s19 = inlined_call_operand.vmem [shape: f32[1,32], index: 19, kind: input, shape index: {}]
  %s20 = inlined_call_operand.vmem [shape: bf16[32,32], index: 20, kind: input, shape index: {}]
  %s21 = inlined_call_operand.vmem [shape: f32[1,32], index: 21, kind: input, shape index: {}]
  %s22 = inlined_call_operand.vmem [shape: f32[1,32], index: 22, kind: input, shape index: {}]
  %s23 = inlined_call_operand.vmem [shape: f32[1,32], index: 23, kind: input, shape index: {}]
  %s24 = inlined_call_operand.hbm [shape: f32[2,16,32], index: 24, kind: output, shape index: {}]
  %s25 = sld [smem:[#allocation0]]
  $region129: #{tpu_custom_call.1} parent=0
    _
  %s27 = ssub.s32 1, %s25
  %s28 = scalar_select 0, %s27, %s25
  $region1: #{tpu_custom_call.1} parent=0
    #allocation2 [shape = 'u8[16384]{0}', space=vmem, size = 0x4000, scoped, tag = 'output window, operand 0']
    #allocation3 [shape = 's32[2]{0}', space=sflag, size = 0x8, scoped, tag = 'scoped memory for tpu_custom_call.1']
    %29 = vsyncpa [#allocation3], 0
    %s30 = scalar_lea.sflag [#allocation3], 1
    %31 = vsyncpa %s30, 0
    loop: start=0, step=1, limit=4
    $region2: #{tpu_custom_call.1} parent=1 // loop_pre_header
      _
    $region3: #{tpu_custom_call.1} parent=1 // loop_header
      %s33 = sphi 0, %s37
      %p34 = scmp.ge.s32.totalorder %s33, 4
      %s43 = sphi 0, %s45
      %s46 = sphi 0, %s43
      %s47 = sphi 0, %s46
      %s63 = sphi 0, %s47
      %s67 = sphi 0, %s67
      %s69 = sphi 0, %s67
      %s70 = sphi 0, %s69
      %s84 = sphi 0, %s70
      %s88 = sphi 0, %s88
      %s90 = sphi 0, %s88
      %s91 = sphi 0, %s90
      %s105 = sphi 0, %s91
      %s109 = sphi 0, %s109
      %s111 = sphi 0, %s109
      %s112 = sphi 0, %s111
      %s126 = sphi 0, %s112
      %s130 = sphi 0, %s130
      %s132 = sphi 0, %s130
      %s133 = sphi 0, %s132
      %s147 = sphi 0, %s133
      %s151 = sphi 0, %s151
      %s153 = sphi 0, %s151
      %s154 = sphi 0, %s153
      %s168 = sphi 0, %s154
      %s172 = sphi 0, %s172
      %s174 = sphi 0, %s172
      %s175 = sphi 0, %s174
      %s189 = sphi 0, %s175
      %s193 = sphi 0, %s193
      %s195 = sphi 0, %s193
      %s196 = sphi 0, %s195
      %s210 = sphi 0, %s196
      %s214 = sphi 0, %s214
      %s216 = sphi 0, %s214
      %s217 = sphi 0, %s216
      %s231 = sphi 0, %s217
      %s235 = sphi 0, %s235
      %s237 = sphi 0, %s235
      %s238 = sphi 0, %s237
      %s252 = sphi 0, %s238
      %s256 = sphi 0, %s256
      %s258 = sphi 0, %s256
      %s259 = sphi 0, %s258
      %s273 = sphi 0, %s259
      %s277 = sphi 0, %s277
      %s279 = sphi 0, %s277
      %s280 = sphi 0, %s279
      %s294 = sphi 0, %s280
      %s298 = sphi 0, %s298
      %s300 = sphi 0, %s298
      %s301 = sphi 0, %s300
      %s315 = sphi 0, %s301
      %s319 = sphi 0, %s319
      %s321 = sphi 0, %s319
      %s322 = sphi 0, %s321
      %s336 = sphi 0, %s322
      %s340 = sphi 0, %s340
      %s342 = sphi 0, %s340
      %s343 = sphi 0, %s342
      %s357 = sphi 0, %s343
      %s361 = sphi 0, %s361
      %s363 = sphi 0, %s361
      %s364 = sphi 0, %s363
      %s378 = sphi 0, %s364
      %s382 = sphi 0, %s382
      %s384 = sphi 0, %s382
      %s385 = sphi 0, %s384
      %s399 = sphi 0, %s385
      %s403 = sphi 0, %s403
      %s405 = sphi 0, %s403
      %s406 = sphi 0, %s405
      %s420 = sphi 0, %s406
      %s424 = sphi 0, %s424
      %s426 = sphi 0, %s424
      %s427 = sphi 0, %s426
      %s441 = sphi 0, %s427
      %s445 = sphi 0, %s445
      %s447 = sphi 0, %s445
      %s448 = sphi 0, %s447
      %s462 = sphi 0, %s448
      %s466 = sphi 0, %s466
      %s468 = sphi 0, %s466
      %s469 = sphi 0, %s468
      %s483 = sphi 0, %s469
      %s487 = sphi 0, %s487
      %s489 = sphi 0, %s487
      %s490 = sphi 0, %s489
      %s504 = sphi 0, %s490
      %s508 = sphi 0, %s508
      %s510 = sphi 0, %s508
      %s511 = sphi 0, %s510
      %s525 = sphi 0, %s511
      %s529 = sphi 0, %s529
      %s531 = sphi 0, %s529
      %s532 = sphi 0, %s531
      %s546 = sphi 0, %s532
      %s552 = sphi 0, %s554
      %s555 = sphi 0, %s552
      %s556 = sphi 0, %s555
      %s572 = sphi 0, %s556
    $region4: #{tpu_custom_call.1} parent=1 // loop_header_branch
      %36 = sbr.rel (%p34) target = $region8
    $region5: #{tpu_custom_call.1} parent=1 // loop_body
      %s38 = ssub.s32 %s33, 1
      %s39 = ssub.s32 %s33, 2
      %s40 = sadd.s32 %s33, 1
      %s41 = ssub.s32 %s33, %s40
      %p42 = scmp.eq.s32.totalorder %s41, 0
      %s44 = sadd.s32 %s43, 1
      %s45 = scalar_select %p42, %s43, %s44
      %p48 = pneg %p42
      %p49 = scmp.eq.s32.totalorder %s33, 1
      %p50 = por %p48, %p49
      %p51 = scmp.ne.s32.totalorder %s43, %s46
      %p52 = scmp.eq.s32.totalorder %s33, 0
      %p53 = por %p51, %p52
      %p54 = scmp.ne.s32.totalorder %s43, %s46
      %p55 = scmp.eq.s32.totalorder %s38, 1
      %p56 = por %p54, %p55
      %p57 = scmp.ne.s32.totalorder %s46, %s47
      %p58 = scmp.eq.s32.totalorder %s38, 0
      %p59 = por %p57, %p58
      %p60 = scmp.ne.s32.totalorder %s46, %s47
      %p61 = scmp.eq.s32.totalorder %s39, 1
      %p62 = por %p60, %p61
      %p64 = scmp.ne.s32.totalorder %s47, %s63
      %p65 = scmp.eq.s32.totalorder %s39, 0
      %p66 = por %p64, %p65
      %s68 = sadd.s32 %s67, 1
      %p71 = scmp.eq.s32.totalorder %s33, 1
      %p72 = scmp.ne.s32.totalorder %s67, %s69
      %p73 = scmp.eq.s32.totalorder %s33, 0
      %p74 = por %p72, %p73
      %p75 = scmp.ne.s32.totalorder %s67, %s69
      %p76 = scmp.eq.s32.totalorder %s38, 1
      %p77 = por %p75, %p76
      %p78 = scmp.ne.s32.totalorder %s69, %s70
      %p79 = scmp.eq.s32.totalorder %s38, 0
      %p80 = por %p78, %p79
      %p81 = scmp.ne.s32.totalorder %s69, %s70
      %p82 = scmp.eq.s32.totalorder %s39, 1
      %p83 = por %p81, %p82
      %p85 = scmp.ne.s32.totalorder %s70, %s84
      %p86 = scmp.eq.s32.totalorder %s39, 0
      %p87 = por %p85, %p86
      %s89 = sadd.s32 %s88, 1
      %p92 = scmp.eq.s32.totalorder %s33, 1
      %p93 = scmp.ne.s32.totalorder %s88, %s90
      %p94 = scmp.eq.s32.totalorder %s33, 0
      %p95 = por %p93, %p94
      %p96 = scmp.ne.s32.totalorder %s88, %s90
      %p97 = scmp.eq.s32.totalorder %s38, 1
      %p98 = por %p96, %p97
      %p99 = scmp.ne.s32.totalorder %s90, %s91
      %p100 = scmp.eq.s32.totalorder %s38, 0
      %p101 = por %p99, %p100
      %p102 = scmp.ne.s32.totalorder %s90, %s91
      %p103 = scmp.eq.s32.totalorder %s39, 1
      %p104 = por %p102, %p103
      %p106 = scmp.ne.s32.totalorder %s91, %s105
      %p107 = scmp.eq.s32.totalorder %s39, 0
      %p108 = por %p106, %p107
      %s110 = sadd.s32 %s109, 1
      %p113 = scmp.eq.s32.totalorder %s33, 1
      %p114 = scmp.ne.s32.totalorder %s109, %s111
      %p115 = scmp.eq.s32.totalorder %s33, 0
      %p116 = por %p114, %p115
      %p117 = scmp.ne.s32.totalorder %s109, %s111
      %p118 = scmp.eq.s32.totalorder %s38, 1
      %p119 = por %p117, %p118
      %p120 = scmp.ne.s32.totalorder %s111, %s112
      %p121 = scmp.eq.s32.totalorder %s38, 0
      %p122 = por %p120, %p121
      %p123 = scmp.ne.s32.totalorder %s111, %s112
      %p124 = scmp.eq.s32.totalorder %s39, 1
      %p125 = por %p123, %p124
      %p127 = scmp.ne.s32.totalorder %s112, %s126
      %p128 = scmp.eq.s32.totalorder %s39, 0
      %p129 = por %p127, %p128
      %s131 = sadd.s32 %s130, 1
      %p134 = scmp.eq.s32.totalorder %s33, 1
      %p135 = scmp.ne.s32.totalorder %s130, %s132
      %p136 = scmp.eq.s32.totalorder %s33, 0
      %p137 = por %p135, %p136
      %p138 = scmp.ne.s32.totalorder %s130, %s132
      %p139 = scmp.eq.s32.totalorder %s38, 1
      %p140 = por %p138, %p139
      %p141 = scmp.ne.s32.totalorder %s132, %s133
      %p142 = scmp.eq.s32.totalorder %s38, 0
      %p143 = por %p141, %p142
      %p144 = scmp.ne.s32.totalorder %s132, %s133
      %p145 = scmp.eq.s32.totalorder %s39, 1
      %p146 = por %p144, %p145
      %p148 = scmp.ne.s32.totalorder %s133, %s147
      %p149 = scmp.eq.s32.totalorder %s39, 0
      %p150 = por %p148, %p149
      %s152 = sadd.s32 %s151, 1
      %p155 = scmp.eq.s32.totalorder %s33, 1
      %p156 = scmp.ne.s32.totalorder %s151, %s153
      %p157 = scmp.eq.s32.totalorder %s33, 0
      %p158 = por %p156, %p157
      %p159 = scmp.ne.s32.totalorder %s151, %s153
      %p160 = scmp.eq.s32.totalorder %s38, 1
      %p161 = por %p159, %p160
      %p162 = scmp.ne.s32.totalorder %s153, %s154
      %p163 = scmp.eq.s32.totalorder %s38, 0
      %p164 = por %p162, %p163
      %p165 = scmp.ne.s32.totalorder %s153, %s154
      %p166 = scmp.eq.s32.totalorder %s39, 1
      %p167 = por %p165, %p166
      %p169 = scmp.ne.s32.totalorder %s154, %s168
      %p170 = scmp.eq.s32.totalorder %s39, 0
      %p171 = por %p169, %p170
      %s173 = sadd.s32 %s172, 1
      %p176 = scmp.eq.s32.totalorder %s33, 1
      %p177 = scmp.ne.s32.totalorder %s172, %s174
      %p178 = scmp.eq.s32.totalorder %s33, 0
      %p179 = por %p177, %p178
      %p180 = scmp.ne.s32.totalorder %s172, %s174
      %p181 = scmp.eq.s32.totalorder %s38, 1
      %p182 = por %p180, %p181
      %p183 = scmp.ne.s32.totalorder %s174, %s175
      %p184 = scmp.eq.s32.totalorder %s38, 0
      %p185 = por %p183, %p184
      %p186 = scmp.ne.s32.totalorder %s174, %s175
      %p187 = scmp.eq.s32.totalorder %s39, 1
      %p188 = por %p186, %p187
      %p190 = scmp.ne.s32.totalorder %s175, %s189
      %p191 = scmp.eq.s32.totalorder %s39, 0
      %p192 = por %p190, %p191
      %s194 = sadd.s32 %s193, 1
      %p197 = scmp.eq.s32.totalorder %s33, 1
      %p198 = scmp.ne.s32.totalorder %s193, %s195
      %p199 = scmp.eq.s32.totalorder %s33, 0
      %p200 = por %p198, %p199
      %p201 = scmp.ne.s32.totalorder %s193, %s195
      %p202 = scmp.eq.s32.totalorder %s38, 1
      %p203 = por %p201, %p202
      %p204 = scmp.ne.s32.totalorder %s195, %s196
      %p205 = scmp.eq.s32.totalorder %s38, 0
      %p206 = por %p204, %p205
      %p207 = scmp.ne.s32.totalorder %s195, %s196
      %p208 = scmp.eq.s32.totalorder %s39, 1
      %p209 = por %p207, %p208
      %p211 = scmp.ne.s32.totalorder %s196, %s210
      %p212 = scmp.eq.s32.totalorder %s39, 0
      %p213 = por %p211, %p212
      %s215 = sadd.s32 %s214, 1
      %p218 = scmp.eq.s32.totalorder %s33, 1
      %p219 = scmp.ne.s32.totalorder %s214, %s216
      %p220 = scmp.eq.s32.totalorder %s33, 0
      %p221 = por %p219, %p220
      %p222 = scmp.ne.s32.totalorder %s214, %s216
      %p223 = scmp.eq.s32.totalorder %s38, 1
      %p224 = por %p222, %p223
      %p225 = scmp.ne.s32.totalorder %s216, %s217
      %p226 = scmp.eq.s32.totalorder %s38, 0
      %p227 = por %p225, %p226
      %p228 = scmp.ne.s32.totalorder %s216, %s217
      %p229 = scmp.eq.s32.totalorder %s39, 1
      %p230 = por %p228, %p229
      %p232 = scmp.ne.s32.totalorder %s217, %s231
      %p233 = scmp.eq.s32.totalorder %s39, 0
      %p234 = por %p232, %p233
      %s236 = sadd.s32 %s235, 1
      %p239 = scmp.eq.s32.totalorder %s33, 1
      %p240 = scmp.ne.s32.totalorder %s235, %s237
      %p241 = scmp.eq.s32.totalorder %s33, 0
      %p242 = por %p240, %p241
      %p243 = scmp.ne.s32.totalorder %s235, %s237
      %p244 = scmp.eq.s32.totalorder %s38, 1
      %p245 = por %p243, %p244
      %p246 = scmp.ne.s32.totalorder %s237, %s238
      %p247 = scmp.eq.s32.totalorder %s38, 0
      %p248 = por %p246, %p247
      %p249 = scmp.ne.s32.totalorder %s237, %s238
      %p250 = scmp.eq.s32.totalorder %s39, 1
      %p251 = por %p249, %p250
      %p253 = scmp.ne.s32.totalorder %s238, %s252
      %p254 = scmp.eq.s32.totalorder %s39, 0
      %p255 = por %p253, %p254
      %s257 = sadd.s32 %s256, 1
      %p260 = scmp.eq.s32.totalorder %s33, 1
      %p261 = scmp.ne.s32.totalorder %s256, %s258
      %p262 = scmp.eq.s32.totalorder %s33, 0
      %p263 = por %p261, %p262
      %p264 = scmp.ne.s32.totalorder %s256, %s258
      %p265 = scmp.eq.s32.totalorder %s38, 1
      %p266 = por %p264, %p265
      %p267 = scmp.ne.s32.totalorder %s258, %s259
      %p268 = scmp.eq.s32.totalorder %s38, 0
      %p269 = por %p267, %p268
      %p270 = scmp.ne.s32.totalorder %s258, %s259
      %p271 = scmp.eq.s32.totalorder %s39, 1
      %p272 = por %p270, %p271
      %p274 = scmp.ne.s32.totalorder %s259, %s273
      %p275 = scmp.eq.s32.totalorder %s39, 0
      %p276 = por %p274, %p275
      %s278 = sadd.s32 %s277, 1
      %p281 = scmp.eq.s32.totalorder %s33, 1
      %p282 = scmp.ne.s32.totalorder %s277, %s279
      %p283 = scmp.eq.s32.totalorder %s33, 0
      %p284 = por %p282, %p283
      %p285 = scmp.ne.s32.totalorder %s277, %s279
      %p286 = scmp.eq.s32.totalorder %s38, 1
      %p287 = por %p285, %p286
      %p288 = scmp.ne.s32.totalorder %s279, %s280
      %p289 = scmp.eq.s32.totalorder %s38, 0
      %p290 = por %p288, %p289
      %p291 = scmp.ne.s32.totalorder %s279, %s280
      %p292 = scmp.eq.s32.totalorder %s39, 1
      %p293 = por %p291, %p292
      %p295 = scmp.ne.s32.totalorder %s280, %s294
      %p296 = scmp.eq.s32.totalorder %s39, 0
      %p297 = por %p295, %p296
      %s299 = sadd.s32 %s298, 1
      %p302 = scmp.eq.s32.totalorder %s33, 1
      %p303 = scmp.ne.s32.totalorder %s298, %s300
      %p304 = scmp.eq.s32.totalorder %s33, 0
      %p305 = por %p303, %p304
      %p306 = scmp.ne.s32.totalorder %s298, %s300
      %p307 = scmp.eq.s32.totalorder %s38, 1
      %p308 = por %p306, %p307
      %p309 = scmp.ne.s32.totalorder %s300, %s301
      %p310 = scmp.eq.s32.totalorder %s38, 0
      %p311 = por %p309, %p310
      %p312 = scmp.ne.s32.totalorder %s300, %s301
      %p313 = scmp.eq.s32.totalorder %s39, 1
      %p314 = por %p312, %p313
      %p316 = scmp.ne.s32.totalorder %s301, %s315
      %p317 = scmp.eq.s32.totalorder %s39, 0
      %p318 = por %p316, %p317
      %s320 = sadd.s32 %s319, 1
      %p323 = scmp.eq.s32.totalorder %s33, 1
      %p324 = scmp.ne.s32.totalorder %s319, %s321
      %p325 = scmp.eq.s32.totalorder %s33, 0
      %p326 = por %p324, %p325
      %p327 = scmp.ne.s32.totalorder %s319, %s321
      %p328 = scmp.eq.s32.totalorder %s38, 1
      %p329 = por %p327, %p328
      %p330 = scmp.ne.s32.totalorder %s321, %s322
      %p331 = scmp.eq.s32.totalorder %s38, 0
      %p332 = por %p330, %p331
      %p333 = scmp.ne.s32.totalorder %s321, %s322
      %p334 = scmp.eq.s32.totalorder %s39, 1
      %p335 = por %p333, %p334
      %p337 = scmp.ne.s32.totalorder %s322, %s336
      %p338 = scmp.eq.s32.totalorder %s39, 0
      %p339 = por %p337, %p338
      %s341 = sadd.s32 %s340, 1
      %p344 = scmp.eq.s32.totalorder %s33, 1
      %p345 = scmp.ne.s32.totalorder %s340, %s342
      %p346 = scmp.eq.s32.totalorder %s33, 0
      %p347 = por %p345, %p346
      %p348 = scmp.ne.s32.totalorder %s340, %s342
      %p349 = scmp.eq.s32.totalorder %s38, 1
      %p350 = por %p348, %p349
      %p351 = scmp.ne.s32.totalorder %s342, %s343
      %p352 = scmp.eq.s32.totalorder %s38, 0
      %p353 = por %p351, %p352
      %p354 = scmp.ne.s32.totalorder %s342, %s343
      %p355 = scmp.eq.s32.totalorder %s39, 1
      %p356 = por %p354, %p355
      %p358 = scmp.ne.s32.totalorder %s343, %s357
      %p359 = scmp.eq.s32.totalorder %s39, 0
      %p360 = por %p358, %p359
      %s362 = sadd.s32 %s361, 1
      %p365 = scmp.eq.s32.totalorder %s33, 1
      %p366 = scmp.ne.s32.totalorder %s361, %s363
      %p367 = scmp.eq.s32.totalorder %s33, 0
      %p368 = por %p366, %p367
      %p369 = scmp.ne.s32.totalorder %s361, %s363
      %p370 = scmp.eq.s32.totalorder %s38, 1
      %p371 = por %p369, %p370
      %p372 = scmp.ne.s32.totalorder %s363, %s364
      %p373 = scmp.eq.s32.totalorder %s38, 0
      %p374 = por %p372, %p373
      %p375 = scmp.ne.s32.totalorder %s363, %s364
      %p376 = scmp.eq.s32.totalorder %s39, 1
      %p377 = por %p375, %p376
      %p379 = scmp.ne.s32.totalorder %s364, %s378
      %p380 = scmp.eq.s32.totalorder %s39, 0
      %p381 = por %p379, %p380
      %s383 = sadd.s32 %s382, 1
      %p386 = scmp.eq.s32.totalorder %s33, 1
      %p387 = scmp.ne.s32.totalorder %s382, %s384
      %p388 = scmp.eq.s32.totalorder %s33, 0
      %p389 = por %p387, %p388
      %p390 = scmp.ne.s32.totalorder %s382, %s384
      %p391 = scmp.eq.s32.totalorder %s38, 1
      %p392 = por %p390, %p391
      %p393 = scmp.ne.s32.totalorder %s384, %s385
      %p394 = scmp.eq.s32.totalorder %s38, 0
      %p395 = por %p393, %p394
      %p396 = scmp.ne.s32.totalorder %s384, %s385
      %p397 = scmp.eq.s32.totalorder %s39, 1
      %p398 = por %p396, %p397
      %p400 = scmp.ne.s32.totalorder %s385, %s399
      %p401 = scmp.eq.s32.totalorder %s39, 0
      %p402 = por %p400, %p401
      %s404 = sadd.s32 %s403, 1
      %p407 = scmp.eq.s32.totalorder %s33, 1
      %p408 = scmp.ne.s32.totalorder %s403, %s405
      %p409 = scmp.eq.s32.totalorder %s33, 0
      %p410 = por %p408, %p409
      %p411 = scmp.ne.s32.totalorder %s403, %s405
      %p412 = scmp.eq.s32.totalorder %s38, 1
      %p413 = por %p411, %p412
      %p414 = scmp.ne.s32.totalorder %s405, %s406
      %p415 = scmp.eq.s32.totalorder %s38, 0
      %p416 = por %p414, %p415
      %p417 = scmp.ne.s32.totalorder %s405, %s406
      %p418 = scmp.eq.s32.totalorder %s39, 1
      %p419 = por %p417, %p418
      %p421 = scmp.ne.s32.totalorder %s406, %s420
      %p422 = scmp.eq.s32.totalorder %s39, 0
      %p423 = por %p421, %p422
      %s425 = sadd.s32 %s424, 1
      %p428 = scmp.eq.s32.totalorder %s33, 1
      %p429 = scmp.ne.s32.totalorder %s424, %s426
      %p430 = scmp.eq.s32.totalorder %s33, 0
      %p431 = por %p429, %p430
      %p432 = scmp.ne.s32.totalorder %s424, %s426
      %p433 = scmp.eq.s32.totalorder %s38, 1
      %p434 = por %p432, %p433
      %p435 = scmp.ne.s32.totalorder %s426, %s427
      %p436 = scmp.eq.s32.totalorder %s38, 0
      %p437 = por %p435, %p436
      %p438 = scmp.ne.s32.totalorder %s426, %s427
      %p439 = scmp.eq.s32.totalorder %s39, 1
      %p440 = por %p438, %p439
      %p442 = scmp.ne.s32.totalorder %s427, %s441
      %p443 = scmp.eq.s32.totalorder %s39, 0
      %p444 = por %p442, %p443
      %s446 = sadd.s32 %s445, 1
      %p449 = scmp.eq.s32.totalorder %s33, 1
      %p450 = scmp.ne.s32.totalorder %s445, %s447
      %p451 = scmp.eq.s32.totalorder %s33, 0
      %p452 = por %p450, %p451
      %p453 = scmp.ne.s32.totalorder %s445, %s447
      %p454 = scmp.eq.s32.totalorder %s38, 1
      %p455 = por %p453, %p454
      %p456 = scmp.ne.s32.totalorder %s447, %s448
      %p457 = scmp.eq.s32.totalorder %s38, 0
      %p458 = por %p456, %p457
      %p459 = scmp.ne.s32.totalorder %s447, %s448
      %p460 = scmp.eq.s32.totalorder %s39, 1
      %p461 = por %p459, %p460
      %p463 = scmp.ne.s32.totalorder %s448, %s462
      %p464 = scmp.eq.s32.totalorder %s39, 0
      %p465 = por %p463, %p464
      %s467 = sadd.s32 %s466, 1
      %p470 = scmp.eq.s32.totalorder %s33, 1
      %p471 = scmp.ne.s32.totalorder %s466, %s468
      %p472 = scmp.eq.s32.totalorder %s33, 0
      %p473 = por %p471, %p472
      %p474 = scmp.ne.s32.totalorder %s466, %s468
      %p475 = scmp.eq.s32.totalorder %s38, 1
      %p476 = por %p474, %p475
      %p477 = scmp.ne.s32.totalorder %s468, %s469
      %p478 = scmp.eq.s32.totalorder %s38, 0
      %p479 = por %p477, %p478
      %p480 = scmp.ne.s32.totalorder %s468, %s469
      %p481 = scmp.eq.s32.totalorder %s39, 1
      %p482 = por %p480, %p481
      %p484 = scmp.ne.s32.totalorder %s469, %s483
      %p485 = scmp.eq.s32.totalorder %s39, 0
      %p486 = por %p484, %p485
      %s488 = sadd.s32 %s487, 1
      %p491 = scmp.eq.s32.totalorder %s33, 1
      %p492 = scmp.ne.s32.totalorder %s487, %s489
      %p493 = scmp.eq.s32.totalorder %s33, 0
      %p494 = por %p492, %p493
      %p495 = scmp.ne.s32.totalorder %s487, %s489
      %p496 = scmp.eq.s32.totalorder %s38, 1
      %p497 = por %p495, %p496
      %p498 = scmp.ne.s32.totalorder %s489, %s490
      %p499 = scmp.eq.s32.totalorder %s38, 0
      %p500 = por %p498, %p499
      %p501 = scmp.ne.s32.totalorder %s489, %s490
      %p502 = scmp.eq.s32.totalorder %s39, 1
      %p503 = por %p501, %p502
      %p505 = scmp.ne.s32.totalorder %s490, %s504
      %p506 = scmp.eq.s32.totalorder %s39, 0
      %p507 = por %p505, %p506
      %s509 = sadd.s32 %s508, 1
      %p512 = scmp.eq.s32.totalorder %s33, 1
      %p513 = scmp.ne.s32.totalorder %s508, %s510
      %p514 = scmp.eq.s32.totalorder %s33, 0
      %p515 = por %p513, %p514
      %p516 = scmp.ne.s32.totalorder %s508, %s510
      %p517 = scmp.eq.s32.totalorder %s38, 1
      %p518 = por %p516, %p517
      %p519 = scmp.ne.s32.totalorder %s510, %s511
      %p520 = scmp.eq.s32.totalorder %s38, 0
      %p521 = por %p519, %p520
      %p522 = scmp.ne.s32.totalorder %s510, %s511
      %p523 = scmp.eq.s32.totalorder %s39, 1
      %p524 = por %p522, %p523
      %p526 = scmp.ne.s32.totalorder %s511, %s525
      %p527 = scmp.eq.s32.totalorder %s39, 0
      %p528 = por %p526, %p527
      %s530 = sadd.s32 %s529, 1
      %p533 = scmp.eq.s32.totalorder %s33, 1
      %p534 = scmp.ne.s32.totalorder %s529, %s531
      %p535 = scmp.eq.s32.totalorder %s33, 0
      %p536 = por %p534, %p535
      %p537 = scmp.ne.s32.totalorder %s529, %s531
      %p538 = scmp.eq.s32.totalorder %s38, 1
      %p539 = por %p537, %p538
      %p540 = scmp.ne.s32.totalorder %s531, %s532
      %p541 = scmp.eq.s32.totalorder %s38, 0
      %p542 = por %p540, %p541
      %p543 = scmp.ne.s32.totalorder %s531, %s532
      %p544 = scmp.eq.s32.totalorder %s39, 1
      %p545 = por %p543, %p544
      %p547 = scmp.ne.s32.totalorder %s532, %s546
      %p548 = scmp.eq.s32.totalorder %s39, 0
      %p549 = por %p547, %p548
      %s550 = ssub.s32 %s33, %s40
      %p551 = scmp.eq.s32.totalorder %s550, 0
      %s553 = sadd.s32 %s552, 1
      %s554 = scalar_select %p551, %s552, %s553
      %p557 = pneg %p551
      %p558 = scmp.eq.s32.totalorder %s33, 1
      %p559 = por %p557, %p558
      %p560 = scmp.ne.s32.totalorder %s552, %s555
      %p561 = scmp.eq.s32.totalorder %s33, 0
      %p562 = por %p560, %p561
      %p563 = scmp.ne.s32.totalorder %s552, %s555
      %p564 = scmp.eq.s32.totalorder %s38, 1
      %p565 = por %p563, %p564
      %p566 = scmp.ne.s32.totalorder %s555, %s556
      %p567 = scmp.eq.s32.totalorder %s38, 0
      %p568 = por %p566, %p567
      %p569 = scmp.ne.s32.totalorder %s555, %s556
      %p570 = scmp.eq.s32.totalorder %s39, 1
      %p571 = por %p569, %p570
      %p573 = scmp.ne.s32.totalorder %s556, %s572
      %p574 = scmp.eq.s32.totalorder %s39, 0
      %p575 = por %p573, %p574
      %p576 = scmp.le.s32.totalorder 1, %s33
      %p577 = scmp.lt.s32.totalorder %s33, 3
      %p578 = pnand %p576, %p577
      %p579 = pneg %p578
      // Predicated region
      $region9: #{tpu_custom_call.1} parent=5 // pred_check
        _
      $region10: #{tpu_custom_call.1} parent=5 // pred_check_branch
        %581 = sbr.rel (%p578) target = $region12
      $region11: #{tpu_custom_call.1} parent=5 // pred_region
        %s582 = ssub.s32 %s33, 1
        // Predicated region
        $region13: #{tpu_custom_call.1} parent=11 // pred_check
          %p583 = pneg %p80
        $region14: #{tpu_custom_call.1} parent=11 // pred_check_branch
          %585 = sbr.rel (%p583) target = $region16
        $region15: #{tpu_custom_call.1} parent=11 // pred_region
          _
        $region16: #{tpu_custom_call.1} parent=11 // pred_fallthru
          _
        // Predicated region
        $region17: #{tpu_custom_call.1} parent=11 // pred_check
          %p586 = pneg %p101
        $region18: #{tpu_custom_call.1} parent=11 // pred_check_branch
          %588 = sbr.rel (%p586) target = $region20
        $region19: #{tpu_custom_call.1} parent=11 // pred_region
          _
        $region20: #{tpu_custom_call.1} parent=11 // pred_fallthru
          _
        // Predicated region
        $region21: #{tpu_custom_call.1} parent=11 // pred_check
          %p589 = pneg %p122
        $region22: #{tpu_custom_call.1} parent=11 // pred_check_branch
          %591 = sbr.rel (%p589) target = $region24
        $region23: #{tpu_custom_call.1} parent=11 // pred_region
          _
        $region24: #{tpu_custom_call.1} parent=11 // pred_fallthru
          _
        // Predicated region
        $region25: #{tpu_custom_call.1} parent=11 // pred_check
          %p592 = pneg %p143
        $region26: #{tpu_custom_call.1} parent=11 // pred_check_branch
          %594 = sbr.rel (%p592) target = $region28
        $region27: #{tpu_custom_call.1} parent=11 // pred_region
          _
        $region28: #{tpu_custom_call.1} parent=11 // pred_fallthru
          _
        // Predicated region
        $region29: #{tpu_custom_call.1} parent=11 // pred_check
          %p595 = pneg %p164
        $region30: #{tpu_custom_call.1} parent=11 // pred_check_branch
          %597 = sbr.rel (%p595) target = $region32
        $region31: #{tpu_custom_call.1} parent=11 // pred_region
          _
        $region32: #{tpu_custom_call.1} parent=11 // pred_fallthru
          _
        // Predicated region
        $region33: #{tpu_custom_call.1} parent=11 // pred_check
          %p598 = pneg %p185
        $region34: #{tpu_custom_call.1} parent=11 // pred_check_branch
          %600 = sbr.rel (%p598) target = $region36
        $region35: #{tpu_custom_call.1} parent=11 // pred_region
          _
        $region36: #{tpu_custom_call.1} parent=11 // pred_fallthru
          _
        // Predicated region
        $region37: #{tpu_custom_call.1} parent=11 // pred_check
          %p601 = pneg %p206
        $region38: #{tpu_custom_call.1} parent=11 // pred_check_branch
          %603 = sbr.rel (%p601) target = $region40
        $region39: #{tpu_custom_call.1} parent=11 // pred_region
          _
        $region40: #{tpu_custom_call.1} parent=11 // pred_fallthru
          _
        // Predicated region
        $region41: #{tpu_custom_call.1} parent=11 // pred_check
          %p604 = pneg %p227
        $region42: #{tpu_custom_call.1} parent=11 // pred_check_branch
          %606 = sbr.rel (%p604) target = $region44
        $region43: #{tpu_custom_call.1} parent=11 // pred_region
          _
        $region44: #{tpu_custom_call.1} parent=11 // pred_fallthru
          _
        // Predicated region
        $region45: #{tpu_custom_call.1} parent=11 // pred_check
          %p607 = pneg %p248
        $region46: #{tpu_custom_call.1} parent=11 // pred_check_branch
          %609 = sbr.rel (%p607) target = $region48
        $region47: #{tpu_custom_call.1} parent=11 // pred_region
          _
        $region48: #{tpu_custom_call.1} parent=11 // pred_fallthru
          _
        // Predicated region
        $region49: #{tpu_custom_call.1} parent=11 // pred_check
          %p610 = pneg %p269
        $region50: #{tpu_custom_call.1} parent=11 // pred_check_branch
          %612 = sbr.rel (%p610) target = $region52
        $region51: #{tpu_custom_call.1} parent=11 // pred_region
          _
        $region52: #{tpu_custom_call.1} parent=11 // pred_fallthru
          _
        // Predicated region
        $region53: #{tpu_custom_call.1} parent=11 // pred_check
          %p613 = pneg %p290
        $region54: #{tpu_custom_call.1} parent=11 // pred_check_branch
          %615 = sbr.rel (%p613) target = $region56
        $region55: #{tpu_custom_call.1} parent=11 // pred_region
          _
        $region56: #{tpu_custom_call.1} parent=11 // pred_fallthru
          _
        // Predicated region
        $region57: #{tpu_custom_call.1} parent=11 // pred_check
          %p616 = pneg %p311
        $region58: #{tpu_custom_call.1} parent=11 // pred_check_branch
          %618 = sbr.rel (%p616) target = $region60
        $region59: #{tpu_custom_call.1} parent=11 // pred_region
          _
        $region60: #{tpu_custom_call.1} parent=11 // pred_fallthru
          _
        // Predicated region
        $region61: #{tpu_custom_call.1} parent=11 // pred_check
          %p619 = pneg %p332
        $region62: #{tpu_custom_call.1} parent=11 // pred_check_branch
          %621 = sbr.rel (%p619) target = $region64
        $region63: #{tpu_custom_call.1} parent=11 // pred_region
          _
        $region64: #{tpu_custom_call.1} parent=11 // pred_fallthru
          _
        // Predicated region
        $region65: #{tpu_custom_call.1} parent=11 // pred_check
          %p622 = pneg %p353
        $region66: #{tpu_custom_call.1} parent=11 // pred_check_branch
          %624 = sbr.rel (%p622) target = $region68
        $region67: #{tpu_custom_call.1} parent=11 // pred_region
          _
        $region68: #{tpu_custom_call.1} parent=11 // pred_fallthru
          _
        // Predicated region
        $region69: #{tpu_custom_call.1} parent=11 // pred_check
          %p625 = pneg %p374
        $region70: #{tpu_custom_call.1} parent=11 // pred_check_branch
          %627 = sbr.rel (%p625) target = $region72
        $region71: #{tpu_custom_call.1} parent=11 // pred_region
          _
        $region72: #{tpu_custom_call.1} parent=11 // pred_fallthru
          _
        // Predicated region
        $region73: #{tpu_custom_call.1} parent=11 // pred_check
          %p628 = pneg %p395
        $region74: #{tpu_custom_call.1} parent=11 // pred_check_branch
          %630 = sbr.rel (%p628) target = $region76
        $region75: #{tpu_custom_call.1} parent=11 // pred_region
          _
        $region76: #{tpu_custom_call.1} parent=11 // pred_fallthru
          _
        // Predicated region
        $region77: #{tpu_custom_call.1} parent=11 // pred_check
          %p631 = pneg %p416
        $region78: #{tpu_custom_call.1} parent=11 // pred_check_branch
          %633 = sbr.rel (%p631) target = $region80
        $region79: #{tpu_custom_call.1} parent=11 // pred_region
          _
        $region80: #{tpu_custom_call.1} parent=11 // pred_fallthru
          _
        // Predicated region
        $region81: #{tpu_custom_call.1} parent=11 // pred_check
          %p634 = pneg %p437
        $region82: #{tpu_custom_call.1} parent=11 // pred_check_branch
          %636 = sbr.rel (%p634) target = $region84
        $region83: #{tpu_custom_call.1} parent=11 // pred_region
          _
        $region84: #{tpu_custom_call.1} parent=11 // pred_fallthru
          _
        // Predicated region
        $region85: #{tpu_custom_call.1} parent=11 // pred_check
          %p637 = pneg %p458
        $region86: #{tpu_custom_call.1} parent=11 // pred_check_branch
          %639 = sbr.rel (%p637) target = $region88
        $region87: #{tpu_custom_call.1} parent=11 // pred_region
          _
        $region88: #{tpu_custom_call.1} parent=11 // pred_fallthru
          _
        // Predicated region
        $region89: #{tpu_custom_call.1} parent=11 // pred_check
          %p640 = pneg %p479
        $region90: #{tpu_custom_call.1} parent=11 // pred_check_branch
          %642 = sbr.rel (%p640) target = $region92
        $region91: #{tpu_custom_call.1} parent=11 // pred_region
          _
        $region92: #{tpu_custom_call.1} parent=11 // pred_fallthru
          _
        // Predicated region
        $region93: #{tpu_custom_call.1} parent=11 // pred_check
          %p643 = pneg %p500
        $region94: #{tpu_custom_call.1} parent=11 // pred_check_branch
          %645 = sbr.rel (%p643) target = $region96
        $region95: #{tpu_custom_call.1} parent=11 // pred_region
          _
        $region96: #{tpu_custom_call.1} parent=11 // pred_fallthru
          _
        // Predicated region
        $region97: #{tpu_custom_call.1} parent=11 // pred_check
          %p646 = pneg %p521
        $region98: #{tpu_custom_call.1} parent=11 // pred_check_branch
          %648 = sbr.rel (%p646) target = $region100
        $region99: #{tpu_custom_call.1} parent=11 // pred_region
          _
        $region100: #{tpu_custom_call.1} parent=11 // pred_fallthru
          _
        // Predicated region
        $region101: #{tpu_custom_call.1} parent=11 // pred_check
          %p649 = pneg %p542
        $region102: #{tpu_custom_call.1} parent=11 // pred_check_branch
          %651 = sbr.rel (%p649) target = $region104
        $region103: #{tpu_custom_call.1} parent=11 // pred_region
          _
        $region104: #{tpu_custom_call.1} parent=11 // pred_fallthru
          _
      $region12: #{tpu_custom_call.1} parent=5 // pred_fallthru
        _
      %p652 = scmp.lt.s32.totalorder %s33, 2
      // Predicated region
      $region105: #{tpu_custom_call.1} parent=5 // pred_check
        %p653 = pneg %p652
      $region106: #{tpu_custom_call.1} parent=5 // pred_check_branch
        %655 = sbr.rel (%p653) target = $region108
      $region107: #{tpu_custom_call.1} parent=5 // pred_region
        // Predicated region
        $region109: #{tpu_custom_call.1} parent=107 // pred_check
          %p656 = pneg %p53
        $region110: #{tpu_custom_call.1} parent=107 // pred_check_branch
          %658 = sbr.rel (%p656) target = $region112
        $region111: #{tpu_custom_call.1} parent=107 // pred_region
          %p659 = scmp.lt.s32.totalorder %s33, 1
          %s660 = scalar_select %p659, %s33, 1
          %s661 = smul.addr %s660, 2
          %s662 = smul.addr %s661, 8
          %s663 = scalar_lea.vmem %s0, %s662
        $region112: #{tpu_custom_call.1} parent=107 // pred_fallthru
          _
      $region108: #{tpu_custom_call.1} parent=5 // pred_fallthru
        _
      %p664 = scmp.le.s32.totalorder 1, %s33
      %p665 = scmp.lt.s32.totalorder %s33, 3
      %p666 = pnand %p664, %p665
      %p667 = pneg %p666
      // Predicated region
      $region113: #{tpu_custom_call.1} parent=5 // pred_check
        _
      $region114: #{tpu_custom_call.1} parent=5 // pred_check_branch
        %669 = sbr.rel (%p666) target = $region116
      $region115: #{tpu_custom_call.1} parent=5 // pred_region
        %s670 = ssub.s32 %s33, 1
        %p671 = scmp.lt.s32.totalorder %s38, 1
        %s672 = scalar_select %p671, %s38, 1
        %s673 = smul.addr %s672, 2
        %s674 = smul.addr %s673, 8
        %s675 = scalar_lea.vmem %s0, %s674
        %p676 = pneg %p59
        %p677 = pneg %p56
        %p678 = pneg %p80
        %p679 = pneg %p77
        %p680 = pneg %p101
        %p681 = pneg %p98
        %p682 = pneg %p122
        %p683 = pneg %p119
        %p684 = pneg %p143
        %p685 = pneg %p140
        %p686 = pneg %p164
        %p687 = pneg %p161
        %p688 = pneg %p185
        %p689 = pneg %p182
        %p690 = pneg %p206
        %p691 = pneg %p203
        %p692 = pneg %p227
        %p693 = pneg %p224
        %p694 = pneg %p248
        %p695 = pneg %p245
        %p696 = pneg %p269
        %p697 = pneg %p266
        %p698 = pneg %p290
        %p699 = pneg %p287
        %p700 = pneg %p311
        %p701 = pneg %p308
        %p702 = pneg %p332
        %p703 = pneg %p329
        %p704 = pneg %p353
        %p705 = pneg %p350
        %p706 = pneg %p374
        %p707 = pneg %p371
        %p708 = pneg %p395
        %p709 = pneg %p392
        %p710 = pneg %p416
        %p711 = pneg %p413
        %p712 = pneg %p437
        %p713 = pneg %p434
        %p714 = pneg %p458
        %p715 = pneg %p455
        %p716 = pneg %p479
        %p717 = pneg %p476
        %p718 = pneg %p500
        %p719 = pneg %p497
        %p720 = pneg %p521
        %p721 = pneg %p518
        %p722 = pneg %p542
        %p723 = pneg %p539
        %p724 = pneg %p568
        %p725 = pneg %p565
        %s726 = sand.u32 %s555, 1
        %s727 = scalar_lea.sflag [#allocation3], %s726
        %s728 = sand.u32 %s555, 1
        %s729 = smul.addr %s728, 16
        %s730 = scalar_lea.vmem [#allocation2], %s729
        %p731 = scmp.lt.s32.totalorder %s38, 1
        %s732 = scalar_select %p731, %s38, 1
        %s733 = smul.addr %s732, 2
        %s734 = smul.addr %s733, 8
        %s735 = scalar_lea.vmem %s0, %s734
        %v737 = vlaneseq
        %v738 = vshrl.u32 %v737, 7
        %v739 = vadd.s32 %v738, 8
        %v740 = vlaneseq
        %v741 = vand.u32 %v740, 127
        %vm742 = vcmp.le.s32.totalorder %v741, %v738
        %vm743 = vcmp.le.s32.totalorder %v741, %v739
        %v744 = vsel %vm742, 0.0, -1e+30
        %v745 = vsel %vm743, 0.0, -1e+30
        %v746 = vld [vmem:[%s735] sm:$0xff]
        %v747 = vld [vmem:[%s735 + $0x8] sm:$0xff]
        %v748 = vld [vmem:[%s1] sm:$0x1]
        %750 = vset.pattern.permute.xlu0 0
        %751 = vperm.xlu0 %750, %v746
        %v752 = vpop.permute.xlu0 %751
        %755 = vset.pattern.permute.xlu0 0
        %756 = vperm.xlu0 %755, %v747
        %v757 = vpop.permute.xlu0 %756
        %v760 = vperm.slane %v748, 0
        %v762 = vmul.f32 %v752, %v760
        %v763 = vmul.f32 %v757, %v760
        %v764 = vld [vmem:[%s2] sm:$0x1]
        %v766 = vperm.slane %v764, 0
        %v768 = vadd.f32 %v762, %v766
        %v769 = vadd.f32 %v763, %v766
        %v770 = vld [vmem:[%s3] sm:$0x1]
        %v771 = vld [vmem:[%s4] sm:$0x1]
        %vm772 = vcmask 261120
        %v773 = vsel %vm772, %v768, 0.0
        %774 = vadd.xlane.f32.xlu0 %v773
        %v775 = vpop.xlane.xlu0 %774
        %v776 = vsel %vm772, %v769, 0.0
        %777 = vadd.xlane.f32.xlu0 %v776
        %v778 = vpop.xlane.xlu0 %777
        %v779 = vrcp.pop 32.0
        %v780 = vmul.f32 32.0, %v779
        %v781 = vsub.f32 1.0, %v780
        %v782 = vmul.f32 %v779, %v781
        %v783 = vadd.f32 %v779, %v782
        %vm784 = vweird.f32 %v779
        %v785 = vsel %vm784, %v779, %v783
        %v786 = vmul.f32 %v775, %v785
        %v787 = vmul.f32 %v778, %v785
        %v788 = vsub.f32 %v768, %v786
        %v789 = vsub.f32 %v769, %v787
        %v790 = vmul.f32 %v788, %v788
        %v791 = vmul.f32 %v789, %v789
        %v792 = vsel %vm772, %v790, 0.0
        %793 = vadd.xlane.f32.xlu0 %v792
        %v794 = vpop.xlane.xlu0 %793
        %v795 = vsel %vm772, %v791, 0.0
        %796 = vadd.xlane.f32.xlu0 %v795
        %v797 = vpop.xlane.xlu0 %796
        %v798 = vmul.f32 %v794, %v785
        %v799 = vmul.f32 %v797, %v785
        %v800 = vadd.f32 %v798, 1e-05
        %v801 = vadd.f32 %v799, 1e-05
        %v802 = vrsqrt.pop %v800
        %v803 = vmul.f32 %v802, %v800
        %v804 = vmul.f32 %v803, %v802
        %v805 = vmul.f32 0.5, %v804
        %v806 = vsub.f32 1.5, %v805
        %v807 = vmul.f32 %v802, %v806
        %vm808 = vweird.f32 %v800
        %vm809 = vweird.f32 %v802
        %vm810 = vmor %vm808, %vm809
        %v811 = vsel %vm810, %v802, %v807
        %v812 = vrsqrt.pop %v801
        %v813 = vmul.f32 %v812, %v801
        %v814 = vmul.f32 %v813, %v812
        %v815 = vmul.f32 0.5, %v814
        %v816 = vsub.f32 1.5, %v815
        %v817 = vmul.f32 %v812, %v816
        %vm818 = vweird.f32 %v801
        %vm819 = vweird.f32 %v812
        %vm820 = vmor %vm818, %vm819
        %v821 = vsel %vm820, %v812, %v817
        %v822 = vmul.f32 %v788, %v811
        %v823 = vmul.f32 %v789, %v821
        %v825 = vperm.slane %v770, 0
        %v827 = vmul.f32 %v822, %v825
        %v828 = vmul.f32 %v823, %v825
        %v830 = vperm.slane %v771, 0
        %v832 = vadd.f32 %v827, %v830
        %v833 = vadd.f32 %v828, %v830
        %v834 = vpack.c.bf16 %v833, %v832
        %v835 = vld [vmem:[%s5] sm:$0xff]
        %v836 = vld [vmem:[%s5 + $0x8] sm:$0xff]
        %v837 = vld [vmem:[%s5 + $0x10] sm:$0xff]
        %v838 = vld [vmem:[%s5 + $0x18] sm:$0xff]
        %v843 = vunpack.c.l.b16 %v835
        %v844 = vunpack.c.h.b16 %v835
        %v845 = vunpack.c.l.b16 %v836
        %v846 = vunpack.c.h.b16 %v836
        %v847 = vunpack.c.l.b16 %v837
        %v848 = vunpack.c.h.b16 %v837
        %v849 = vunpack.c.l.b16 %v838
        %v850 = vunpack.c.h.b16 %v838
        %v851 = vpack.c.b16 %v845, %v843
        %v852 = vpack.c.b16 %v846, %v844
        %v853 = vpack.c.b16 %v849, %v847
        %v854 = vpack.c.b16 %v850, %v848
        %v860 = vsel %vm772, %v834, 0
        %862 = vmatpush.bf16.msra.mxu0 0
        %863 = vmatpush.bf16.msra.mxu0 0
        %864 = vmatpush.bf16.msra.mxu0 0
        %865 = vmatpush.bf16.msra.mxu0 0
        %866 = vmatpush.bf16.msra.mxu0 0
        %867 = vmatpush.bf16.msra.mxu0 0
        %868 = vmatpush.bf16.msra.mxu0 %v853
        %869 = vmatpush.bf16.msra.mxu0 %v851
        %870 = vmatmul.bf16.gmra.mxu0 %v860
        %v871 = vpop.f32.mrf.mxu0
        %v872 = vadd.f32 0.0, %v871
        %v873 = vpop.f32.mrf.mxu0
        %v874 = vadd.f32 0.0, %v873
        %875 = vdwg.mxu0
        %876 = vmatpush.bf16.msra.mxu0 0
        %877 = vmatpush.bf16.msra.mxu0 0
        %878 = vmatpush.bf16.msra.mxu0 0
        %879 = vmatpush.bf16.msra.mxu0 0
        %880 = vmatpush.bf16.msra.mxu0 0
        %881 = vmatpush.bf16.msra.mxu0 0
        %882 = vmatpush.bf16.msra.mxu0 %v854
        %883 = vmatpush.bf16.msra.mxu0 %v852
        %884 = vmatmul.bf16.gmra.mxu0 %v860
        %v885 = vpop.f32.mrf.mxu0
        %v886 = vadd.f32 0.0, %v885
        %v887 = vpop.f32.mrf.mxu0
        %v888 = vadd.f32 0.0, %v887
        %889 = vdwg.mxu0
        %892 = vrot.lane.b32.xlu0 %v872, 112
        %v893 = vpop.permute.xlu0 %892
        %894 = vrot.lane.b32.xlu0 %v874, 112
        %v895 = vpop.permute.xlu0 %894
        %898 = vrot.lane.b32.xlu0 %v872, 96
        %v899 = vpop.permute.xlu0 %898
        %900 = vrot.lane.b32.xlu0 %v874, 96
        %v901 = vpop.permute.xlu0 %900
        %904 = vrot.lane.b32.xlu0 %v872, 80
        %v905 = vpop.permute.xlu0 %904
        %906 = vrot.lane.b32.xlu0 %v874, 80
        %v907 = vpop.permute.xlu0 %906
        %912 = vrot.lane.b32.xlu0 %v886, 112
        %v913 = vpop.permute.xlu0 %912
        %914 = vrot.lane.b32.xlu0 %v888, 112
        %v915 = vpop.permute.xlu0 %914
        %918 = vrot.lane.b32.xlu0 %v886, 96
        %v919 = vpop.permute.xlu0 %918
        %920 = vrot.lane.b32.xlu0 %v888, 96
        %v921 = vpop.permute.xlu0 %920
        %924 = vrot.lane.b32.xlu0 %v886, 80
        %v925 = vpop.permute.xlu0 %924
        %926 = vrot.lane.b32.xlu0 %v888, 80
        %v927 = vpop.permute.xlu0 %926
        %v930 = vmul.f32 %v872, %v872
        %v931 = vmul.f32 %v874, %v874
        %v932 = vmul.f32 %v893, %v893
        %v933 = vmul.f32 %v895, %v895
        %v934 = vmul.f32 %v899, %v899
        %v935 = vmul.f32 %v901, %v901
        %v936 = vmul.f32 %v905, %v905
        %v937 = vmul.f32 %v907, %v907
        %vm938 = vcmask 130048
        %v939 = vsel %vm938, %v930, 0.0
        %940 = vadd.xlane.f32.xlu0 %v939
        %v941 = vpop.xlane.xlu0 %940
        %v942 = vsel %vm938, %v931, 0.0
        %943 = vadd.xlane.f32.xlu0 %v942
        %v944 = vpop.xlane.xlu0 %943
        %v945 = vsel %vm938, %v932, 0.0
        %946 = vadd.xlane.f32.xlu0 %v945
        %v947 = vpop.xlane.xlu0 %946
        %v948 = vsel %vm938, %v933, 0.0
        %949 = vadd.xlane.f32.xlu0 %v948
        %v950 = vpop.xlane.xlu0 %949
        %v951 = vsel %vm938, %v934, 0.0
        %952 = vadd.xlane.f32.xlu0 %v951
        %v953 = vpop.xlane.xlu0 %952
        %v954 = vsel %vm938, %v935, 0.0
        %955 = vadd.xlane.f32.xlu0 %v954
        %v956 = vpop.xlane.xlu0 %955
        %v957 = vsel %vm938, %v936, 0.0
        %958 = vadd.xlane.f32.xlu0 %v957
        %v959 = vpop.xlane.xlu0 %958
        %v960 = vsel %vm938, %v937, 0.0
        %961 = vadd.xlane.f32.xlu0 %v960
        %v962 = vpop.xlane.xlu0 %961
        %v963 = vadd.f32 %v941, 1e-08
        %v964 = vadd.f32 %v944, 1e-08
        %v965 = vadd.f32 %v947, 1e-08
        %v966 = vadd.f32 %v950, 1e-08
        %v967 = vadd.f32 %v953, 1e-08
        %v968 = vadd.f32 %v956, 1e-08
        %v969 = vadd.f32 %v959, 1e-08
        %v970 = vadd.f32 %v962, 1e-08
        %v971 = vrsqrt.pop %v963
        %v972 = vmul.f32 %v971, %v963
        %v973 = vmul.f32 %v972, %v971
        %v974 = vmul.f32 0.5, %v973
        %v975 = vsub.f32 1.5, %v974
        %v976 = vmul.f32 %v971, %v975
        %vm977 = vweird.f32 %v963
        %vm978 = vweird.f32 %v971
        %vm979 = vmor %vm977, %vm978
        %v980 = vsel %vm979, %v971, %v976
        %v981 = vrsqrt.pop %v964
        %v982 = vmul.f32 %v981, %v964
        %v983 = vmul.f32 %v982, %v981
        %v984 = vmul.f32 0.5, %v983
        %v985 = vsub.f32 1.5, %v984
        %v986 = vmul.f32 %v981, %v985
        %vm987 = vweird.f32 %v964
        %vm988 = vweird.f32 %v981
        %vm989 = vmor %vm987, %vm988
        %v990 = vsel %vm989, %v981, %v986
        %v991 = vrsqrt.pop %v965
        %v992 = vmul.f32 %v991, %v965
        %v993 = vmul.f32 %v992, %v991
        %v994 = vmul.f32 0.5, %v993
        %v995 = vsub.f32 1.5, %v994
        %v996 = vmul.f32 %v991, %v995
        %vm997 = vweird.f32 %v965
        %vm998 = vweird.f32 %v991
        %vm999 = vmor %vm997, %vm998
        %v1000 = vsel %vm999, %v991, %v996
        %v1001 = vrsqrt.pop %v966
        %v1002 = vmul.f32 %v1001, %v966
        %v1003 = vmul.f32 %v1002, %v1001
        %v1004 = vmul.f32 0.5, %v1003
        %v1005 = vsub.f32 1.5, %v1004
        %v1006 = vmul.f32 %v1001, %v1005
        %vm1007 = vweird.f32 %v966
        %vm1008 = vweird.f32 %v1001
        %vm1009 = vmor %vm1007, %vm1008
        %v1010 = vsel %vm1009, %v1001, %v1006
        %v1011 = vrsqrt.pop %v967
        %v1012 = vmul.f32 %v1011, %v967
        %v1013 = vmul.f32 %v1012, %v1011
        %v1014 = vmul.f32 0.5, %v1013
        %v1015 = vsub.f32 1.5, %v1014
        %v1016 = vmul.f32 %v1011, %v1015
        %vm1017 = vweird.f32 %v967
        %vm1018 = vweird.f32 %v1011
        %vm1019 = vmor %vm1017, %vm1018
        %v1020 = vsel %vm1019, %v1011, %v1016
        %v1021 = vrsqrt.pop %v968
        %v1022 = vmul.f32 %v1021, %v968
        %v1023 = vmul.f32 %v1022, %v1021
        %v1024 = vmul.f32 0.5, %v1023
        %v1025 = vsub.f32 1.5, %v1024
        %v1026 = vmul.f32 %v1021, %v1025
        %vm1027 = vweird.f32 %v968
        %vm1028 = vweird.f32 %v1021
        %vm1029 = vmor %vm1027, %vm1028
        %v1030 = vsel %vm1029, %v1021, %v1026
        %v1031 = vrsqrt.pop %v969
        %v1032 = vmul.f32 %v1031, %v969
        %v1033 = vmul.f32 %v1032, %v1031
        %v1034 = vmul.f32 0.5, %v1033
        %v1035 = vsub.f32 1.5, %v1034
        %v1036 = vmul.f32 %v1031, %v1035
        %vm1037 = vweird.f32 %v969
        %vm1038 = vweird.f32 %v1031
        %vm1039 = vmor %vm1037, %vm1038
        %v1040 = vsel %vm1039, %v1031, %v1036
        %v1041 = vrsqrt.pop %v970
        %v1042 = vmul.f32 %v1041, %v970
        %v1043 = vmul.f32 %v1042, %v1041
        %v1044 = vmul.f32 0.5, %v1043
        %v1045 = vsub.f32 1.5, %v1044
        %v1046 = vmul.f32 %v1041, %v1045
        %vm1047 = vweird.f32 %v970
        %vm1048 = vweird.f32 %v1041
        %vm1049 = vmor %vm1047, %vm1048
        %v1050 = vsel %vm1049, %v1041, %v1046
        %v1051 = vmul.f32 %v872, %v980
        %v1052 = vmul.f32 %v874, %v990
        %v1053 = vmul.f32 %v893, %v1000
        %v1054 = vmul.f32 %v895, %v1010
        %v1055 = vmul.f32 %v899, %v1020
        %v1056 = vmul.f32 %v901, %v1030
        %v1057 = vmul.f32 %v905, %v1040
        %v1058 = vmul.f32 %v907, %v1050
        %v1059 = vld [vmem:[%s7] sm:$0x1]
        %v1060 = vld [vmem:[%s7 + $0x1] sm:$0x1]
        %v1061 = vld [vmem:[%s7 + $0x2] sm:$0x1]
        %v1062 = vld [vmem:[%s7 + $0x3] sm:$0x1]
        %v1067 = vperm.slane %v1059, 0
        %v1068 = vperm.slane %v1060, 0
        %v1069 = vperm.slane %v1061, 0
        %v1070 = vperm.slane %v1062, 0
        %v1075 = vmul.f32 %v1051, %v1067
        %v1076 = vmul.f32 %v1052, %v1067
        %v1077 = vmul.f32 %v1053, %v1068
        %v1078 = vmul.f32 %v1054, %v1068
        %v1079 = vmul.f32 %v1055, %v1069
        %v1080 = vmul.f32 %v1056, %v1069
        %v1081 = vmul.f32 %v1057, %v1070
        %v1082 = vmul.f32 %v1058, %v1070
        %1091 = vrot.lane.b32.xlu0 %v930, 64
        %v1092 = vpop.permute.xlu0 %1091
        %1093 = vrot.lane.b32.xlu0 %v931, 64
        %v1094 = vpop.permute.xlu0 %1093
        %1095 = vrot.lane.b32.xlu0 %v932, 64
        %v1096 = vpop.permute.xlu0 %1095
        %1097 = vrot.lane.b32.xlu0 %v933, 64
        %v1098 = vpop.permute.xlu0 %1097
        %1099 = vrot.lane.b32.xlu0 %v934, 64
        %v1100 = vpop.permute.xlu0 %1099
        %1101 = vrot.lane.b32.xlu0 %v935, 64
        %v1102 = vpop.permute.xlu0 %1101
        %1103 = vrot.lane.b32.xlu0 %v936, 64
        %v1104 = vpop.permute.xlu0 %1103
        %1105 = vrot.lane.b32.xlu0 %v937, 64
        %v1106 = vpop.permute.xlu0 %1105
        %v1115 = vsel %vm938, %v1092, 0.0
        %1116 = vadd.xlane.f32.xlu0 %v1115
        %v1117 = vpop.xlane.xlu0 %1116
        %v1118 = vsel %vm938, %v1094, 0.0
        %1119 = vadd.xlane.f32.xlu0 %v1118
        %v1120 = vpop.xlane.xlu0 %1119
        %v1121 = vsel %vm938, %v1096, 0.0
        %1122 = vadd.xlane.f32.xlu0 %v1121
        %v1123 = vpop.xlane.xlu0 %1122
        %v1124 = vsel %vm938, %v1098, 0.0
        %1125 = vadd.xlane.f32.xlu0 %v1124
        %v1126 = vpop.xlane.xlu0 %1125
        %v1127 = vsel %vm938, %v1100, 0.0
        %1128 = vadd.xlane.f32.xlu0 %v1127
        %v1129 = vpop.xlane.xlu0 %1128
        %v1130 = vsel %vm938, %v1102, 0.0
        %1131 = vadd.xlane.f32.xlu0 %v1130
        %v1132 = vpop.xlane.xlu0 %1131
        %v1133 = vsel %vm938, %v1104, 0.0
        %1134 = vadd.xlane.f32.xlu0 %v1133
        %v1135 = vpop.xlane.xlu0 %1134
        %v1136 = vsel %vm938, %v1106, 0.0
        %1137 = vadd.xlane.f32.xlu0 %v1136
        %v1138 = vpop.xlane.xlu0 %1137
        %v1139 = vadd.f32 %v1117, 1e-08
        %v1140 = vadd.f32 %v1120, 1e-08
        %v1141 = vadd.f32 %v1123, 1e-08
        %v1142 = vadd.f32 %v1126, 1e-08
        %v1143 = vadd.f32 %v1129, 1e-08
        %v1144 = vadd.f32 %v1132, 1e-08
        %v1145 = vadd.f32 %v1135, 1e-08
        %v1146 = vadd.f32 %v1138, 1e-08
        %v1147 = vrsqrt.pop %v1139
        %v1148 = vmul.f32 %v1147, %v1139
        %v1149 = vmul.f32 %v1148, %v1147
        %v1150 = vmul.f32 0.5, %v1149
        %v1151 = vsub.f32 1.5, %v1150
        %v1152 = vmul.f32 %v1147, %v1151
        %vm1153 = vweird.f32 %v1139
        %vm1154 = vweird.f32 %v1147
        %vm1155 = vmor %vm1153, %vm1154
        %v1156 = vsel %vm1155, %v1147, %v1152
        %v1157 = vrsqrt.pop %v1140
        %v1158 = vmul.f32 %v1157, %v1140
        %v1159 = vmul.f32 %v1158, %v1157
        %v1160 = vmul.f32 0.5, %v1159
        %v1161 = vsub.f32 1.5, %v1160
        %v1162 = vmul.f32 %v1157, %v1161
        %vm1163 = vweird.f32 %v1140
        %vm1164 = vweird.f32 %v1157
        %vm1165 = vmor %vm1163, %vm1164
        %v1166 = vsel %vm1165, %v1157, %v1162
        %v1167 = vrsqrt.pop %v1141
        %v1168 = vmul.f32 %v1167, %v1141
        %v1169 = vmul.f32 %v1168, %v1167
        %v1170 = vmul.f32 0.5, %v1169
        %v1171 = vsub.f32 1.5, %v1170
        %v1172 = vmul.f32 %v1167, %v1171
        %vm1173 = vweird.f32 %v1141
        %vm1174 = vweird.f32 %v1167
        %vm1175 = vmor %vm1173, %vm1174
        %v1176 = vsel %vm1175, %v1167, %v1172
        %v1177 = vrsqrt.pop %v1142
        %v1178 = vmul.f32 %v1177, %v1142
        %v1179 = vmul.f32 %v1178, %v1177
        %v1180 = vmul.f32 0.5, %v1179
        %v1181 = vsub.f32 1.5, %v1180
        %v1182 = vmul.f32 %v1177, %v1181
        %vm1183 = vweird.f32 %v1142
        %vm1184 = vweird.f32 %v1177
        %vm1185 = vmor %vm1183, %vm1184
        %v1186 = vsel %vm1185, %v1177, %v1182
        %v1187 = vrsqrt.pop %v1143
        %v1188 = vmul.f32 %v1187, %v1143
        %v1189 = vmul.f32 %v1188, %v1187
        %v1190 = vmul.f32 0.5, %v1189
        %v1191 = vsub.f32 1.5, %v1190
        %v1192 = vmul.f32 %v1187, %v1191
        %vm1193 = vweird.f32 %v1143
        %vm1194 = vweird.f32 %v1187
        %vm1195 = vmor %vm1193, %vm1194
        %v1196 = vsel %vm1195, %v1187, %v1192
        %v1197 = vrsqrt.pop %v1144
        %v1198 = vmul.f32 %v1197, %v1144
        %v1199 = vmul.f32 %v1198, %v1197
        %v1200 = vmul.f32 0.5, %v1199
        %v1201 = vsub.f32 1.5, %v1200
        %v1202 = vmul.f32 %v1197, %v1201
        %vm1203 = vweird.f32 %v1144
        %vm1204 = vweird.f32 %v1197
        %vm1205 = vmor %vm1203, %vm1204
        %v1206 = vsel %vm1205, %v1197, %v1202
        %v1207 = vrsqrt.pop %v1145
        %v1208 = vmul.f32 %v1207, %v1145
        %v1209 = vmul.f32 %v1208, %v1207
        %v1210 = vmul.f32 0.5, %v1209
        %v1211 = vsub.f32 1.5, %v1210
        %v1212 = vmul.f32 %v1207, %v1211
        %vm1213 = vweird.f32 %v1145
        %vm1214 = vweird.f32 %v1207
        %vm1215 = vmor %vm1213, %vm1214
        %v1216 = vsel %vm1215, %v1207, %v1212
        %v1217 = vrsqrt.pop %v1146
        %v1218 = vmul.f32 %v1217, %v1146
        %v1219 = vmul.f32 %v1218, %v1217
        %v1220 = vmul.f32 0.5, %v1219
        %v1221 = vsub.f32 1.5, %v1220
        %v1222 = vmul.f32 %v1217, %v1221
        %vm1223 = vweird.f32 %v1146
        %vm1224 = vweird.f32 %v1217
        %vm1225 = vmor %vm1223, %vm1224
        %v1226 = vsel %vm1225, %v1217, %v1222
        %v1227 = vmul.f32 %v872, %v1156
        %v1228 = vmul.f32 %v874, %v1166
        %v1229 = vmul.f32 %v893, %v1176
        %v1230 = vmul.f32 %v895, %v1186
        %v1231 = vmul.f32 %v899, %v1196
        %v1232 = vmul.f32 %v901, %v1206
        %v1233 = vmul.f32 %v905, %v1216
        %v1234 = vmul.f32 %v907, %v1226
        %v1235 = vld [vmem:[%s8] sm:$0x1]
        %v1236 = vld [vmem:[%s8 + $0x1] sm:$0x1]
        %v1237 = vld [vmem:[%s8 + $0x2] sm:$0x1]
        %v1238 = vld [vmem:[%s8 + $0x3] sm:$0x1]
        %v1243 = vperm.slane %v1235, 0
        %v1244 = vperm.slane %v1236, 0
        %v1245 = vperm.slane %v1237, 0
        %v1246 = vperm.slane %v1238, 0
        %1247 = vrot.lane.b32.xlu0 %v1243, 64
        %v1248 = vpop.permute.xlu0 %1247
        %1249 = vrot.lane.b32.xlu0 %v1244, 64
        %v1250 = vpop.permute.xlu0 %1249
        %1251 = vrot.lane.b32.xlu0 %v1245, 64
        %v1252 = vpop.permute.xlu0 %1251
        %1253 = vrot.lane.b32.xlu0 %v1246, 64
        %v1254 = vpop.permute.xlu0 %1253
        %v1259 = vmul.f32 %v1227, %v1248
        %v1260 = vmul.f32 %v1228, %v1248
        %v1261 = vmul.f32 %v1229, %v1250
        %v1262 = vmul.f32 %v1230, %v1250
        %v1263 = vmul.f32 %v1231, %v1252
        %v1264 = vmul.f32 %v1232, %v1252
        %v1265 = vmul.f32 %v1233, %v1254
        %v1266 = vmul.f32 %v1234, %v1254
        %v1267 = vpack.c.bf16 %v1075, %v1075
        %v1268 = vpack.c.bf16 %v1076, %v1076
        %v1269 = vpack.c.bf16 %v1077, %v1077
        %v1270 = vpack.c.bf16 %v1078, %v1078
        %v1271 = vpack.c.bf16 %v1079, %v1079
        %v1272 = vpack.c.bf16 %v1080, %v1080
        %v1273 = vpack.c.bf16 %v1081, %v1081
        %v1274 = vpack.c.bf16 %v1082, %v1082
        %v1275 = vpack.c.bf16 %v1259, %v1259
        %v1276 = vpack.c.bf16 %v1260, %v1260
        %v1277 = vpack.c.bf16 %v1261, %v1261
        %v1278 = vpack.c.bf16 %v1262, %v1262
        %v1279 = vpack.c.bf16 %v1263, %v1263
        %v1280 = vpack.c.bf16 %v1264, %v1264
        %v1281 = vpack.c.bf16 %v1265, %v1265
        %v1282 = vpack.c.bf16 %v1266, %v1266
        %v1285 = vunpack.c.l.b16 %v1267
        %v1286 = vunpack.c.l.b16 %v1268
        %v1287 = vpack.c.b16 %v1286, %v1285
        %v1290 = vunpack.c.l.b16 %v1275
        %v1291 = vunpack.c.l.b16 %v1276
        %v1292 = vpack.c.b16 %v1291, %v1290
        %1293 = vrot.lane.b32.xlu0 %v1292, 64
        %v1294 = vpop.permute.xlu0 %1293
        %v1296 = vsel %vm938, %v1287, 0
        %v1299 = vsel %vm938, %v1294, 0
        %1301 = vmatpush.bf16.xpose.msra.mxu0 0
        %1302 = vmatpush.bf16.xpose.msra.mxu0 0
        %1303 = vmatpush.bf16.xpose.msra.mxu0 0
        %1304 = vmatpush.bf16.xpose.msra.mxu0 0
        %1305 = vmatpush.bf16.xpose.msra.mxu0 0
        %1306 = vmatpush.bf16.xpose.msra.mxu0 0
        %1307 = vmatpush.bf16.xpose.msra.mxu0 0
        %1308 = vmatpush.bf16.xpose.msra.mxu0 %v1299
        %1309 = vmatmul.bf16.gmra.mxu0 %v1296
        %v1310 = vpop.f32.mrf.mxu0
        %v1311 = vadd.f32 0.0, %v1310
        %v1312 = vpop.f32.mrf.mxu0
        %v1313 = vadd.f32 0.0, %v1312
        %1314 = vdwg.mxu0
        %v1317 = vunpack.c.l.b16 %v1269
        %v1318 = vunpack.c.l.b16 %v1270
        %v1319 = vpack.c.b16 %v1318, %v1317
        %v1322 = vunpack.c.l.b16 %v1277
        %v1323 = vunpack.c.l.b16 %v1278
        %v1324 = vpack.c.b16 %v1323, %v1322
        %1325 = vrot.lane.b32.xlu0 %v1324, 64
        %v1326 = vpop.permute.xlu0 %1325
        %v1328 = vsel %vm938, %v1319, 0
        %v1331 = vsel %vm938, %v1326, 0
        %1333 = vmatpush.bf16.xpose.msra.mxu0 0
        %1334 = vmatpush.bf16.xpose.msra.mxu0 0
        %1335 = vmatpush.bf16.xpose.msra.mxu0 0
        %1336 = vmatpush.bf16.xpose.msra.mxu0 0
        %1337 = vmatpush.bf16.xpose.msra.mxu0 0
        %1338 = vmatpush.bf16.xpose.msra.mxu0 0
        %1339 = vmatpush.bf16.xpose.msra.mxu0 0
        %1340 = vmatpush.bf16.xpose.msra.mxu0 %v1331
        %1341 = vmatmul.bf16.gmra.mxu0 %v1328
        %v1342 = vpop.f32.mrf.mxu0
        %v1343 = vadd.f32 0.0, %v1342
        %v1344 = vpop.f32.mrf.mxu0
        %v1345 = vadd.f32 0.0, %v1344
        %1346 = vdwg.mxu0
        %v1349 = vunpack.c.l.b16 %v1271
        %v1350 = vunpack.c.l.b16 %v1272
        %v1351 = vpack.c.b16 %v1350, %v1349
        %v1354 = vunpack.c.l.b16 %v1279
        %v1355 = vunpack.c.l.b16 %v1280
        %v1356 = vpack.c.b16 %v1355, %v1354
        %1357 = vrot.lane.b32.xlu0 %v1356, 64
        %v1358 = vpop.permute.xlu0 %1357
        %v1360 = vsel %vm938, %v1351, 0
        %v1363 = vsel %vm938, %v1358, 0
        %1365 = vmatpush.bf16.xpose.msra.mxu0 0
        %1366 = vmatpush.bf16.xpose.msra.mxu0 0
        %1367 = vmatpush.bf16.xpose.msra.mxu0 0
        %1368 = vmatpush.bf16.xpose.msra.mxu0 0
        %1369 = vmatpush.bf16.xpose.msra.mxu0 0
        %1370 = vmatpush.bf16.xpose.msra.mxu0 0
        %1371 = vmatpush.bf16.xpose.msra.mxu0 0
        %1372 = vmatpush.bf16.xpose.msra.mxu0 %v1363
        %1373 = vmatmul.bf16.gmra.mxu0 %v1360
        %v1374 = vpop.f32.mrf.mxu0
        %v1375 = vadd.f32 0.0, %v1374
        %v1376 = vpop.f32.mrf.mxu0
        %v1377 = vadd.f32 0.0, %v1376
        %1378 = vdwg.mxu0
        %v1381 = vunpack.c.l.b16 %v1273
        %v1382 = vunpack.c.l.b16 %v1274
        %v1383 = vpack.c.b16 %v1382, %v1381
        %v1386 = vunpack.c.l.b16 %v1281
        %v1387 = vunpack.c.l.b16 %v1282
        %v1388 = vpack.c.b16 %v1387, %v1386
        %1389 = vrot.lane.b32.xlu0 %v1388, 64
        %v1390 = vpop.permute.xlu0 %1389
        %v1392 = vsel %vm938, %v1383, 0
        %v1395 = vsel %vm938, %v1390, 0
        %1397 = vmatpush.bf16.xpose.msra.mxu0 0
        %1398 = vmatpush.bf16.xpose.msra.mxu0 0
        %1399 = vmatpush.bf16.xpose.msra.mxu0 0
        %1400 = vmatpush.bf16.xpose.msra.mxu0 0
        %1401 = vmatpush.bf16.xpose.msra.mxu0 0
        %1402 = vmatpush.bf16.xpose.msra.mxu0 0
        %1403 = vmatpush.bf16.xpose.msra.mxu0 0
        %1404 = vmatpush.bf16.xpose.msra.mxu0 %v1395
        %1405 = vmatmul.bf16.gmra.mxu0 %v1392
        %v1406 = vpop.f32.mrf.mxu0
        %v1407 = vadd.f32 0.0, %v1406
        %v1408 = vpop.f32.mrf.mxu0
        %v1409 = vadd.f32 0.0, %v1408
        %1410 = vdwg.mxu0
        %v1411 = vmul.f32 %v1311, 0.25
        %v1412 = vmul.f32 %v1313, 0.25
        %v1413 = vmul.f32 %v1343, 0.25
        %v1414 = vmul.f32 %v1345, 0.25
        %v1415 = vmul.f32 %v1375, 0.25
        %v1416 = vmul.f32 %v1377, 0.25
        %v1417 = vmul.f32 %v1407, 0.25
        %v1418 = vmul.f32 %v1409, 0.25
        %v1419 = vadd.f32 %v1411, %v744
        %v1420 = vadd.f32 %v1412, %v745
        %v1421 = vadd.f32 %v1413, %v744
        %v1422 = vadd.f32 %v1414, %v745
        %v1423 = vadd.f32 %v1415, %v744
        %v1424 = vadd.f32 %v1416, %v745
        %v1425 = vadd.f32 %v1417, %v744
        %v1426 = vadd.f32 %v1418, %v745
        %v1427 = vsel %vm938, %v1419, -inf
        %1428 = vmax.xlane.f32.xlu0 %v1427
        %v1429 = vpop.xlane.xlu0 %1428
        %v1430 = vsel %vm938, %v1420, -inf
        %1431 = vmax.xlane.f32.xlu0 %v1430
        %v1432 = vpop.xlane.xlu0 %1431
        %v1433 = vsel %vm938, %v1421, -inf
        %1434 = vmax.xlane.f32.xlu0 %v1433
        %v1435 = vpop.xlane.xlu0 %1434
        %v1436 = vsel %vm938, %v1422, -inf
        %1437 = vmax.xlane.f32.xlu0 %v1436
        %v1438 = vpop.xlane.xlu0 %1437
        %v1439 = vsel %vm938, %v1423, -inf
        %1440 = vmax.xlane.f32.xlu0 %v1439
        %v1441 = vpop.xlane.xlu0 %1440
        %v1442 = vsel %vm938, %v1424, -inf
        %1443 = vmax.xlane.f32.xlu0 %v1442
        %v1444 = vpop.xlane.xlu0 %1443
        %v1445 = vsel %vm938, %v1425, -inf
        %1446 = vmax.xlane.f32.xlu0 %v1445
        %v1447 = vpop.xlane.xlu0 %1446
        %v1448 = vsel %vm938, %v1426, -inf
        %1449 = vmax.xlane.f32.xlu0 %v1448
        %v1450 = vpop.xlane.xlu0 %1449
        %v1451 = vsub.f32 %v1419, %v1429
        %v1452 = vsub.f32 %v1420, %v1432
        %v1453 = vsub.f32 %v1421, %v1435
        %v1454 = vsub.f32 %v1422, %v1438
        %v1455 = vsub.f32 %v1423, %v1441
        %v1456 = vsub.f32 %v1424, %v1444
        %v1457 = vsub.f32 %v1425, %v1447
        %v1458 = vsub.f32 %v1426, %v1450
        %v1459 = vmul.f32 %v1451, 1.442695
        %v1460 = vpow.pop %v1459
        %v1461 = vmul.f32 %v1452, 1.442695
        %v1462 = vpow.pop %v1461
        %v1463 = vmul.f32 %v1453, 1.442695
        %v1464 = vpow.pop %v1463
        %v1465 = vmul.f32 %v1454, 1.442695
        %v1466 = vpow.pop %v1465
        %v1467 = vmul.f32 %v1455, 1.442695
        %v1468 = vpow.pop %v1467
        %v1469 = vmul.f32 %v1456, 1.442695
        %v1470 = vpow.pop %v1469
        %v1471 = vmul.f32 %v1457, 1.442695
        %v1472 = vpow.pop %v1471
        %v1473 = vmul.f32 %v1458, 1.442695
        %v1474 = vpow.pop %v1473
        %v1475 = vsel %vm938, %v1460, 0.0
        %1476 = vadd.xlane.f32.xlu0 %v1475
        %v1477 = vpop.xlane.xlu0 %1476
        %v1478 = vsel %vm938, %v1462, 0.0
        %1479 = vadd.xlane.f32.xlu0 %v1478
        %v1480 = vpop.xlane.xlu0 %1479
        %v1481 = vsel %vm938, %v1464, 0.0
        %1482 = vadd.xlane.f32.xlu0 %v1481
        %v1483 = vpop.xlane.xlu0 %1482
        %v1484 = vsel %vm938, %v1466, 0.0
        %1485 = vadd.xlane.f32.xlu0 %v1484
        %v1486 = vpop.xlane.xlu0 %1485
        %v1487 = vsel %vm938, %v1468, 0.0
        %1488 = vadd.xlane.f32.xlu0 %v1487
        %v1489 = vpop.xlane.xlu0 %1488
        %v1490 = vsel %vm938, %v1470, 0.0
        %1491 = vadd.xlane.f32.xlu0 %v1490
        %v1492 = vpop.xlane.xlu0 %1491
        %v1493 = vsel %vm938, %v1472, 0.0
        %1494 = vadd.xlane.f32.xlu0 %v1493
        %v1495 = vpop.xlane.xlu0 %1494
        %v1496 = vsel %vm938, %v1474, 0.0
        %1497 = vadd.xlane.f32.xlu0 %v1496
        %v1498 = vpop.xlane.xlu0 %1497
        %v1499 = vrcp.pop %v1477
        %v1500 = vrcp.pop %v1480
        %v1501 = vrcp.pop %v1483
        %v1502 = vrcp.pop %v1486
        %v1503 = vrcp.pop %v1489
        %v1504 = vrcp.pop %v1492
        %v1505 = vrcp.pop %v1495
        %v1506 = vrcp.pop %v1498
        %v1507 = vmul.f32 %v1460, %v1499
        %v1508 = vmul.f32 %v1462, %v1500
        %v1509 = vmul.f32 %v1464, %v1501
        %v1510 = vmul.f32 %v1466, %v1502
        %v1511 = vmul.f32 %v1468, %v1503
        %v1512 = vmul.f32 %v1470, %v1504
        %v1513 = vmul.f32 %v1472, %v1505
        %v1514 = vmul.f32 %v1474, %v1506
        %v1515 = vpack.c.bf16 %v1507, %v1507
        %v1516 = vpack.c.bf16 %v1508, %v1508
        %v1517 = vpack.c.bf16 %v1509, %v1509
        %v1518 = vpack.c.bf16 %v1510, %v1510
        %v1519 = vpack.c.bf16 %v1511, %v1511
        %v1520 = vpack.c.bf16 %v1512, %v1512
        %v1521 = vpack.c.bf16 %v1513, %v1513
        %v1522 = vpack.c.bf16 %v1514, %v1514
        %v1523 = vpack.c.bf16 %v886, %v886
        %v1524 = vpack.c.bf16 %v888, %v888
        %v1525 = vpack.c.bf16 %v913, %v913
        %v1526 = vpack.c.bf16 %v915, %v915
        %v1527 = vpack.c.bf16 %v919, %v919
        %v1528 = vpack.c.bf16 %v921, %v921
        %v1529 = vpack.c.bf16 %v925, %v925
        %v1530 = vpack.c.bf16 %v927, %v927
        %v1533 = vunpack.c.l.b16 %v1515
        %v1534 = vunpack.c.l.b16 %v1516
        %v1535 = vpack.c.b16 %v1534, %v1533
        %v1538 = vunpack.c.l.b16 %v1523
        %v1539 = vunpack.c.l.b16 %v1524
        %v1540 = vpack.c.b16 %v1539, %v1538
        %v1543 = vsel %vm938, %v1535, 0
        %1545 = vmatpush.bf16.msra.mxu0 0
        %1546 = vmatpush.bf16.msra.mxu0 0
        %1547 = vmatpush.bf16.msra.mxu0 0
        %1548 = vmatpush.bf16.msra.mxu0 0
        %1549 = vmatpush.bf16.msra.mxu0 0
        %1550 = vmatpush.bf16.msra.mxu0 0
        %1551 = vmatpush.bf16.msra.mxu0 0
        %1552 = vmatpush.bf16.msra.mxu0 %v1540
        %1553 = vmatmul.bf16.gmra.mxu0 %v1543
        %v1554 = vpop.f32.mrf.mxu0
        %v1555 = vadd.f32 0.0, %v1554
        %v1556 = vpop.f32.mrf.mxu0
        %v1557 = vadd.f32 0.0, %v1556
        %1558 = vdwg.mxu0
        %v1561 = vunpack.c.l.b16 %v1517
        %v1562 = vunpack.c.l.b16 %v1518
        %v1563 = vpack.c.b16 %v1562, %v1561
        %v1566 = vunpack.c.l.b16 %v1525
        %v1567 = vunpack.c.l.b16 %v1526
        %v1568 = vpack.c.b16 %v1567, %v1566
        %v1571 = vsel %vm938, %v1563, 0
        %1573 = vmatpush.bf16.msra.mxu0 0
        %1574 = vmatpush.bf16.msra.mxu0 0
        %1575 = vmatpush.bf16.msra.mxu0 0
        %1576 = vmatpush.bf16.msra.mxu0 0
        %1577 = vmatpush.bf16.msra.mxu0 0
        %1578 = vmatpush.bf16.msra.mxu0 0
        %1579 = vmatpush.bf16.msra.mxu0 0
        %1580 = vmatpush.bf16.msra.mxu0 %v1568
        %1581 = vmatmul.bf16.gmra.mxu0 %v1571
        %v1582 = vpop.f32.mrf.mxu0
        %v1583 = vadd.f32 0.0, %v1582
        %v1584 = vpop.f32.mrf.mxu0
        %v1585 = vadd.f32 0.0, %v1584
        %1586 = vdwg.mxu0
        %v1589 = vunpack.c.l.b16 %v1519
        %v1590 = vunpack.c.l.b16 %v1520
        %v1591 = vpack.c.b16 %v1590, %v1589
        %v1594 = vunpack.c.l.b16 %v1527
        %v1595 = vunpack.c.l.b16 %v1528
        %v1596 = vpack.c.b16 %v1595, %v1594
        %v1599 = vsel %vm938, %v1591, 0
        %1601 = vmatpush.bf16.msra.mxu0 0
        %1602 = vmatpush.bf16.msra.mxu0 0
        %1603 = vmatpush.bf16.msra.mxu0 0
        %1604 = vmatpush.bf16.msra.mxu0 0
        %1605 = vmatpush.bf16.msra.mxu0 0
        %1606 = vmatpush.bf16.msra.mxu0 0
        %1607 = vmatpush.bf16.msra.mxu0 0
        %1608 = vmatpush.bf16.msra.mxu0 %v1596
        %1609 = vmatmul.bf16.gmra.mxu0 %v1599
        %v1610 = vpop.f32.mrf.mxu0
        %v1611 = vadd.f32 0.0, %v1610
        %v1612 = vpop.f32.mrf.mxu0
        %v1613 = vadd.f32 0.0, %v1612
        %1614 = vdwg.mxu0
        %v1617 = vunpack.c.l.b16 %v1521
        %v1618 = vunpack.c.l.b16 %v1522
        %v1619 = vpack.c.b16 %v1618, %v1617
        %v1622 = vunpack.c.l.b16 %v1529
        %v1623 = vunpack.c.l.b16 %v1530
        %v1624 = vpack.c.b16 %v1623, %v1622
        %v1627 = vsel %vm938, %v1619, 0
        %1629 = vmatpush.bf16.msra.mxu0 0
        %1630 = vmatpush.bf16.msra.mxu0 0
        %1631 = vmatpush.bf16.msra.mxu0 0
        %1632 = vmatpush.bf16.msra.mxu0 0
        %1633 = vmatpush.bf16.msra.mxu0 0
        %1634 = vmatpush.bf16.msra.mxu0 0
        %1635 = vmatpush.bf16.msra.mxu0 0
        %1636 = vmatpush.bf16.msra.mxu0 %v1624
        %1637 = vmatmul.bf16.gmra.mxu0 %v1627
        %v1638 = vpop.f32.mrf.mxu0
        %v1639 = vadd.f32 0.0, %v1638
        %v1640 = vpop.f32.mrf.mxu0
        %v1641 = vadd.f32 0.0, %v1640
        %1642 = vdwg.mxu0
        %1645 = vrot.lane.b32.xlu0 %v1583, 16
        %v1646 = vpop.permute.xlu0 %1645
        %1647 = vrot.lane.b32.xlu0 %v1585, 16
        %v1648 = vpop.permute.xlu0 %1647
        %1653 = vrot.lane.b32.xlu0 %v1611, 32
        %v1654 = vpop.permute.xlu0 %1653
        %1655 = vrot.lane.b32.xlu0 %v1613, 32
        %v1656 = vpop.permute.xlu0 %1655
        %1661 = vrot.lane.b32.xlu0 %v1639, 48
        %v1662 = vpop.permute.xlu0 %1661
        %1663 = vrot.lane.b32.xlu0 %v1641, 48
        %v1664 = vpop.permute.xlu0 %1663
        %v1667 = vsel %vm938, %v1555, %v1646
        %v1668 = vsel %vm938, %v1557, %v1648
        %v1669 = vsel %vm772, %v1667, %v1654
        %v1670 = vsel %vm772, %v1668, %v1656
        %vm1671 = vcmask 392192
        %v1672 = vsel %vm1671, %v1669, %v1662
        %v1673 = vsel %vm1671, %v1670, %v1664
        %v1674 = vpack.c.bf16 %v1673, %v1672
        %v1675 = vld [vmem:[%s6] sm:$0xf]
        %v1676 = vld [vmem:[%s6 + $0x4] sm:$0xf]
        %v1677 = vld [vmem:[%s6 + $0x8] sm:$0xf]
        %v1678 = vld [vmem:[%s6 + $0xc] sm:$0xf]
        %v1679 = vld [vmem:[%s6 + $0x10] sm:$0xf]
        %v1680 = vld [vmem:[%s6 + $0x14] sm:$0xf]
        %v1681 = vld [vmem:[%s6 + $0x18] sm:$0xf]
        %v1682 = vld [vmem:[%s6 + $0x1c] sm:$0xf]
        %v1691 = vunpack.c.l.b16 %v1675
        %v1692 = vunpack.c.l.b16 %v1676
        %v1693 = vunpack.c.l.b16 %v1677
        %v1694 = vunpack.c.l.b16 %v1678
        %v1695 = vunpack.c.l.b16 %v1679
        %v1696 = vunpack.c.l.b16 %v1680
        %v1697 = vunpack.c.l.b16 %v1681
        %v1698 = vunpack.c.l.b16 %v1682
        %v1699 = vpack.c.b16 %v1692, %v1691
        %v1700 = vpack.c.b16 %v1694, %v1693
        %v1701 = vpack.c.b16 %v1696, %v1695
        %v1702 = vpack.c.b16 %v1698, %v1697
        %vm1707 = vcmask 523264
        %v1709 = vsel %vm1707, %v1674, 0
        %1711 = vmatpush.bf16.msra.mxu0 0
        %1712 = vmatpush.bf16.msra.mxu0 0
        %1713 = vmatpush.bf16.msra.mxu0 0
        %1714 = vmatpush.bf16.msra.mxu0 0
        %1715 = vmatpush.bf16.msra.mxu0 %v1702
        %1716 = vmatpush.bf16.msra.mxu0 %v1701
        %1717 = vmatpush.bf16.msra.mxu0 %v1700
        %1718 = vmatpush.bf16.msra.mxu0 %v1699
        %1719 = vmatmul.bf16.gmra.mxu0 %v1709
        %v1720 = vpop.f32.mrf.mxu0
        %v1721 = vadd.f32 0.0, %v1720
        %v1722 = vpop.f32.mrf.mxu0
        %v1723 = vadd.f32 0.0, %v1722
        %1724 = vdwg.mxu0
        %v1725 = vpack.c.bf16 %v1723, %v1721
        %s1726 = scalar_lea.vmem %s5, 32
        %v1727 = vld [vmem:[%s1726] sm:$0xff]
        %v1728 = vld [vmem:[%s1726 + $0x8] sm:$0xff]
        %v1729 = vld [vmem:[%s1726 + $0x10] sm:$0xff]
        %v1730 = vld [vmem:[%s1726 + $0x18] sm:$0xff]
        %v1735 = vunpack.c.l.b16 %v1727
        %v1736 = vunpack.c.h.b16 %v1727
        %v1737 = vunpack.c.l.b16 %v1728
        %v1738 = vunpack.c.h.b16 %v1728
        %v1739 = vunpack.c.l.b16 %v1729
        %v1740 = vunpack.c.h.b16 %v1729
        %v1741 = vunpack.c.l.b16 %v1730
        %v1742 = vunpack.c.h.b16 %v1730
        %v1743 = vpack.c.b16 %v1737, %v1735
        %v1744 = vpack.c.b16 %v1738, %v1736
        %v1745 = vpack.c.b16 %v1741, %v1739
        %v1746 = vpack.c.b16 %v1742, %v1740
        %v1752 = vsel %vm772, %v1725, 0
        %1754 = vmatpush.bf16.msra.mxu0 0
        %1755 = vmatpush.bf16.msra.mxu0 0
        %1756 = vmatpush.bf16.msra.mxu0 0
        %1757 = vmatpush.bf16.msra.mxu0 0
        %1758 = vmatpush.bf16.msra.mxu0 0
        %1759 = vmatpush.bf16.msra.mxu0 0
        %1760 = vmatpush.bf16.msra.mxu0 %v1745
        %1761 = vmatpush.bf16.msra.mxu0 %v1743
        %1762 = vmatmul.bf16.gmra.mxu0 %v1752
        %v1763 = vpop.f32.mrf.mxu0
        %v1764 = vadd.f32 0.0, %v1763
        %v1765 = vpop.f32.mrf.mxu0
        %v1766 = vadd.f32 0.0, %v1765
        %1767 = vdwg.mxu0
        %1768 = vmatpush.bf16.msra.mxu0 0
        %1769 = vmatpush.bf16.msra.mxu0 0
        %1770 = vmatpush.bf16.msra.mxu0 0
        %1771 = vmatpush.bf16.msra.mxu0 0
        %1772 = vmatpush.bf16.msra.mxu0 0
        %1773 = vmatpush.bf16.msra.mxu0 0
        %1774 = vmatpush.bf16.msra.mxu0 %v1746
        %1775 = vmatpush.bf16.msra.mxu0 %v1744
        %1776 = vmatmul.bf16.gmra.mxu0 %v1752
        %v1777 = vpop.f32.mrf.mxu0
        %v1778 = vadd.f32 0.0, %v1777
        %v1779 = vpop.f32.mrf.mxu0
        %v1780 = vadd.f32 0.0, %v1779
        %1781 = vdwg.mxu0
        %1784 = vrot.lane.b32.xlu0 %v1764, 112
        %v1785 = vpop.permute.xlu0 %1784
        %1786 = vrot.lane.b32.xlu0 %v1766, 112
        %v1787 = vpop.permute.xlu0 %1786
        %1790 = vrot.lane.b32.xlu0 %v1764, 96
        %v1791 = vpop.permute.xlu0 %1790
        %1792 = vrot.lane.b32.xlu0 %v1766, 96
        %v1793 = vpop.permute.xlu0 %1792
        %1796 = vrot.lane.b32.xlu0 %v1764, 80
        %v1797 = vpop.permute.xlu0 %1796
        %1798 = vrot.lane.b32.xlu0 %v1766, 80
        %v1799 = vpop.permute.xlu0 %1798
        %1804 = vrot.lane.b32.xlu0 %v1778, 112
        %v1805 = vpop.permute.xlu0 %1804
        %1806 = vrot.lane.b32.xlu0 %v1780, 112
        %v1807 = vpop.permute.xlu0 %1806
        %1810 = vrot.lane.b32.xlu0 %v1778, 96
        %v1811 = vpop.permute.xlu0 %1810
        %1812 = vrot.lane.b32.xlu0 %v1780, 96
        %v1813 = vpop.permute.xlu0 %1812
        %1816 = vrot.lane.b32.xlu0 %v1778, 80
        %v1817 = vpop.permute.xlu0 %1816
        %1818 = vrot.lane.b32.xlu0 %v1780, 80
        %v1819 = vpop.permute.xlu0 %1818
        %v1822 = vmul.f32 %v1764, %v1764
        %v1823 = vmul.f32 %v1766, %v1766
        %v1824 = vmul.f32 %v1785, %v1785
        %v1825 = vmul.f32 %v1787, %v1787
        %v1826 = vmul.f32 %v1791, %v1791
        %v1827 = vmul.f32 %v1793, %v1793
        %v1828 = vmul.f32 %v1797, %v1797
        %v1829 = vmul.f32 %v1799, %v1799
        %v1830 = vsel %vm938, %v1822, 0.0
        %1831 = vadd.xlane.f32.xlu0 %v1830
        %v1832 = vpop.xlane.xlu0 %1831
        %v1833 = vsel %vm938, %v1823, 0.0
        %1834 = vadd.xlane.f32.xlu0 %v1833
        %v1835 = vpop.xlane.xlu0 %1834
        %v1836 = vsel %vm938, %v1824, 0.0
        %1837 = vadd.xlane.f32.xlu0 %v1836
        %v1838 = vpop.xlane.xlu0 %1837
        %v1839 = vsel %vm938, %v1825, 0.0
        %1840 = vadd.xlane.f32.xlu0 %v1839
        %v1841 = vpop.xlane.xlu0 %1840
        %v1842 = vsel %vm938, %v1826, 0.0
        %1843 = vadd.xlane.f32.xlu0 %v1842
        %v1844 = vpop.xlane.xlu0 %1843
        %v1845 = vsel %vm938, %v1827, 0.0
        %1846 = vadd.xlane.f32.xlu0 %v1845
        %v1847 = vpop.xlane.xlu0 %1846
        %v1848 = vsel %vm938, %v1828, 0.0
        %1849 = vadd.xlane.f32.xlu0 %v1848
        %v1850 = vpop.xlane.xlu0 %1849
        %v1851 = vsel %vm938, %v1829, 0.0
        %1852 = vadd.xlane.f32.xlu0 %v1851
        %v1853 = vpop.xlane.xlu0 %1852
        %v1854 = vadd.f32 %v1832, 1e-08
        %v1855 = vadd.f32 %v1835, 1e-08
        %v1856 = vadd.f32 %v1838, 1e-08
        %v1857 = vadd.f32 %v1841, 1e-08
        %v1858 = vadd.f32 %v1844, 1e-08
        %v1859 = vadd.f32 %v1847, 1e-08
        %v1860 = vadd.f32 %v1850, 1e-08
        %v1861 = vadd.f32 %v1853, 1e-08
        %v1862 = vrsqrt.pop %v1854
        %v1863 = vmul.f32 %v1862, %v1854
        %v1864 = vmul.f32 %v1863, %v1862
        %v1865 = vmul.f32 0.5, %v1864
        %v1866 = vsub.f32 1.5, %v1865
        %v1867 = vmul.f32 %v1862, %v1866
        %vm1868 = vweird.f32 %v1854
        %vm1869 = vweird.f32 %v1862
        %vm1870 = vmor %vm1868, %vm1869
        %v1871 = vsel %vm1870, %v1862, %v1867
        %v1872 = vrsqrt.pop %v1855
        %v1873 = vmul.f32 %v1872, %v1855
        %v1874 = vmul.f32 %v1873, %v1872
        %v1875 = vmul.f32 0.5, %v1874
        %v1876 = vsub.f32 1.5, %v1875
        %v1877 = vmul.f32 %v1872, %v1876
        %vm1878 = vweird.f32 %v1855
        %vm1879 = vweird.f32 %v1872
        %vm1880 = vmor %vm1878, %vm1879
        %v1881 = vsel %vm1880, %v1872, %v1877
        %v1882 = vrsqrt.pop %v1856
        %v1883 = vmul.f32 %v1882, %v1856
        %v1884 = vmul.f32 %v1883, %v1882
        %v1885 = vmul.f32 0.5, %v1884
        %v1886 = vsub.f32 1.5, %v1885
        %v1887 = vmul.f32 %v1882, %v1886
        %vm1888 = vweird.f32 %v1856
        %vm1889 = vweird.f32 %v1882
        %vm1890 = vmor %vm1888, %vm1889
        %v1891 = vsel %vm1890, %v1882, %v1887
        %v1892 = vrsqrt.pop %v1857
        %v1893 = vmul.f32 %v1892, %v1857
        %v1894 = vmul.f32 %v1893, %v1892
        %v1895 = vmul.f32 0.5, %v1894
        %v1896 = vsub.f32 1.5, %v1895
        %v1897 = vmul.f32 %v1892, %v1896
        %vm1898 = vweird.f32 %v1857
        %vm1899 = vweird.f32 %v1892
        %vm1900 = vmor %vm1898, %vm1899
        %v1901 = vsel %vm1900, %v1892, %v1897
        %v1902 = vrsqrt.pop %v1858
        %v1903 = vmul.f32 %v1902, %v1858
        %v1904 = vmul.f32 %v1903, %v1902
        %v1905 = vmul.f32 0.5, %v1904
        %v1906 = vsub.f32 1.5, %v1905
        %v1907 = vmul.f32 %v1902, %v1906
        %vm1908 = vweird.f32 %v1858
        %vm1909 = vweird.f32 %v1902
        %vm1910 = vmor %vm1908, %vm1909
        %v1911 = vsel %vm1910, %v1902, %v1907
        %v1912 = vrsqrt.pop %v1859
        %v1913 = vmul.f32 %v1912, %v1859
        %v1914 = vmul.f32 %v1913, %v1912
        %v1915 = vmul.f32 0.5, %v1914
        %v1916 = vsub.f32 1.5, %v1915
        %v1917 = vmul.f32 %v1912, %v1916
        %vm1918 = vweird.f32 %v1859
        %vm1919 = vweird.f32 %v1912
        %vm1920 = vmor %vm1918, %vm1919
        %v1921 = vsel %vm1920, %v1912, %v1917
        %v1922 = vrsqrt.pop %v1860
        %v1923 = vmul.f32 %v1922, %v1860
        %v1924 = vmul.f32 %v1923, %v1922
        %v1925 = vmul.f32 0.5, %v1924
        %v1926 = vsub.f32 1.5, %v1925
        %v1927 = vmul.f32 %v1922, %v1926
        %vm1928 = vweird.f32 %v1860
        %vm1929 = vweird.f32 %v1922
        %vm1930 = vmor %vm1928, %vm1929
        %v1931 = vsel %vm1930, %v1922, %v1927
        %v1932 = vrsqrt.pop %v1861
        %v1933 = vmul.f32 %v1932, %v1861
        %v1934 = vmul.f32 %v1933, %v1932
        %v1935 = vmul.f32 0.5, %v1934
        %v1936 = vsub.f32 1.5, %v1935
        %v1937 = vmul.f32 %v1932, %v1936
        %vm1938 = vweird.f32 %v1861
        %vm1939 = vweird.f32 %v1932
        %vm1940 = vmor %vm1938, %vm1939
        %v1941 = vsel %vm1940, %v1932, %v1937
        %v1942 = vmul.f32 %v1764, %v1871
        %v1943 = vmul.f32 %v1766, %v1881
        %v1944 = vmul.f32 %v1785, %v1891
        %v1945 = vmul.f32 %v1787, %v1901
        %v1946 = vmul.f32 %v1791, %v1911
        %v1947 = vmul.f32 %v1793, %v1921
        %v1948 = vmul.f32 %v1797, %v1931
        %v1949 = vmul.f32 %v1799, %v1941
        %s1950 = scalar_lea.vmem %s7, 4
        %v1951 = vld [vmem:[%s1950] sm:$0x1]
        %v1952 = vld [vmem:[%s1950 + $0x1] sm:$0x1]
        %v1953 = vld [vmem:[%s1950 + $0x2] sm:$0x1]
        %v1954 = vld [vmem:[%s1950 + $0x3] sm:$0x1]
        %v1959 = vperm.slane %v1951, 0
        %v1960 = vperm.slane %v1952, 0
        %v1961 = vperm.slane %v1953, 0
        %v1962 = vperm.slane %v1954, 0
        %v1967 = vmul.f32 %v1942, %v1959
        %v1968 = vmul.f32 %v1943, %v1959
        %v1969 = vmul.f32 %v1944, %v1960
        %v1970 = vmul.f32 %v1945, %v1960
        %v1971 = vmul.f32 %v1946, %v1961
        %v1972 = vmul.f32 %v1947, %v1961
        %v1973 = vmul.f32 %v1948, %v1962
        %v1974 = vmul.f32 %v1949, %v1962
        %1983 = vrot.lane.b32.xlu0 %v1822, 64
        %v1984 = vpop.permute.xlu0 %1983
        %1985 = vrot.lane.b32.xlu0 %v1823, 64
        %v1986 = vpop.permute.xlu0 %1985
        %1987 = vrot.lane.b32.xlu0 %v1824, 64
        %v1988 = vpop.permute.xlu0 %1987
        %1989 = vrot.lane.b32.xlu0 %v1825, 64
        %v1990 = vpop.permute.xlu0 %1989
        %1991 = vrot.lane.b32.xlu0 %v1826, 64
        %v1992 = vpop.permute.xlu0 %1991
        %1993 = vrot.lane.b32.xlu0 %v1827, 64
        %v1994 = vpop.permute.xlu0 %1993
        %1995 = vrot.lane.b32.xlu0 %v1828, 64
        %v1996 = vpop.permute.xlu0 %1995
        %1997 = vrot.lane.b32.xlu0 %v1829, 64
        %v1998 = vpop.permute.xlu0 %1997
        %v2007 = vsel %vm938, %v1984, 0.0
        %2008 = vadd.xlane.f32.xlu0 %v2007
        %v2009 = vpop.xlane.xlu0 %2008
        %v2010 = vsel %vm938, %v1986, 0.0
        %2011 = vadd.xlane.f32.xlu0 %v2010
        %v2012 = vpop.xlane.xlu0 %2011
        %v2013 = vsel %vm938, %v1988, 0.0
        %2014 = vadd.xlane.f32.xlu0 %v2013
        %v2015 = vpop.xlane.xlu0 %2014
        %v2016 = vsel %vm938, %v1990, 0.0
        %2017 = vadd.xlane.f32.xlu0 %v2016
        %v2018 = vpop.xlane.xlu0 %2017
        %v2019 = vsel %vm938, %v1992, 0.0
        %2020 = vadd.xlane.f32.xlu0 %v2019
        %v2021 = vpop.xlane.xlu0 %2020
        %v2022 = vsel %vm938, %v1994, 0.0
        %2023 = vadd.xlane.f32.xlu0 %v2022
        %v2024 = vpop.xlane.xlu0 %2023
        %v2025 = vsel %vm938, %v1996, 0.0
        %2026 = vadd.xlane.f32.xlu0 %v2025
        %v2027 = vpop.xlane.xlu0 %2026
        %v2028 = vsel %vm938, %v1998, 0.0
        %2029 = vadd.xlane.f32.xlu0 %v2028
        %v2030 = vpop.xlane.xlu0 %2029
        %v2031 = vadd.f32 %v2009, 1e-08
        %v2032 = vadd.f32 %v2012, 1e-08
        %v2033 = vadd.f32 %v2015, 1e-08
        %v2034 = vadd.f32 %v2018, 1e-08
        %v2035 = vadd.f32 %v2021, 1e-08
        %v2036 = vadd.f32 %v2024, 1e-08
        %v2037 = vadd.f32 %v2027, 1e-08
        %v2038 = vadd.f32 %v2030, 1e-08
        %v2039 = vrsqrt.pop %v2031
        %v2040 = vmul.f32 %v2039, %v2031
        %v2041 = vmul.f32 %v2040, %v2039
        %v2042 = vmul.f32 0.5, %v2041
        %v2043 = vsub.f32 1.5, %v2042
        %v2044 = vmul.f32 %v2039, %v2043
        %vm2045 = vweird.f32 %v2031
        %vm2046 = vweird.f32 %v2039
        %vm2047 = vmor %vm2045, %vm2046
        %v2048 = vsel %vm2047, %v2039, %v2044
        %v2049 = vrsqrt.pop %v2032
        %v2050 = vmul.f32 %v2049, %v2032
        %v2051 = vmul.f32 %v2050, %v2049
        %v2052 = vmul.f32 0.5, %v2051
        %v2053 = vsub.f32 1.5, %v2052
        %v2054 = vmul.f32 %v2049, %v2053
        %vm2055 = vweird.f32 %v2032
        %vm2056 = vweird.f32 %v2049
        %vm2057 = vmor %vm2055, %vm2056
        %v2058 = vsel %vm2057, %v2049, %v2054
        %v2059 = vrsqrt.pop %v2033
        %v2060 = vmul.f32 %v2059, %v2033
        %v2061 = vmul.f32 %v2060, %v2059
        %v2062 = vmul.f32 0.5, %v2061
        %v2063 = vsub.f32 1.5, %v2062
        %v2064 = vmul.f32 %v2059, %v2063
        %vm2065 = vweird.f32 %v2033
        %vm2066 = vweird.f32 %v2059
        %vm2067 = vmor %vm2065, %vm2066
        %v2068 = vsel %vm2067, %v2059, %v2064
        %v2069 = vrsqrt.pop %v2034
        %v2070 = vmul.f32 %v2069, %v2034
        %v2071 = vmul.f32 %v2070, %v2069
        %v2072 = vmul.f32 0.5, %v2071
        %v2073 = vsub.f32 1.5, %v2072
        %v2074 = vmul.f32 %v2069, %v2073
        %vm2075 = vweird.f32 %v2034
        %vm2076 = vweird.f32 %v2069
        %vm2077 = vmor %vm2075, %vm2076
        %v2078 = vsel %vm2077, %v2069, %v2074
        %v2079 = vrsqrt.pop %v2035
        %v2080 = vmul.f32 %v2079, %v2035
        %v2081 = vmul.f32 %v2080, %v2079
        %v2082 = vmul.f32 0.5, %v2081
        %v2083 = vsub.f32 1.5, %v2082
        %v2084 = vmul.f32 %v2079, %v2083
        %vm2085 = vweird.f32 %v2035
        %vm2086 = vweird.f32 %v2079
        %vm2087 = vmor %vm2085, %vm2086
        %v2088 = vsel %vm2087, %v2079, %v2084
        %v2089 = vrsqrt.pop %v2036
        %v2090 = vmul.f32 %v2089, %v2036
        %v2091 = vmul.f32 %v2090, %v2089
        %v2092 = vmul.f32 0.5, %v2091
        %v2093 = vsub.f32 1.5, %v2092
        %v2094 = vmul.f32 %v2089, %v2093
        %vm2095 = vweird.f32 %v2036
        %vm2096 = vweird.f32 %v2089
        %vm2097 = vmor %vm2095, %vm2096
        %v2098 = vsel %vm2097, %v2089, %v2094
        %v2099 = vrsqrt.pop %v2037
        %v2100 = vmul.f32 %v2099, %v2037
        %v2101 = vmul.f32 %v2100, %v2099
        %v2102 = vmul.f32 0.5, %v2101
        %v2103 = vsub.f32 1.5, %v2102
        %v2104 = vmul.f32 %v2099, %v2103
        %vm2105 = vweird.f32 %v2037
        %vm2106 = vweird.f32 %v2099
        %vm2107 = vmor %vm2105, %vm2106
        %v2108 = vsel %vm2107, %v2099, %v2104
        %v2109 = vrsqrt.pop %v2038
        %v2110 = vmul.f32 %v2109, %v2038
        %v2111 = vmul.f32 %v2110, %v2109
        %v2112 = vmul.f32 0.5, %v2111
        %v2113 = vsub.f32 1.5, %v2112
        %v2114 = vmul.f32 %v2109, %v2113
        %vm2115 = vweird.f32 %v2038
        %vm2116 = vweird.f32 %v2109
        %vm2117 = vmor %vm2115, %vm2116
        %v2118 = vsel %vm2117, %v2109, %v2114
        %v2119 = vmul.f32 %v1764, %v2048
        %v2120 = vmul.f32 %v1766, %v2058
        %v2121 = vmul.f32 %v1785, %v2068
        %v2122 = vmul.f32 %v1787, %v2078
        %v2123 = vmul.f32 %v1791, %v2088
        %v2124 = vmul.f32 %v1793, %v2098
        %v2125 = vmul.f32 %v1797, %v2108
        %v2126 = vmul.f32 %v1799, %v2118
        %s2127 = scalar_lea.vmem %s8, 4
        %v2128 = vld [vmem:[%s2127] sm:$0x1]
        %v2129 = vld [vmem:[%s2127 + $0x1] sm:$0x1]
        %v2130 = vld [vmem:[%s2127 + $0x2] sm:$0x1]
        %v2131 = vld [vmem:[%s2127 + $0x3] sm:$0x1]
        %v2136 = vperm.slane %v2128, 0
        %v2137 = vperm.slane %v2129, 0
        %v2138 = vperm.slane %v2130, 0
        %v2139 = vperm.slane %v2131, 0
        %2140 = vrot.lane.b32.xlu0 %v2136, 64
        %v2141 = vpop.permute.xlu0 %2140
        %2142 = vrot.lane.b32.xlu0 %v2137, 64
        %v2143 = vpop.permute.xlu0 %2142
        %2144 = vrot.lane.b32.xlu0 %v2138, 64
        %v2145 = vpop.permute.xlu0 %2144
        %2146 = vrot.lane.b32.xlu0 %v2139, 64
        %v2147 = vpop.permute.xlu0 %2146
        %v2152 = vmul.f32 %v2119, %v2141
        %v2153 = vmul.f32 %v2120, %v2141
        %v2154 = vmul.f32 %v2121, %v2143
        %v2155 = vmul.f32 %v2122, %v2143
        %v2156 = vmul.f32 %v2123, %v2145
        %v2157 = vmul.f32 %v2124, %v2145
        %v2158 = vmul.f32 %v2125, %v2147
        %v2159 = vmul.f32 %v2126, %v2147
        %v2160 = vpack.c.bf16 %v1967, %v1967
        %v2161 = vpack.c.bf16 %v1968, %v1968
        %v2162 = vpack.c.bf16 %v1969, %v1969
        %v2163 = vpack.c.bf16 %v1970, %v1970
        %v2164 = vpack.c.bf16 %v1971, %v1971
        %v2165 = vpack.c.bf16 %v1972, %v1972
        %v2166 = vpack.c.bf16 %v1973, %v1973
        %v2167 = vpack.c.bf16 %v1974, %v1974
        %v2168 = vpack.c.bf16 %v2152, %v2152
        %v2169 = vpack.c.bf16 %v2153, %v2153
        %v2170 = vpack.c.bf16 %v2154, %v2154
        %v2171 = vpack.c.bf16 %v2155, %v2155
        %v2172 = vpack.c.bf16 %v2156, %v2156
        %v2173 = vpack.c.bf16 %v2157, %v2157
        %v2174 = vpack.c.bf16 %v2158, %v2158
        %v2175 = vpack.c.bf16 %v2159, %v2159
        %v2178 = vunpack.c.l.b16 %v2160
        %v2179 = vunpack.c.l.b16 %v2161
        %v2180 = vpack.c.b16 %v2179, %v2178
        %v2183 = vunpack.c.l.b16 %v2168
        %v2184 = vunpack.c.l.b16 %v2169
        %v2185 = vpack.c.b16 %v2184, %v2183
        %2186 = vrot.lane.b32.xlu0 %v2185, 64
        %v2187 = vpop.permute.xlu0 %2186
        %v2189 = vsel %vm938, %v2180, 0
        %v2192 = vsel %vm938, %v2187, 0
        %2194 = vmatpush.bf16.xpose.msra.mxu0 0
        %2195 = vmatpush.bf16.xpose.msra.mxu0 0
        %2196 = vmatpush.bf16.xpose.msra.mxu0 0
        %2197 = vmatpush.bf16.xpose.msra.mxu0 0
        %2198 = vmatpush.bf16.xpose.msra.mxu0 0
        %2199 = vmatpush.bf16.xpose.msra.mxu0 0
        %2200 = vmatpush.bf16.xpose.msra.mxu0 0
        %2201 = vmatpush.bf16.xpose.msra.mxu0 %v2192
        %2202 = vmatmul.bf16.gmra.mxu0 %v2189
        %v2203 = vpop.f32.mrf.mxu0
        %v2204 = vadd.f32 0.0, %v2203
        %v2205 = vpop.f32.mrf.mxu0
        %v2206 = vadd.f32 0.0, %v2205
        %2207 = vdwg.mxu0
        %v2210 = vunpack.c.l.b16 %v2162
        %v2211 = vunpack.c.l.b16 %v2163
        %v2212 = vpack.c.b16 %v2211, %v2210
        %v2215 = vunpack.c.l.b16 %v2170
        %v2216 = vunpack.c.l.b16 %v2171
        %v2217 = vpack.c.b16 %v2216, %v2215
        %2218 = vrot.lane.b32.xlu0 %v2217, 64
        %v2219 = vpop.permute.xlu0 %2218
        %v2221 = vsel %vm938, %v2212, 0
        %v2224 = vsel %vm938, %v2219, 0
        %2226 = vmatpush.bf16.xpose.msra.mxu0 0
        %2227 = vmatpush.bf16.xpose.msra.mxu0 0
        %2228 = vmatpush.bf16.xpose.msra.mxu0 0
        %2229 = vmatpush.bf16.xpose.msra.mxu0 0
        %2230 = vmatpush.bf16.xpose.msra.mxu0 0
        %2231 = vmatpush.bf16.xpose.msra.mxu0 0
        %2232 = vmatpush.bf16.xpose.msra.mxu0 0
        %2233 = vmatpush.bf16.xpose.msra.mxu0 %v2224
        %2234 = vmatmul.bf16.gmra.mxu0 %v2221
        %v2235 = vpop.f32.mrf.mxu0
        %v2236 = vadd.f32 0.0, %v2235
        %v2237 = vpop.f32.mrf.mxu0
        %v2238 = vadd.f32 0.0, %v2237
        %2239 = vdwg.mxu0
        %v2242 = vunpack.c.l.b16 %v2164
        %v2243 = vunpack.c.l.b16 %v2165
        %v2244 = vpack.c.b16 %v2243, %v2242
        %v2247 = vunpack.c.l.b16 %v2172
        %v2248 = vunpack.c.l.b16 %v2173
        %v2249 = vpack.c.b16 %v2248, %v2247
        %2250 = vrot.lane.b32.xlu0 %v2249, 64
        %v2251 = vpop.permute.xlu0 %2250
        %v2253 = vsel %vm938, %v2244, 0
        %v2256 = vsel %vm938, %v2251, 0
        %2258 = vmatpush.bf16.xpose.msra.mxu0 0
        %2259 = vmatpush.bf16.xpose.msra.mxu0 0
        %2260 = vmatpush.bf16.xpose.msra.mxu0 0
        %2261 = vmatpush.bf16.xpose.msra.mxu0 0
        %2262 = vmatpush.bf16.xpose.msra.mxu0 0
        %2263 = vmatpush.bf16.xpose.msra.mxu0 0
        %2264 = vmatpush.bf16.xpose.msra.mxu0 0
        %2265 = vmatpush.bf16.xpose.msra.mxu0 %v2256
        %2266 = vmatmul.bf16.gmra.mxu0 %v2253
        %v2267 = vpop.f32.mrf.mxu0
        %v2268 = vadd.f32 0.0, %v2267
        %v2269 = vpop.f32.mrf.mxu0
        %v2270 = vadd.f32 0.0, %v2269
        %2271 = vdwg.mxu0
        %v2274 = vunpack.c.l.b16 %v2166
        %v2275 = vunpack.c.l.b16 %v2167
        %v2276 = vpack.c.b16 %v2275, %v2274
        %v2279 = vunpack.c.l.b16 %v2174
        %v2280 = vunpack.c.l.b16 %v2175
        %v2281 = vpack.c.b16 %v2280, %v2279
        %2282 = vrot.lane.b32.xlu0 %v2281, 64
        %v2283 = vpop.permute.xlu0 %2282
        %v2285 = vsel %vm938, %v2276, 0
        %v2288 = vsel %vm938, %v2283, 0
        %2290 = vmatpush.bf16.xpose.msra.mxu0 0
        %2291 = vmatpush.bf16.xpose.msra.mxu0 0
        %2292 = vmatpush.bf16.xpose.msra.mxu0 0
        %2293 = vmatpush.bf16.xpose.msra.mxu0 0
        %2294 = vmatpush.bf16.xpose.msra.mxu0 0
        %2295 = vmatpush.bf16.xpose.msra.mxu0 0
        %2296 = vmatpush.bf16.xpose.msra.mxu0 0
        %2297 = vmatpush.bf16.xpose.msra.mxu0 %v2288
        %2298 = vmatmul.bf16.gmra.mxu0 %v2285
        %v2299 = vpop.f32.mrf.mxu0
        %v2300 = vadd.f32 0.0, %v2299
        %v2301 = vpop.f32.mrf.mxu0
        %v2302 = vadd.f32 0.0, %v2301
        %2303 = vdwg.mxu0
        %v2304 = vmul.f32 %v2204, 0.25
        %v2305 = vmul.f32 %v2206, 0.25
        %v2306 = vmul.f32 %v2236, 0.25
        %v2307 = vmul.f32 %v2238, 0.25
        %v2308 = vmul.f32 %v2268, 0.25
        %v2309 = vmul.f32 %v2270, 0.25
        %v2310 = vmul.f32 %v2300, 0.25
        %v2311 = vmul.f32 %v2302, 0.25
        %v2312 = vadd.f32 %v2304, %v744
        %v2313 = vadd.f32 %v2305, %v745
        %v2314 = vadd.f32 %v2306, %v744
        %v2315 = vadd.f32 %v2307, %v745
        %v2316 = vadd.f32 %v2308, %v744
        %v2317 = vadd.f32 %v2309, %v745
        %v2318 = vadd.f32 %v2310, %v744
        %v2319 = vadd.f32 %v2311, %v745
        %v2320 = vsel %vm938, %v2312, -inf
        %2321 = vmax.xlane.f32.xlu0 %v2320
        %v2322 = vpop.xlane.xlu0 %2321
        %v2323 = vsel %vm938, %v2313, -inf
        %2324 = vmax.xlane.f32.xlu0 %v2323
        %v2325 = vpop.xlane.xlu0 %2324
        %v2326 = vsel %vm938, %v2314, -inf
        %2327 = vmax.xlane.f32.xlu0 %v2326
        %v2328 = vpop.xlane.xlu0 %2327
        %v2329 = vsel %vm938, %v2315, -inf
        %2330 = vmax.xlane.f32.xlu0 %v2329
        %v2331 = vpop.xlane.xlu0 %2330
        %v2332 = vsel %vm938, %v2316, -inf
        %2333 = vmax.xlane.f32.xlu0 %v2332
        %v2334 = vpop.xlane.xlu0 %2333
        %v2335 = vsel %vm938, %v2317, -inf
        %2336 = vmax.xlane.f32.xlu0 %v2335
        %v2337 = vpop.xlane.xlu0 %2336
        %v2338 = vsel %vm938, %v2318, -inf
        %2339 = vmax.xlane.f32.xlu0 %v2338
        %v2340 = vpop.xlane.xlu0 %2339
        %v2341 = vsel %vm938, %v2319, -inf
        %2342 = vmax.xlane.f32.xlu0 %v2341
        %v2343 = vpop.xlane.xlu0 %2342
        %v2344 = vsub.f32 %v2312, %v2322
        %v2345 = vsub.f32 %v2313, %v2325
        %v2346 = vsub.f32 %v2314, %v2328
        %v2347 = vsub.f32 %v2315, %v2331
        %v2348 = vsub.f32 %v2316, %v2334
        %v2349 = vsub.f32 %v2317, %v2337
        %v2350 = vsub.f32 %v2318, %v2340
        %v2351 = vsub.f32 %v2319, %v2343
        %v2352 = vmul.f32 %v2344, 1.442695
        %v2353 = vpow.pop %v2352
        %v2354 = vmul.f32 %v2345, 1.442695
        %v2355 = vpow.pop %v2354
        %v2356 = vmul.f32 %v2346, 1.442695
        %v2357 = vpow.pop %v2356
        %v2358 = vmul.f32 %v2347, 1.442695
        %v2359 = vpow.pop %v2358
        %v2360 = vmul.f32 %v2348, 1.442695
        %v2361 = vpow.pop %v2360
        %v2362 = vmul.f32 %v2349, 1.442695
        %v2363 = vpow.pop %v2362
        %v2364 = vmul.f32 %v2350, 1.442695
        %v2365 = vpow.pop %v2364
        %v2366 = vmul.f32 %v2351, 1.442695
        %v2367 = vpow.pop %v2366
        %v2368 = vsel %vm938, %v2353, 0.0
        %2369 = vadd.xlane.f32.xlu0 %v2368
        %v2370 = vpop.xlane.xlu0 %2369
        %v2371 = vsel %vm938, %v2355, 0.0
        %2372 = vadd.xlane.f32.xlu0 %v2371
        %v2373 = vpop.xlane.xlu0 %2372
        %v2374 = vsel %vm938, %v2357, 0.0
        %2375 = vadd.xlane.f32.xlu0 %v2374
        %v2376 = vpop.xlane.xlu0 %2375
        %v2377 = vsel %vm938, %v2359, 0.0
        %2378 = vadd.xlane.f32.xlu0 %v2377
        %v2379 = vpop.xlane.xlu0 %2378
        %v2380 = vsel %vm938, %v2361, 0.0
        %2381 = vadd.xlane.f32.xlu0 %v2380
        %v2382 = vpop.xlane.xlu0 %2381
        %v2383 = vsel %vm938, %v2363, 0.0
        %2384 = vadd.xlane.f32.xlu0 %v2383
        %v2385 = vpop.xlane.xlu0 %2384
        %v2386 = vsel %vm938, %v2365, 0.0
        %2387 = vadd.xlane.f32.xlu0 %v2386
        %v2388 = vpop.xlane.xlu0 %2387
        %v2389 = vsel %vm938, %v2367, 0.0
        %2390 = vadd.xlane.f32.xlu0 %v2389
        %v2391 = vpop.xlane.xlu0 %2390
        %v2392 = vrcp.pop %v2370
        %v2393 = vrcp.pop %v2373
        %v2394 = vrcp.pop %v2376
        %v2395 = vrcp.pop %v2379
        %v2396 = vrcp.pop %v2382
        %v2397 = vrcp.pop %v2385
        %v2398 = vrcp.pop %v2388
        %v2399 = vrcp.pop %v2391
        %v2400 = vmul.f32 %v2353, %v2392
        %v2401 = vmul.f32 %v2355, %v2393
        %v2402 = vmul.f32 %v2357, %v2394
        %v2403 = vmul.f32 %v2359, %v2395
        %v2404 = vmul.f32 %v2361, %v2396
        %v2405 = vmul.f32 %v2363, %v2397
        %v2406 = vmul.f32 %v2365, %v2398
        %v2407 = vmul.f32 %v2367, %v2399
        %v2408 = vpack.c.bf16 %v2400, %v2400
        %v2409 = vpack.c.bf16 %v2401, %v2401
        %v2410 = vpack.c.bf16 %v2402, %v2402
        %v2411 = vpack.c.bf16 %v2403, %v2403
        %v2412 = vpack.c.bf16 %v2404, %v2404
        %v2413 = vpack.c.bf16 %v2405, %v2405
        %v2414 = vpack.c.bf16 %v2406, %v2406
        %v2415 = vpack.c.bf16 %v2407, %v2407
        %v2416 = vpack.c.bf16 %v1778, %v1778
        %v2417 = vpack.c.bf16 %v1780, %v1780
        %v2418 = vpack.c.bf16 %v1805, %v1805
        %v2419 = vpack.c.bf16 %v1807, %v1807
        %v2420 = vpack.c.bf16 %v1811, %v1811
        %v2421 = vpack.c.bf16 %v1813, %v1813
        %v2422 = vpack.c.bf16 %v1817, %v1817
        %v2423 = vpack.c.bf16 %v1819, %v1819
        %v2426 = vunpack.c.l.b16 %v2408
        %v2427 = vunpack.c.l.b16 %v2409
        %v2428 = vpack.c.b16 %v2427, %v2426
        %v2431 = vunpack.c.l.b16 %v2416
        %v2432 = vunpack.c.l.b16 %v2417
        %v2433 = vpack.c.b16 %v2432, %v2431
        %v2436 = vsel %vm938, %v2428, 0
        %2438 = vmatpush.bf16.msra.mxu0 0
        %2439 = vmatpush.bf16.msra.mxu0 0
        %2440 = vmatpush.bf16.msra.mxu0 0
        %2441 = vmatpush.bf16.msra.mxu0 0
        %2442 = vmatpush.bf16.msra.mxu0 0
        %2443 = vmatpush.bf16.msra.mxu0 0
        %2444 = vmatpush.bf16.msra.mxu0 0
        %2445 = vmatpush.bf16.msra.mxu0 %v2433
        %2446 = vmatmul.bf16.gmra.mxu0 %v2436
        %v2447 = vpop.f32.mrf.mxu0
        %v2448 = vadd.f32 0.0, %v2447
        %v2449 = vpop.f32.mrf.mxu0
        %v2450 = vadd.f32 0.0, %v2449
        %2451 = vdwg.mxu0
        %v2454 = vunpack.c.l.b16 %v2410
        %v2455 = vunpack.c.l.b16 %v2411
        %v2456 = vpack.c.b16 %v2455, %v2454
        %v2459 = vunpack.c.l.b16 %v2418
        %v2460 = vunpack.c.l.b16 %v2419
        %v2461 = vpack.c.b16 %v2460, %v2459
        %v2464 = vsel %vm938, %v2456, 0
        %2466 = vmatpush.bf16.msra.mxu0 0
        %2467 = vmatpush.bf16.msra.mxu0 0
        %2468 = vmatpush.bf16.msra.mxu0 0
        %2469 = vmatpush.bf16.msra.mxu0 0
        %2470 = vmatpush.bf16.msra.mxu0 0
        %2471 = vmatpush.bf16.msra.mxu0 0
        %2472 = vmatpush.bf16.msra.mxu0 0
        %2473 = vmatpush.bf16.msra.mxu0 %v2461
        %2474 = vmatmul.bf16.gmra.mxu0 %v2464
        %v2475 = vpop.f32.mrf.mxu0
        %v2476 = vadd.f32 0.0, %v2475
        %v2477 = vpop.f32.mrf.mxu0
        %v2478 = vadd.f32 0.0, %v2477
        %2479 = vdwg.mxu0
        %v2482 = vunpack.c.l.b16 %v2412
        %v2483 = vunpack.c.l.b16 %v2413
        %v2484 = vpack.c.b16 %v2483, %v2482
        %v2487 = vunpack.c.l.b16 %v2420
        %v2488 = vunpack.c.l.b16 %v2421
        %v2489 = vpack.c.b16 %v2488, %v2487
        %v2492 = vsel %vm938, %v2484, 0
        %2494 = vmatpush.bf16.msra.mxu0 0
        %2495 = vmatpush.bf16.msra.mxu0 0
        %2496 = vmatpush.bf16.msra.mxu0 0
        %2497 = vmatpush.bf16.msra.mxu0 0
        %2498 = vmatpush.bf16.msra.mxu0 0
        %2499 = vmatpush.bf16.msra.mxu0 0
        %2500 = vmatpush.bf16.msra.mxu0 0
        %2501 = vmatpush.bf16.msra.mxu0 %v2489
        %2502 = vmatmul.bf16.gmra.mxu0 %v2492
        %v2503 = vpop.f32.mrf.mxu0
        %v2504 = vadd.f32 0.0, %v2503
        %v2505 = vpop.f32.mrf.mxu0
        %v2506 = vadd.f32 0.0, %v2505
        %2507 = vdwg.mxu0
        %v2510 = vunpack.c.l.b16 %v2414
        %v2511 = vunpack.c.l.b16 %v2415
        %v2512 = vpack.c.b16 %v2511, %v2510
        %v2515 = vunpack.c.l.b16 %v2422
        %v2516 = vunpack.c.l.b16 %v2423
        %v2517 = vpack.c.b16 %v2516, %v2515
        %v2520 = vsel %vm938, %v2512, 0
        %2522 = vmatpush.bf16.msra.mxu0 0
        %2523 = vmatpush.bf16.msra.mxu0 0
        %2524 = vmatpush.bf16.msra.mxu0 0
        %2525 = vmatpush.bf16.msra.mxu0 0
        %2526 = vmatpush.bf16.msra.mxu0 0
        %2527 = vmatpush.bf16.msra.mxu0 0
        %2528 = vmatpush.bf16.msra.mxu0 0
        %2529 = vmatpush.bf16.msra.mxu0 %v2517
        %2530 = vmatmul.bf16.gmra.mxu0 %v2520
        %v2531 = vpop.f32.mrf.mxu0
        %v2532 = vadd.f32 0.0, %v2531
        %v2533 = vpop.f32.mrf.mxu0
        %v2534 = vadd.f32 0.0, %v2533
        %2535 = vdwg.mxu0
        %2538 = vrot.lane.b32.xlu0 %v2476, 16
        %v2539 = vpop.permute.xlu0 %2538
        %2540 = vrot.lane.b32.xlu0 %v2478, 16
        %v2541 = vpop.permute.xlu0 %2540
        %2546 = vrot.lane.b32.xlu0 %v2504, 32
        %v2547 = vpop.permute.xlu0 %2546
        %2548 = vrot.lane.b32.xlu0 %v2506, 32
        %v2549 = vpop.permute.xlu0 %2548
        %2554 = vrot.lane.b32.xlu0 %v2532, 48
        %v2555 = vpop.permute.xlu0 %2554
        %2556 = vrot.lane.b32.xlu0 %v2534, 48
        %v2557 = vpop.permute.xlu0 %2556
        %v2560 = vsel %vm938, %v2448, %v2539
        %v2561 = vsel %vm938, %v2450, %v2541
        %v2562 = vsel %vm772, %v2560, %v2547
        %v2563 = vsel %vm772, %v2561, %v2549
        %v2564 = vsel %vm1671, %v2562, %v2555
        %v2565 = vsel %vm1671, %v2563, %v2557
        %v2566 = vpack.c.bf16 %v2565, %v2564
        %s2567 = scalar_lea.vmem %s6, 32
        %v2568 = vld [vmem:[%s2567] sm:$0xf]
        %v2569 = vld [vmem:[%s2567 + $0x4] sm:$0xf]
        %v2570 = vld [vmem:[%s2567 + $0x8] sm:$0xf]
        %v2571 = vld [vmem:[%s2567 + $0xc] sm:$0xf]
        %v2572 = vld [vmem:[%s2567 + $0x10] sm:$0xf]
        %v2573 = vld [vmem:[%s2567 + $0x14] sm:$0xf]
        %v2574 = vld [vmem:[%s2567 + $0x18] sm:$0xf]
        %v2575 = vld [vmem:[%s2567 + $0x1c] sm:$0xf]
        %v2584 = vunpack.c.l.b16 %v2568
        %v2585 = vunpack.c.l.b16 %v2569
        %v2586 = vunpack.c.l.b16 %v2570
        %v2587 = vunpack.c.l.b16 %v2571
        %v2588 = vunpack.c.l.b16 %v2572
        %v2589 = vunpack.c.l.b16 %v2573
        %v2590 = vunpack.c.l.b16 %v2574
        %v2591 = vunpack.c.l.b16 %v2575
        %v2592 = vpack.c.b16 %v2585, %v2584
        %v2593 = vpack.c.b16 %v2587, %v2586
        %v2594 = vpack.c.b16 %v2589, %v2588
        %v2595 = vpack.c.b16 %v2591, %v2590
        %v2601 = vsel %vm1707, %v2566, 0
        %2603 = vmatpush.bf16.msra.mxu0 0
        %2604 = vmatpush.bf16.msra.mxu0 0
        %2605 = vmatpush.bf16.msra.mxu0 0
        %2606 = vmatpush.bf16.msra.mxu0 0
        %2607 = vmatpush.bf16.msra.mxu0 %v2595
        %2608 = vmatpush.bf16.msra.mxu0 %v2594
        %2609 = vmatpush.bf16.msra.mxu0 %v2593
        %2610 = vmatpush.bf16.msra.mxu0 %v2592
        %2611 = vmatmul.bf16.gmra.mxu0 %v2601
        %v2612 = vpop.f32.mrf.mxu0
        %v2613 = vadd.f32 0.0, %v2612
        %v2614 = vpop.f32.mrf.mxu0
        %v2615 = vadd.f32 0.0, %v2614
        %2616 = vdwg.mxu0
        %v2617 = vpack.c.bf16 %v2615, %v2613
        %s2618 = scalar_lea.vmem %s5, 64
        %v2619 = vld [vmem:[%s2618] sm:$0xff]
        %v2620 = vld [vmem:[%s2618 + $0x8] sm:$0xff]
        %v2621 = vld [vmem:[%s2618 + $0x10] sm:$0xff]
        %v2622 = vld [vmem:[%s2618 + $0x18] sm:$0xff]
        %v2627 = vunpack.c.l.b16 %v2619
        %v2628 = vunpack.c.h.b16 %v2619
        %v2629 = vunpack.c.l.b16 %v2620
        %v2630 = vunpack.c.h.b16 %v2620
        %v2631 = vunpack.c.l.b16 %v2621
        %v2632 = vunpack.c.h.b16 %v2621
        %v2633 = vunpack.c.l.b16 %v2622
        %v2634 = vunpack.c.h.b16 %v2622
        %v2635 = vpack.c.b16 %v2629, %v2627
        %v2636 = vpack.c.b16 %v2630, %v2628
        %v2637 = vpack.c.b16 %v2633, %v2631
        %v2638 = vpack.c.b16 %v2634, %v2632
        %v2644 = vsel %vm772, %v2617, 0
        %2646 = vmatpush.bf16.msra.mxu0 0
        %2647 = vmatpush.bf16.msra.mxu0 0
        %2648 = vmatpush.bf16.msra.mxu0 0
        %2649 = vmatpush.bf16.msra.mxu0 0
        %2650 = vmatpush.bf16.msra.mxu0 0
        %2651 = vmatpush.bf16.msra.mxu0 0
        %2652 = vmatpush.bf16.msra.mxu0 %v2637
        %2653 = vmatpush.bf16.msra.mxu0 %v2635
        %2654 = vmatmul.bf16.gmra.mxu0 %v2644
        %v2655 = vpop.f32.mrf.mxu0
        %v2656 = vadd.f32 0.0, %v2655
        %v2657 = vpop.f32.mrf.mxu0
        %v2658 = vadd.f32 0.0, %v2657
        %2659 = vdwg.mxu0
        %2660 = vmatpush.bf16.msra.mxu0 0
        %2661 = vmatpush.bf16.msra.mxu0 0
        %2662 = vmatpush.bf16.msra.mxu0 0
        %2663 = vmatpush.bf16.msra.mxu0 0
        %2664 = vmatpush.bf16.msra.mxu0 0
        %2665 = vmatpush.bf16.msra.mxu0 0
        %2666 = vmatpush.bf16.msra.mxu0 %v2638
        %2667 = vmatpush.bf16.msra.mxu0 %v2636
        %2668 = vmatmul.bf16.gmra.mxu0 %v2644
        %v2669 = vpop.f32.mrf.mxu0
        %v2670 = vadd.f32 0.0, %v2669
        %v2671 = vpop.f32.mrf.mxu0
        %v2672 = vadd.f32 0.0, %v2671
        %2673 = vdwg.mxu0
        %2676 = vrot.lane.b32.xlu0 %v2656, 112
        %v2677 = vpop.permute.xlu0 %2676
        %2678 = vrot.lane.b32.xlu0 %v2658, 112
        %v2679 = vpop.permute.xlu0 %2678
        %2682 = vrot.lane.b32.xlu0 %v2656, 96
        %v2683 = vpop.permute.xlu0 %2682
        %2684 = vrot.lane.b32.xlu0 %v2658, 96
        %v2685 = vpop.permute.xlu0 %2684
        %2688 = vrot.lane.b32.xlu0 %v2656, 80
        %v2689 = vpop.permute.xlu0 %2688
        %2690 = vrot.lane.b32.xlu0 %v2658, 80
        %v2691 = vpop.permute.xlu0 %2690
        %2696 = vrot.lane.b32.xlu0 %v2670, 112
        %v2697 = vpop.permute.xlu0 %2696
        %2698 = vrot.lane.b32.xlu0 %v2672, 112
        %v2699 = vpop.permute.xlu0 %2698
        %2702 = vrot.lane.b32.xlu0 %v2670, 96
        %v2703 = vpop.permute.xlu0 %2702
        %2704 = vrot.lane.b32.xlu0 %v2672, 96
        %v2705 = vpop.permute.xlu0 %2704
        %2708 = vrot.lane.b32.xlu0 %v2670, 80
        %v2709 = vpop.permute.xlu0 %2708
        %2710 = vrot.lane.b32.xlu0 %v2672, 80
        %v2711 = vpop.permute.xlu0 %2710
        %v2714 = vmul.f32 %v2656, %v2656
        %v2715 = vmul.f32 %v2658, %v2658
        %v2716 = vmul.f32 %v2677, %v2677
        %v2717 = vmul.f32 %v2679, %v2679
        %v2718 = vmul.f32 %v2683, %v2683
        %v2719 = vmul.f32 %v2685, %v2685
        %v2720 = vmul.f32 %v2689, %v2689
        %v2721 = vmul.f32 %v2691, %v2691
        %v2722 = vsel %vm938, %v2714, 0.0
        %2723 = vadd.xlane.f32.xlu0 %v2722
        %v2724 = vpop.xlane.xlu0 %2723
        %v2725 = vsel %vm938, %v2715, 0.0
        %2726 = vadd.xlane.f32.xlu0 %v2725
        %v2727 = vpop.xlane.xlu0 %2726
        %v2728 = vsel %vm938, %v2716, 0.0
        %2729 = vadd.xlane.f32.xlu0 %v2728
        %v2730 = vpop.xlane.xlu0 %2729
        %v2731 = vsel %vm938, %v2717, 0.0
        %2732 = vadd.xlane.f32.xlu0 %v2731
        %v2733 = vpop.xlane.xlu0 %2732
        %v2734 = vsel %vm938, %v2718, 0.0
        %2735 = vadd.xlane.f32.xlu0 %v2734
        %v2736 = vpop.xlane.xlu0 %2735
        %v2737 = vsel %vm938, %v2719, 0.0
        %2738 = vadd.xlane.f32.xlu0 %v2737
        %v2739 = vpop.xlane.xlu0 %2738
        %v2740 = vsel %vm938, %v2720, 0.0
        %2741 = vadd.xlane.f32.xlu0 %v2740
        %v2742 = vpop.xlane.xlu0 %2741
        %v2743 = vsel %vm938, %v2721, 0.0
        %2744 = vadd.xlane.f32.xlu0 %v2743
        %v2745 = vpop.xlane.xlu0 %2744
        %v2746 = vadd.f32 %v2724, 1e-08
        %v2747 = vadd.f32 %v2727, 1e-08
        %v2748 = vadd.f32 %v2730, 1e-08
        %v2749 = vadd.f32 %v2733, 1e-08
        %v2750 = vadd.f32 %v2736, 1e-08
        %v2751 = vadd.f32 %v2739, 1e-08
        %v2752 = vadd.f32 %v2742, 1e-08
        %v2753 = vadd.f32 %v2745, 1e-08
        %v2754 = vrsqrt.pop %v2746
        %v2755 = vmul.f32 %v2754, %v2746
        %v2756 = vmul.f32 %v2755, %v2754
        %v2757 = vmul.f32 0.5, %v2756
        %v2758 = vsub.f32 1.5, %v2757
        %v2759 = vmul.f32 %v2754, %v2758
        %vm2760 = vweird.f32 %v2746
        %vm2761 = vweird.f32 %v2754
        %vm2762 = vmor %vm2760, %vm2761
        %v2763 = vsel %vm2762, %v2754, %v2759
        %v2764 = vrsqrt.pop %v2747
        %v2765 = vmul.f32 %v2764, %v2747
        %v2766 = vmul.f32 %v2765, %v2764
        %v2767 = vmul.f32 0.5, %v2766
        %v2768 = vsub.f32 1.5, %v2767
        %v2769 = vmul.f32 %v2764, %v2768
        %vm2770 = vweird.f32 %v2747
        %vm2771 = vweird.f32 %v2764
        %vm2772 = vmor %vm2770, %vm2771
        %v2773 = vsel %vm2772, %v2764, %v2769
        %v2774 = vrsqrt.pop %v2748
        %v2775 = vmul.f32 %v2774, %v2748
        %v2776 = vmul.f32 %v2775, %v2774
        %v2777 = vmul.f32 0.5, %v2776
        %v2778 = vsub.f32 1.5, %v2777
        %v2779 = vmul.f32 %v2774, %v2778
        %vm2780 = vweird.f32 %v2748
        %vm2781 = vweird.f32 %v2774
        %vm2782 = vmor %vm2780, %vm2781
        %v2783 = vsel %vm2782, %v2774, %v2779
        %v2784 = vrsqrt.pop %v2749
        %v2785 = vmul.f32 %v2784, %v2749
        %v2786 = vmul.f32 %v2785, %v2784
        %v2787 = vmul.f32 0.5, %v2786
        %v2788 = vsub.f32 1.5, %v2787
        %v2789 = vmul.f32 %v2784, %v2788
        %vm2790 = vweird.f32 %v2749
        %vm2791 = vweird.f32 %v2784
        %vm2792 = vmor %vm2790, %vm2791
        %v2793 = vsel %vm2792, %v2784, %v2789
        %v2794 = vrsqrt.pop %v2750
        %v2795 = vmul.f32 %v2794, %v2750
        %v2796 = vmul.f32 %v2795, %v2794
        %v2797 = vmul.f32 0.5, %v2796
        %v2798 = vsub.f32 1.5, %v2797
        %v2799 = vmul.f32 %v2794, %v2798
        %vm2800 = vweird.f32 %v2750
        %vm2801 = vweird.f32 %v2794
        %vm2802 = vmor %vm2800, %vm2801
        %v2803 = vsel %vm2802, %v2794, %v2799
        %v2804 = vrsqrt.pop %v2751
        %v2805 = vmul.f32 %v2804, %v2751
        %v2806 = vmul.f32 %v2805, %v2804
        %v2807 = vmul.f32 0.5, %v2806
        %v2808 = vsub.f32 1.5, %v2807
        %v2809 = vmul.f32 %v2804, %v2808
        %vm2810 = vweird.f32 %v2751
        %vm2811 = vweird.f32 %v2804
        %vm2812 = vmor %vm2810, %vm2811
        %v2813 = vsel %vm2812, %v2804, %v2809
        %v2814 = vrsqrt.pop %v2752
        %v2815 = vmul.f32 %v2814, %v2752
        %v2816 = vmul.f32 %v2815, %v2814
        %v2817 = vmul.f32 0.5, %v2816
        %v2818 = vsub.f32 1.5, %v2817
        %v2819 = vmul.f32 %v2814, %v2818
        %vm2820 = vweird.f32 %v2752
        %vm2821 = vweird.f32 %v2814
        %vm2822 = vmor %vm2820, %vm2821
        %v2823 = vsel %vm2822, %v2814, %v2819
        %v2824 = vrsqrt.pop %v2753
        %v2825 = vmul.f32 %v2824, %v2753
        %v2826 = vmul.f32 %v2825, %v2824
        %v2827 = vmul.f32 0.5, %v2826
        %v2828 = vsub.f32 1.5, %v2827
        %v2829 = vmul.f32 %v2824, %v2828
        %vm2830 = vweird.f32 %v2753
        %vm2831 = vweird.f32 %v2824
        %vm2832 = vmor %vm2830, %vm2831
        %v2833 = vsel %vm2832, %v2824, %v2829
        %v2834 = vmul.f32 %v2656, %v2763
        %v2835 = vmul.f32 %v2658, %v2773
        %v2836 = vmul.f32 %v2677, %v2783
        %v2837 = vmul.f32 %v2679, %v2793
        %v2838 = vmul.f32 %v2683, %v2803
        %v2839 = vmul.f32 %v2685, %v2813
        %v2840 = vmul.f32 %v2689, %v2823
        %v2841 = vmul.f32 %v2691, %v2833
        %s2842 = scalar_lea.vmem %s7, 8
        %v2843 = vld [vmem:[%s2842] sm:$0x1]
        %v2844 = vld [vmem:[%s2842 + $0x1] sm:$0x1]
        %v2845 = vld [vmem:[%s2842 + $0x2] sm:$0x1]
        %v2846 = vld [vmem:[%s2842 + $0x3] sm:$0x1]
        %v2851 = vperm.slane %v2843, 0
        %v2852 = vperm.slane %v2844, 0
        %v2853 = vperm.slane %v2845, 0
        %v2854 = vperm.slane %v2846, 0
        %v2859 = vmul.f32 %v2834, %v2851
        %v2860 = vmul.f32 %v2835, %v2851
        %v2861 = vmul.f32 %v2836, %v2852
        %v2862 = vmul.f32 %v2837, %v2852
        %v2863 = vmul.f32 %v2838, %v2853
        %v2864 = vmul.f32 %v2839, %v2853
        %v2865 = vmul.f32 %v2840, %v2854
        %v2866 = vmul.f32 %v2841, %v2854
        %2875 = vrot.lane.b32.xlu0 %v2714, 64
        %v2876 = vpop.permute.xlu0 %2875
        %2877 = vrot.lane.b32.xlu0 %v2715, 64
        %v2878 = vpop.permute.xlu0 %2877
        %2879 = vrot.lane.b32.xlu0 %v2716, 64
        %v2880 = vpop.permute.xlu0 %2879
        %2881 = vrot.lane.b32.xlu0 %v2717, 64
        %v2882 = vpop.permute.xlu0 %2881
        %2883 = vrot.lane.b32.xlu0 %v2718, 64
        %v2884 = vpop.permute.xlu0 %2883
        %2885 = vrot.lane.b32.xlu0 %v2719, 64
        %v2886 = vpop.permute.xlu0 %2885
        %2887 = vrot.lane.b32.xlu0 %v2720, 64
        %v2888 = vpop.permute.xlu0 %2887
        %2889 = vrot.lane.b32.xlu0 %v2721, 64
        %v2890 = vpop.permute.xlu0 %2889
        %v2899 = vsel %vm938, %v2876, 0.0
        %2900 = vadd.xlane.f32.xlu0 %v2899
        %v2901 = vpop.xlane.xlu0 %2900
        %v2902 = vsel %vm938, %v2878, 0.0
        %2903 = vadd.xlane.f32.xlu0 %v2902
        %v2904 = vpop.xlane.xlu0 %2903
        %v2905 = vsel %vm938, %v2880, 0.0
        %2906 = vadd.xlane.f32.xlu0 %v2905
        %v2907 = vpop.xlane.xlu0 %2906
        %v2908 = vsel %vm938, %v2882, 0.0
        %2909 = vadd.xlane.f32.xlu0 %v2908
        %v2910 = vpop.xlane.xlu0 %2909
        %v2911 = vsel %vm938, %v2884, 0.0
        %2912 = vadd.xlane.f32.xlu0 %v2911
        %v2913 = vpop.xlane.xlu0 %2912
        %v2914 = vsel %vm938, %v2886, 0.0
        %2915 = vadd.xlane.f32.xlu0 %v2914
        %v2916 = vpop.xlane.xlu0 %2915
        %v2917 = vsel %vm938, %v2888, 0.0
        %2918 = vadd.xlane.f32.xlu0 %v2917
        %v2919 = vpop.xlane.xlu0 %2918
        %v2920 = vsel %vm938, %v2890, 0.0
        %2921 = vadd.xlane.f32.xlu0 %v2920
        %v2922 = vpop.xlane.xlu0 %2921
        %v2923 = vadd.f32 %v2901, 1e-08
        %v2924 = vadd.f32 %v2904, 1e-08
        %v2925 = vadd.f32 %v2907, 1e-08
        %v2926 = vadd.f32 %v2910, 1e-08
        %v2927 = vadd.f32 %v2913, 1e-08
        %v2928 = vadd.f32 %v2916, 1e-08
        %v2929 = vadd.f32 %v2919, 1e-08
        %v2930 = vadd.f32 %v2922, 1e-08
        %v2931 = vrsqrt.pop %v2923
        %v2932 = vmul.f32 %v2931, %v2923
        %v2933 = vmul.f32 %v2932, %v2931
        %v2934 = vmul.f32 0.5, %v2933
        %v2935 = vsub.f32 1.5, %v2934
        %v2936 = vmul.f32 %v2931, %v2935
        %vm2937 = vweird.f32 %v2923
        %vm2938 = vweird.f32 %v2931
        %vm2939 = vmor %vm2937, %vm2938
        %v2940 = vsel %vm2939, %v2931, %v2936
        %v2941 = vrsqrt.pop %v2924
        %v2942 = vmul.f32 %v2941, %v2924
        %v2943 = vmul.f32 %v2942, %v2941
        %v2944 = vmul.f32 0.5, %v2943
        %v2945 = vsub.f32 1.5, %v2944
        %v2946 = vmul.f32 %v2941, %v2945
        %vm2947 = vweird.f32 %v2924
        %vm2948 = vweird.f32 %v2941
        %vm2949 = vmor %vm2947, %vm2948
        %v2950 = vsel %vm2949, %v2941, %v2946
        %v2951 = vrsqrt.pop %v2925
        %v2952 = vmul.f32 %v2951, %v2925
        %v2953 = vmul.f32 %v2952, %v2951
        %v2954 = vmul.f32 0.5, %v2953
        %v2955 = vsub.f32 1.5, %v2954
        %v2956 = vmul.f32 %v2951, %v2955
        %vm2957 = vweird.f32 %v2925
        %vm2958 = vweird.f32 %v2951
        %vm2959 = vmor %vm2957, %vm2958
        %v2960 = vsel %vm2959, %v2951, %v2956
        %v2961 = vrsqrt.pop %v2926
        %v2962 = vmul.f32 %v2961, %v2926
        %v2963 = vmul.f32 %v2962, %v2961
        %v2964 = vmul.f32 0.5, %v2963
        %v2965 = vsub.f32 1.5, %v2964
        %v2966 = vmul.f32 %v2961, %v2965
        %vm2967 = vweird.f32 %v2926
        %vm2968 = vweird.f32 %v2961
        %vm2969 = vmor %vm2967, %vm2968
        %v2970 = vsel %vm2969, %v2961, %v2966
        %v2971 = vrsqrt.pop %v2927
        %v2972 = vmul.f32 %v2971, %v2927
        %v2973 = vmul.f32 %v2972, %v2971
        %v2974 = vmul.f32 0.5, %v2973
        %v2975 = vsub.f32 1.5, %v2974
        %v2976 = vmul.f32 %v2971, %v2975
        %vm2977 = vweird.f32 %v2927
        %vm2978 = vweird.f32 %v2971
        %vm2979 = vmor %vm2977, %vm2978
        %v2980 = vsel %vm2979, %v2971, %v2976
        %v2981 = vrsqrt.pop %v2928
        %v2982 = vmul.f32 %v2981, %v2928
        %v2983 = vmul.f32 %v2982, %v2981
        %v2984 = vmul.f32 0.5, %v2983
        %v2985 = vsub.f32 1.5, %v2984
        %v2986 = vmul.f32 %v2981, %v2985
        %vm2987 = vweird.f32 %v2928
        %vm2988 = vweird.f32 %v2981
        %vm2989 = vmor %vm2987, %vm2988
        %v2990 = vsel %vm2989, %v2981, %v2986
        %v2991 = vrsqrt.pop %v2929
        %v2992 = vmul.f32 %v2991, %v2929
        %v2993 = vmul.f32 %v2992, %v2991
        %v2994 = vmul.f32 0.5, %v2993
        %v2995 = vsub.f32 1.5, %v2994
        %v2996 = vmul.f32 %v2991, %v2995
        %vm2997 = vweird.f32 %v2929
        %vm2998 = vweird.f32 %v2991
        %vm2999 = vmor %vm2997, %vm2998
        %v3000 = vsel %vm2999, %v2991, %v2996
        %v3001 = vrsqrt.pop %v2930
        %v3002 = vmul.f32 %v3001, %v2930
        %v3003 = vmul.f32 %v3002, %v3001
        %v3004 = vmul.f32 0.5, %v3003
        %v3005 = vsub.f32 1.5, %v3004
        %v3006 = vmul.f32 %v3001, %v3005
        %vm3007 = vweird.f32 %v2930
        %vm3008 = vweird.f32 %v3001
        %vm3009 = vmor %vm3007, %vm3008
        %v3010 = vsel %vm3009, %v3001, %v3006
        %v3011 = vmul.f32 %v2656, %v2940
        %v3012 = vmul.f32 %v2658, %v2950
        %v3013 = vmul.f32 %v2677, %v2960
        %v3014 = vmul.f32 %v2679, %v2970
        %v3015 = vmul.f32 %v2683, %v2980
        %v3016 = vmul.f32 %v2685, %v2990
        %v3017 = vmul.f32 %v2689, %v3000
        %v3018 = vmul.f32 %v2691, %v3010
        %s3019 = scalar_lea.vmem %s8, 8
        %v3020 = vld [vmem:[%s3019] sm:$0x1]
        %v3021 = vld [vmem:[%s3019 + $0x1] sm:$0x1]
        %v3022 = vld [vmem:[%s3019 + $0x2] sm:$0x1]
        %v3023 = vld [vmem:[%s3019 + $0x3] sm:$0x1]
        %v3028 = vperm.slane %v3020, 0
        %v3029 = vperm.slane %v3021, 0
        %v3030 = vperm.slane %v3022, 0
        %v3031 = vperm.slane %v3023, 0
        %3032 = vrot.lane.b32.xlu0 %v3028, 64
        %v3033 = vpop.permute.xlu0 %3032
        %3034 = vrot.lane.b32.xlu0 %v3029, 64
        %v3035 = vpop.permute.xlu0 %3034
        %3036 = vrot.lane.b32.xlu0 %v3030, 64
        %v3037 = vpop.permute.xlu0 %3036
        %3038 = vrot.lane.b32.xlu0 %v3031, 64
        %v3039 = vpop.permute.xlu0 %3038
        %v3044 = vmul.f32 %v3011, %v3033
        %v3045 = vmul.f32 %v3012, %v3033
        %v3046 = vmul.f32 %v3013, %v3035
        %v3047 = vmul.f32 %v3014, %v3035
        %v3048 = vmul.f32 %v3015, %v3037
        %v3049 = vmul.f32 %v3016, %v3037
        %v3050 = vmul.f32 %v3017, %v3039
        %v3051 = vmul.f32 %v3018, %v3039
        %v3052 = vpack.c.bf16 %v2859, %v2859
        %v3053 = vpack.c.bf16 %v2860, %v2860
        %v3054 = vpack.c.bf16 %v2861, %v2861
        %v3055 = vpack.c.bf16 %v2862, %v2862
        %v3056 = vpack.c.bf16 %v2863, %v2863
        %v3057 = vpack.c.bf16 %v2864, %v2864
        %v3058 = vpack.c.bf16 %v2865, %v2865
        %v3059 = vpack.c.bf16 %v2866, %v2866
        %v3060 = vpack.c.bf16 %v3044, %v3044
        %v3061 = vpack.c.bf16 %v3045, %v3045
        %v3062 = vpack.c.bf16 %v3046, %v3046
        %v3063 = vpack.c.bf16 %v3047, %v3047
        %v3064 = vpack.c.bf16 %v3048, %v3048
        %v3065 = vpack.c.bf16 %v3049, %v3049
        %v3066 = vpack.c.bf16 %v3050, %v3050
        %v3067 = vpack.c.bf16 %v3051, %v3051
        %v3070 = vunpack.c.l.b16 %v3052
        %v3071 = vunpack.c.l.b16 %v3053
        %v3072 = vpack.c.b16 %v3071, %v3070
        %v3075 = vunpack.c.l.b16 %v3060
        %v3076 = vunpack.c.l.b16 %v3061
        %v3077 = vpack.c.b16 %v3076, %v3075
        %3078 = vrot.lane.b32.xlu0 %v3077, 64
        %v3079 = vpop.permute.xlu0 %3078
        %v3081 = vsel %vm938, %v3072, 0
        %v3084 = vsel %vm938, %v3079, 0
        %3086 = vmatpush.bf16.xpose.msra.mxu0 0
        %3087 = vmatpush.bf16.xpose.msra.mxu0 0
        %3088 = vmatpush.bf16.xpose.msra.mxu0 0
        %3089 = vmatpush.bf16.xpose.msra.mxu0 0
        %3090 = vmatpush.bf16.xpose.msra.mxu0 0
        %3091 = vmatpush.bf16.xpose.msra.mxu0 0
        %3092 = vmatpush.bf16.xpose.msra.mxu0 0
        %3093 = vmatpush.bf16.xpose.msra.mxu0 %v3084
        %3094 = vmatmul.bf16.gmra.mxu0 %v3081
        %v3095 = vpop.f32.mrf.mxu0
        %v3096 = vadd.f32 0.0, %v3095
        %v3097 = vpop.f32.mrf.mxu0
        %v3098 = vadd.f32 0.0, %v3097
        %3099 = vdwg.mxu0
        %v3102 = vunpack.c.l.b16 %v3054
        %v3103 = vunpack.c.l.b16 %v3055
        %v3104 = vpack.c.b16 %v3103, %v3102
        %v3107 = vunpack.c.l.b16 %v3062
        %v3108 = vunpack.c.l.b16 %v3063
        %v3109 = vpack.c.b16 %v3108, %v3107
        %3110 = vrot.lane.b32.xlu0 %v3109, 64
        %v3111 = vpop.permute.xlu0 %3110
        %v3113 = vsel %vm938, %v3104, 0
        %v3116 = vsel %vm938, %v3111, 0
        %3118 = vmatpush.bf16.xpose.msra.mxu0 0
        %3119 = vmatpush.bf16.xpose.msra.mxu0 0
        %3120 = vmatpush.bf16.xpose.msra.mxu0 0
        %3121 = vmatpush.bf16.xpose.msra.mxu0 0
        %3122 = vmatpush.bf16.xpose.msra.mxu0 0
        %3123 = vmatpush.bf16.xpose.msra.mxu0 0
        %3124 = vmatpush.bf16.xpose.msra.mxu0 0
        %3125 = vmatpush.bf16.xpose.msra.mxu0 %v3116
        %3126 = vmatmul.bf16.gmra.mxu0 %v3113
        %v3127 = vpop.f32.mrf.mxu0
        %v3128 = vadd.f32 0.0, %v3127
        %v3129 = vpop.f32.mrf.mxu0
        %v3130 = vadd.f32 0.0, %v3129
        %3131 = vdwg.mxu0
        %v3134 = vunpack.c.l.b16 %v3056
        %v3135 = vunpack.c.l.b16 %v3057
        %v3136 = vpack.c.b16 %v3135, %v3134
        %v3139 = vunpack.c.l.b16 %v3064
        %v3140 = vunpack.c.l.b16 %v3065
        %v3141 = vpack.c.b16 %v3140, %v3139
        %3142 = vrot.lane.b32.xlu0 %v3141, 64
        %v3143 = vpop.permute.xlu0 %3142
        %v3145 = vsel %vm938, %v3136, 0
        %v3148 = vsel %vm938, %v3143, 0
        %3150 = vmatpush.bf16.xpose.msra.mxu0 0
        %3151 = vmatpush.bf16.xpose.msra.mxu0 0
        %3152 = vmatpush.bf16.xpose.msra.mxu0 0
        %3153 = vmatpush.bf16.xpose.msra.mxu0 0
        %3154 = vmatpush.bf16.xpose.msra.mxu0 0
        %3155 = vmatpush.bf16.xpose.msra.mxu0 0
        %3156 = vmatpush.bf16.xpose.msra.mxu0 0
        %3157 = vmatpush.bf16.xpose.msra.mxu0 %v3148
        %3158 = vmatmul.bf16.gmra.mxu0 %v3145
        %v3159 = vpop.f32.mrf.mxu0
        %v3160 = vadd.f32 0.0, %v3159
        %v3161 = vpop.f32.mrf.mxu0
        %v3162 = vadd.f32 0.0, %v3161
        %3163 = vdwg.mxu0
        %v3166 = vunpack.c.l.b16 %v3058
        %v3167 = vunpack.c.l.b16 %v3059
        %v3168 = vpack.c.b16 %v3167, %v3166
        %v3171 = vunpack.c.l.b16 %v3066
        %v3172 = vunpack.c.l.b16 %v3067
        %v3173 = vpack.c.b16 %v3172, %v3171
        %3174 = vrot.lane.b32.xlu0 %v3173, 64
        %v3175 = vpop.permute.xlu0 %3174
        %v3177 = vsel %vm938, %v3168, 0
        %v3180 = vsel %vm938, %v3175, 0
        %3182 = vmatpush.bf16.xpose.msra.mxu0 0
        %3183 = vmatpush.bf16.xpose.msra.mxu0 0
        %3184 = vmatpush.bf16.xpose.msra.mxu0 0
        %3185 = vmatpush.bf16.xpose.msra.mxu0 0
        %3186 = vmatpush.bf16.xpose.msra.mxu0 0
        %3187 = vmatpush.bf16.xpose.msra.mxu0 0
        %3188 = vmatpush.bf16.xpose.msra.mxu0 0
        %3189 = vmatpush.bf16.xpose.msra.mxu0 %v3180
        %3190 = vmatmul.bf16.gmra.mxu0 %v3177
        %v3191 = vpop.f32.mrf.mxu0
        %v3192 = vadd.f32 0.0, %v3191
        %v3193 = vpop.f32.mrf.mxu0
        %v3194 = vadd.f32 0.0, %v3193
        %3195 = vdwg.mxu0
        %v3196 = vmul.f32 %v3096, 0.25
        %v3197 = vmul.f32 %v3098, 0.25
        %v3198 = vmul.f32 %v3128, 0.25
        %v3199 = vmul.f32 %v3130, 0.25
        %v3200 = vmul.f32 %v3160, 0.25
        %v3201 = vmul.f32 %v3162, 0.25
        %v3202 = vmul.f32 %v3192, 0.25
        %v3203 = vmul.f32 %v3194, 0.25
        %v3204 = vadd.f32 %v3196, %v744
        %v3205 = vadd.f32 %v3197, %v745
        %v3206 = vadd.f32 %v3198, %v744
        %v3207 = vadd.f32 %v3199, %v745
        %v3208 = vadd.f32 %v3200, %v744
        %v3209 = vadd.f32 %v3201, %v745
        %v3210 = vadd.f32 %v3202, %v744
        %v3211 = vadd.f32 %v3203, %v745
        %v3212 = vsel %vm938, %v3204, -inf
        %3213 = vmax.xlane.f32.xlu0 %v3212
        %v3214 = vpop.xlane.xlu0 %3213
        %v3215 = vsel %vm938, %v3205, -inf
        %3216 = vmax.xlane.f32.xlu0 %v3215
        %v3217 = vpop.xlane.xlu0 %3216
        %v3218 = vsel %vm938, %v3206, -inf
        %3219 = vmax.xlane.f32.xlu0 %v3218
        %v3220 = vpop.xlane.xlu0 %3219
        %v3221 = vsel %vm938, %v3207, -inf
        %3222 = vmax.xlane.f32.xlu0 %v3221
        %v3223 = vpop.xlane.xlu0 %3222
        %v3224 = vsel %vm938, %v3208, -inf
        %3225 = vmax.xlane.f32.xlu0 %v3224
        %v3226 = vpop.xlane.xlu0 %3225
        %v3227 = vsel %vm938, %v3209, -inf
        %3228 = vmax.xlane.f32.xlu0 %v3227
        %v3229 = vpop.xlane.xlu0 %3228
        %v3230 = vsel %vm938, %v3210, -inf
        %3231 = vmax.xlane.f32.xlu0 %v3230
        %v3232 = vpop.xlane.xlu0 %3231
        %v3233 = vsel %vm938, %v3211, -inf
        %3234 = vmax.xlane.f32.xlu0 %v3233
        %v3235 = vpop.xlane.xlu0 %3234
        %v3236 = vsub.f32 %v3204, %v3214
        %v3237 = vsub.f32 %v3205, %v3217
        %v3238 = vsub.f32 %v3206, %v3220
        %v3239 = vsub.f32 %v3207, %v3223
        %v3240 = vsub.f32 %v3208, %v3226
        %v3241 = vsub.f32 %v3209, %v3229
        %v3242 = vsub.f32 %v3210, %v3232
        %v3243 = vsub.f32 %v3211, %v3235
        %v3244 = vmul.f32 %v3236, 1.442695
        %v3245 = vpow.pop %v3244
        %v3246 = vmul.f32 %v3237, 1.442695
        %v3247 = vpow.pop %v3246
        %v3248 = vmul.f32 %v3238, 1.442695
        %v3249 = vpow.pop %v3248
        %v3250 = vmul.f32 %v3239, 1.442695
        %v3251 = vpow.pop %v3250
        %v3252 = vmul.f32 %v3240, 1.442695
        %v3253 = vpow.pop %v3252
        %v3254 = vmul.f32 %v3241, 1.442695
        %v3255 = vpow.pop %v3254
        %v3256 = vmul.f32 %v3242, 1.442695
        %v3257 = vpow.pop %v3256
        %v3258 = vmul.f32 %v3243, 1.442695
        %v3259 = vpow.pop %v3258
        %v3260 = vsel %vm938, %v3245, 0.0
        %3261 = vadd.xlane.f32.xlu0 %v3260
        %v3262 = vpop.xlane.xlu0 %3261
        %v3263 = vsel %vm938, %v3247, 0.0
        %3264 = vadd.xlane.f32.xlu0 %v3263
        %v3265 = vpop.xlane.xlu0 %3264
        %v3266 = vsel %vm938, %v3249, 0.0
        %3267 = vadd.xlane.f32.xlu0 %v3266
        %v3268 = vpop.xlane.xlu0 %3267
        %v3269 = vsel %vm938, %v3251, 0.0
        %3270 = vadd.xlane.f32.xlu0 %v3269
        %v3271 = vpop.xlane.xlu0 %3270
        %v3272 = vsel %vm938, %v3253, 0.0
        %3273 = vadd.xlane.f32.xlu0 %v3272
        %v3274 = vpop.xlane.xlu0 %3273
        %v3275 = vsel %vm938, %v3255, 0.0
        %3276 = vadd.xlane.f32.xlu0 %v3275
        %v3277 = vpop.xlane.xlu0 %3276
        %v3278 = vsel %vm938, %v3257, 0.0
        %3279 = vadd.xlane.f32.xlu0 %v3278
        %v3280 = vpop.xlane.xlu0 %3279
        %v3281 = vsel %vm938, %v3259, 0.0
        %3282 = vadd.xlane.f32.xlu0 %v3281
        %v3283 = vpop.xlane.xlu0 %3282
        %v3284 = vrcp.pop %v3262
        %v3285 = vrcp.pop %v3265
        %v3286 = vrcp.pop %v3268
        %v3287 = vrcp.pop %v3271
        %v3288 = vrcp.pop %v3274
        %v3289 = vrcp.pop %v3277
        %v3290 = vrcp.pop %v3280
        %v3291 = vrcp.pop %v3283
        %v3292 = vmul.f32 %v3245, %v3284
        %v3293 = vmul.f32 %v3247, %v3285
        %v3294 = vmul.f32 %v3249, %v3286
        %v3295 = vmul.f32 %v3251, %v3287
        %v3296 = vmul.f32 %v3253, %v3288
        %v3297 = vmul.f32 %v3255, %v3289
        %v3298 = vmul.f32 %v3257, %v3290
        %v3299 = vmul.f32 %v3259, %v3291
        %v3300 = vpack.c.bf16 %v3292, %v3292
        %v3301 = vpack.c.bf16 %v3293, %v3293
        %v3302 = vpack.c.bf16 %v3294, %v3294
        %v3303 = vpack.c.bf16 %v3295, %v3295
        %v3304 = vpack.c.bf16 %v3296, %v3296
        %v3305 = vpack.c.bf16 %v3297, %v3297
        %v3306 = vpack.c.bf16 %v3298, %v3298
        %v3307 = vpack.c.bf16 %v3299, %v3299
        %v3308 = vpack.c.bf16 %v2670, %v2670
        %v3309 = vpack.c.bf16 %v2672, %v2672
        %v3310 = vpack.c.bf16 %v2697, %v2697
        %v3311 = vpack.c.bf16 %v2699, %v2699
        %v3312 = vpack.c.bf16 %v2703, %v2703
        %v3313 = vpack.c.bf16 %v2705, %v2705
        %v3314 = vpack.c.bf16 %v2709, %v2709
        %v3315 = vpack.c.bf16 %v2711, %v2711
        %v3318 = vunpack.c.l.b16 %v3300
        %v3319 = vunpack.c.l.b16 %v3301
        %v3320 = vpack.c.b16 %v3319, %v3318
        %v3323 = vunpack.c.l.b16 %v3308
        %v3324 = vunpack.c.l.b16 %v3309
        %v3325 = vpack.c.b16 %v3324, %v3323
        %v3328 = vsel %vm938, %v3320, 0
        %3330 = vmatpush.bf16.msra.mxu0 0
        %3331 = vmatpush.bf16.msra.mxu0 0
        %3332 = vmatpush.bf16.msra.mxu0 0
        %3333 = vmatpush.bf16.msra.mxu0 0
        %3334 = vmatpush.bf16.msra.mxu0 0
        %3335 = vmatpush.bf16.msra.mxu0 0
        %3336 = vmatpush.bf16.msra.mxu0 0
        %3337 = vmatpush.bf16.msra.mxu0 %v3325
        %3338 = vmatmul.bf16.gmra.mxu0 %v3328
        %v3339 = vpop.f32.mrf.mxu0
        %v3340 = vadd.f32 0.0, %v3339
        %v3341 = vpop.f32.mrf.mxu0
        %v3342 = vadd.f32 0.0, %v3341
        %3343 = vdwg.mxu0
        %v3346 = vunpack.c.l.b16 %v3302
        %v3347 = vunpack.c.l.b16 %v3303
        %v3348 = vpack.c.b16 %v3347, %v3346
        %v3351 = vunpack.c.l.b16 %v3310
        %v3352 = vunpack.c.l.b16 %v3311
        %v3353 = vpack.c.b16 %v3352, %v3351
        %v3356 = vsel %vm938, %v3348, 0
        %3358 = vmatpush.bf16.msra.mxu0 0
        %3359 = vmatpush.bf16.msra.mxu0 0
        %3360 = vmatpush.bf16.msra.mxu0 0
        %3361 = vmatpush.bf16.msra.mxu0 0
        %3362 = vmatpush.bf16.msra.mxu0 0
        %3363 = vmatpush.bf16.msra.mxu0 0
        %3364 = vmatpush.bf16.msra.mxu0 0
        %3365 = vmatpush.bf16.msra.mxu0 %v3353
        %3366 = vmatmul.bf16.gmra.mxu0 %v3356
        %v3367 = vpop.f32.mrf.mxu0
        %v3368 = vadd.f32 0.0, %v3367
        %v3369 = vpop.f32.mrf.mxu0
        %v3370 = vadd.f32 0.0, %v3369
        %3371 = vdwg.mxu0
        %v3374 = vunpack.c.l.b16 %v3304
        %v3375 = vunpack.c.l.b16 %v3305
        %v3376 = vpack.c.b16 %v3375, %v3374
        %v3379 = vunpack.c.l.b16 %v3312
        %v3380 = vunpack.c.l.b16 %v3313
        %v3381 = vpack.c.b16 %v3380, %v3379
        %v3384 = vsel %vm938, %v3376, 0
        %3386 = vmatpush.bf16.msra.mxu0 0
        %3387 = vmatpush.bf16.msra.mxu0 0
        %3388 = vmatpush.bf16.msra.mxu0 0
        %3389 = vmatpush.bf16.msra.mxu0 0
        %3390 = vmatpush.bf16.msra.mxu0 0
        %3391 = vmatpush.bf16.msra.mxu0 0
        %3392 = vmatpush.bf16.msra.mxu0 0
        %3393 = vmatpush.bf16.msra.mxu0 %v3381
        %3394 = vmatmul.bf16.gmra.mxu0 %v3384
        %v3395 = vpop.f32.mrf.mxu0
        %v3396 = vadd.f32 0.0, %v3395
        %v3397 = vpop.f32.mrf.mxu0
        %v3398 = vadd.f32 0.0, %v3397
        %3399 = vdwg.mxu0
        %v3402 = vunpack.c.l.b16 %v3306
        %v3403 = vunpack.c.l.b16 %v3307
        %v3404 = vpack.c.b16 %v3403, %v3402
        %v3407 = vunpack.c.l.b16 %v3314
        %v3408 = vunpack.c.l.b16 %v3315
        %v3409 = vpack.c.b16 %v3408, %v3407
        %v3412 = vsel %vm938, %v3404, 0
        %3414 = vmatpush.bf16.msra.mxu0 0
        %3415 = vmatpush.bf16.msra.mxu0 0
        %3416 = vmatpush.bf16.msra.mxu0 0
        %3417 = vmatpush.bf16.msra.mxu0 0
        %3418 = vmatpush.bf16.msra.mxu0 0
        %3419 = vmatpush.bf16.msra.mxu0 0
        %3420 = vmatpush.bf16.msra.mxu0 0
        %3421 = vmatpush.bf16.msra.mxu0 %v3409
        %3422 = vmatmul.bf16.gmra.mxu0 %v3412
        %v3423 = vpop.f32.mrf.mxu0
        %v3424 = vadd.f32 0.0, %v3423
        %v3425 = vpop.f32.mrf.mxu0
        %v3426 = vadd.f32 0.0, %v3425
        %3427 = vdwg.mxu0
        %3430 = vrot.lane.b32.xlu0 %v3368, 16
        %v3431 = vpop.permute.xlu0 %3430
        %3432 = vrot.lane.b32.xlu0 %v3370, 16
        %v3433 = vpop.permute.xlu0 %3432
        %3438 = vrot.lane.b32.xlu0 %v3396, 32
        %v3439 = vpop.permute.xlu0 %3438
        %3440 = vrot.lane.b32.xlu0 %v3398, 32
        %v3441 = vpop.permute.xlu0 %3440
        %3446 = vrot.lane.b32.xlu0 %v3424, 48
        %v3447 = vpop.permute.xlu0 %3446
        %3448 = vrot.lane.b32.xlu0 %v3426, 48
        %v3449 = vpop.permute.xlu0 %3448
        %v3452 = vsel %vm938, %v3340, %v3431
        %v3453 = vsel %vm938, %v3342, %v3433
        %v3454 = vsel %vm772, %v3452, %v3439
        %v3455 = vsel %vm772, %v3453, %v3441
        %v3456 = vsel %vm1671, %v3454, %v3447
        %v3457 = vsel %vm1671, %v3455, %v3449
        %v3458 = vpack.c.bf16 %v3457, %v3456
        %s3459 = scalar_lea.vmem %s6, 64
        %v3460 = vld [vmem:[%s3459] sm:$0xf]
        %v3461 = vld [vmem:[%s3459 + $0x4] sm:$0xf]
        %v3462 = vld [vmem:[%s3459 + $0x8] sm:$0xf]
        %v3463 = vld [vmem:[%s3459 + $0xc] sm:$0xf]
        %v3464 = vld [vmem:[%s3459 + $0x10] sm:$0xf]
        %v3465 = vld [vmem:[%s3459 + $0x14] sm:$0xf]
        %v3466 = vld [vmem:[%s3459 + $0x18] sm:$0xf]
        %v3467 = vld [vmem:[%s3459 + $0x1c] sm:$0xf]
        %v3476 = vunpack.c.l.b16 %v3460
        %v3477 = vunpack.c.l.b16 %v3461
        %v3478 = vunpack.c.l.b16 %v3462
        %v3479 = vunpack.c.l.b16 %v3463
        %v3480 = vunpack.c.l.b16 %v3464
        %v3481 = vunpack.c.l.b16 %v3465
        %v3482 = vunpack.c.l.b16 %v3466
        %v3483 = vunpack.c.l.b16 %v3467
        %v3484 = vpack.c.b16 %v3477, %v3476
        %v3485 = vpack.c.b16 %v3479, %v3478
        %v3486 = vpack.c.b16 %v3481, %v3480
        %v3487 = vpack.c.b16 %v3483, %v3482
        %v3493 = vsel %vm1707, %v3458, 0
        %3495 = vmatpush.bf16.msra.mxu0 0
        %3496 = vmatpush.bf16.msra.mxu0 0
        %3497 = vmatpush.bf16.msra.mxu0 0
        %3498 = vmatpush.bf16.msra.mxu0 0
        %3499 = vmatpush.bf16.msra.mxu0 %v3487
        %3500 = vmatpush.bf16.msra.mxu0 %v3486
        %3501 = vmatpush.bf16.msra.mxu0 %v3485
        %3502 = vmatpush.bf16.msra.mxu0 %v3484
        %3503 = vmatmul.bf16.gmra.mxu0 %v3493
        %v3504 = vpop.f32.mrf.mxu0
        %v3505 = vadd.f32 0.0, %v3504
        %v3506 = vpop.f32.mrf.mxu0
        %v3507 = vadd.f32 0.0, %v3506
        %3508 = vdwg.mxu0
        %v3509 = vld [vmem:[%s9] sm:$0x1]
        %v3510 = vld [vmem:[%s10] sm:$0x1]
        %v3511 = vsel %vm772, %v3505, 0.0
        %3512 = vadd.xlane.f32.xlu0 %v3511
        %v3513 = vpop.xlane.xlu0 %3512
        %v3514 = vsel %vm772, %v3507, 0.0
        %3515 = vadd.xlane.f32.xlu0 %v3514
        %v3516 = vpop.xlane.xlu0 %3515
        %v3517 = vmul.f32 %v3513, %v785
        %v3518 = vmul.f32 %v3516, %v785
        %v3519 = vsub.f32 %v3505, %v3517
        %v3520 = vsub.f32 %v3507, %v3518
        %v3521 = vmul.f32 %v3519, %v3519
        %v3522 = vmul.f32 %v3520, %v3520
        %v3523 = vsel %vm772, %v3521, 0.0
        %3524 = vadd.xlane.f32.xlu0 %v3523
        %v3525 = vpop.xlane.xlu0 %3524
        %v3526 = vsel %vm772, %v3522, 0.0
        %3527 = vadd.xlane.f32.xlu0 %v3526
        %v3528 = vpop.xlane.xlu0 %3527
        %v3529 = vmul.f32 %v3525, %v785
        %v3530 = vmul.f32 %v3528, %v785
        %v3531 = vadd.f32 %v3529, 1e-05
        %v3532 = vadd.f32 %v3530, 1e-05
        %v3533 = vrsqrt.pop %v3531
        %v3534 = vmul.f32 %v3533, %v3531
        %v3535 = vmul.f32 %v3534, %v3533
        %v3536 = vmul.f32 0.5, %v3535
        %v3537 = vsub.f32 1.5, %v3536
        %v3538 = vmul.f32 %v3533, %v3537
        %vm3539 = vweird.f32 %v3531
        %vm3540 = vweird.f32 %v3533
        %vm3541 = vmor %vm3539, %vm3540
        %v3542 = vsel %vm3541, %v3533, %v3538
        %v3543 = vrsqrt.pop %v3532
        %v3544 = vmul.f32 %v3543, %v3532
        %v3545 = vmul.f32 %v3544, %v3543
        %v3546 = vmul.f32 0.5, %v3545
        %v3547 = vsub.f32 1.5, %v3546
        %v3548 = vmul.f32 %v3543, %v3547
        %vm3549 = vweird.f32 %v3532
        %vm3550 = vweird.f32 %v3543
        %vm3551 = vmor %vm3549, %vm3550
        %v3552 = vsel %vm3551, %v3543, %v3548
        %v3553 = vmul.f32 %v3519, %v3542
        %v3554 = vmul.f32 %v3520, %v3552
        %v3556 = vperm.slane %v3509, 0
        %v3558 = vmul.f32 %v3553, %v3556
        %v3559 = vmul.f32 %v3554, %v3556
        %v3561 = vperm.slane %v3510, 0
        %v3563 = vadd.f32 %v3558, %v3561
        %v3564 = vadd.f32 %v3559, %v3561
        %v3565 = vld [vmem:[%s11] sm:$0x1]
        %v3566 = vld [vmem:[%s12] sm:$0x1]
        %v3568 = vperm.slane %v3565, 0
        %v3570 = vmul.f32 %v3553, %v3568
        %v3571 = vmul.f32 %v3554, %v3568
        %v3573 = vperm.slane %v3566, 0
        %v3575 = vadd.f32 %v3570, %v3573
        %v3576 = vadd.f32 %v3571, %v3573
        %v3577 = vpack.c.bf16 %v3564, %v3563
        %v3578 = vpack.c.bf16 %v3576, %v3575
        %v3579 = vld [vmem:[%s13] sm:$0xf]
        %v3580 = vld [vmem:[%s13 + $0x4] sm:$0xf]
        %v3581 = vld [vmem:[%s13 + $0x8] sm:$0xf]
        %v3582 = vld [vmem:[%s13 + $0xc] sm:$0xf]
        %v3587 = vunpack.c.l.b16 %v3579
        %v3588 = vunpack.c.l.b16 %v3580
        %v3589 = vunpack.c.l.b16 %v3581
        %v3590 = vunpack.c.l.b16 %v3582
        %v3591 = vpack.c.b16 %v3588, %v3587
        %v3592 = vpack.c.b16 %v3590, %v3589
        %v3596 = vsel %vm772, %v3577, 0
        %3598 = vmatpush.bf16.msra.mxu0 0
        %3599 = vmatpush.bf16.msra.mxu0 0
        %3600 = vmatpush.bf16.msra.mxu0 0
        %3601 = vmatpush.bf16.msra.mxu0 0
        %3602 = vmatpush.bf16.msra.mxu0 0
        %3603 = vmatpush.bf16.msra.mxu0 0
        %3604 = vmatpush.bf16.msra.mxu0 %v3592
        %3605 = vmatpush.bf16.msra.mxu0 %v3591
        %3606 = vmatmul.bf16.gmra.mxu0 %v3596
        %v3607 = vpop.f32.mrf.mxu0
        %v3608 = vadd.f32 0.0, %v3607
        %v3609 = vpop.f32.mrf.mxu0
        %v3610 = vadd.f32 0.0, %v3609
        %3611 = vdwg.mxu0
        %v3612 = vmul.f32 %v3608, 0.25
        %v3613 = vmul.f32 %v3610, 0.25
        %v3614 = vld [vmem:[%s14] sm:$0xf]
        %v3615 = vld [vmem:[%s14 + $0x4] sm:$0xf]
        %v3616 = vld [vmem:[%s14 + $0x8] sm:$0xf]
        %v3617 = vld [vmem:[%s14 + $0xc] sm:$0xf]
        %v3622 = vunpack.c.l.b16 %v3614
        %v3623 = vunpack.c.l.b16 %v3615
        %v3624 = vunpack.c.l.b16 %v3616
        %v3625 = vunpack.c.l.b16 %v3617
        %v3626 = vpack.c.b16 %v3623, %v3622
        %v3627 = vpack.c.b16 %v3625, %v3624
        %v3631 = vsel %vm772, %v3578, 0
        %3633 = vmatpush.bf16.msra.mxu0 0
        %3634 = vmatpush.bf16.msra.mxu0 0
        %3635 = vmatpush.bf16.msra.mxu0 0
        %3636 = vmatpush.bf16.msra.mxu0 0
        %3637 = vmatpush.bf16.msra.mxu0 0
        %3638 = vmatpush.bf16.msra.mxu0 0
        %3639 = vmatpush.bf16.msra.mxu0 %v3627
        %3640 = vmatpush.bf16.msra.mxu0 %v3626
        %3641 = vmatmul.bf16.gmra.mxu0 %v3631
        %v3642 = vpop.f32.mrf.mxu0
        %v3643 = vadd.f32 0.0, %v3642
        %v3644 = vpop.f32.mrf.mxu0
        %v3645 = vadd.f32 0.0, %v3644
        %3646 = vdwg.mxu0
        %v3647 = vpack.c.bf16 %v3643, %v3643
        %v3648 = vpack.c.bf16 %v3645, %v3645
        %3651 = vrot.lane.b32.xlu0 %v3612, 112
        %v3652 = vpop.permute.xlu0 %3651
        %3653 = vrot.lane.b32.xlu0 %v3613, 112
        %v3654 = vpop.permute.xlu0 %3653
        %3657 = vrot.lane.b32.xlu0 %v3612, 96
        %v3658 = vpop.permute.xlu0 %3657
        %3659 = vrot.lane.b32.xlu0 %v3613, 96
        %v3660 = vpop.permute.xlu0 %3659
        %3663 = vrot.lane.b32.xlu0 %v3612, 80
        %v3664 = vpop.permute.xlu0 %3663
        %3665 = vrot.lane.b32.xlu0 %v3613, 80
        %v3666 = vpop.permute.xlu0 %3665
        %v3669 = vpack.c.bf16 %v3612, %v3612
        %v3670 = vpack.c.bf16 %v3613, %v3613
        %v3671 = vpack.c.bf16 %v3652, %v3652
        %v3672 = vpack.c.bf16 %v3654, %v3654
        %v3673 = vpack.c.bf16 %v3658, %v3658
        %v3674 = vpack.c.bf16 %v3660, %v3660
        %v3675 = vpack.c.bf16 %v3664, %v3664
        %v3676 = vpack.c.bf16 %v3666, %v3666
        %v3679 = vunpack.c.l.b16 %v3669
        %v3680 = vunpack.c.l.b16 %v3670
        %v3681 = vpack.c.b16 %v3680, %v3679
        %v3684 = vunpack.c.l.b16 %v3647
        %v3685 = vunpack.c.l.b16 %v3648
        %v3686 = vpack.c.b16 %v3685, %v3684
        %v3688 = vsel %vm938, %v3681, 0
        %v3691 = vsel %vm938, %v3686, 0
        %3693 = vmatpush.bf16.xpose.msra.mxu0 0
        %3694 = vmatpush.bf16.xpose.msra.mxu0 0
        %3695 = vmatpush.bf16.xpose.msra.mxu0 0
        %3696 = vmatpush.bf16.xpose.msra.mxu0 0
        %3697 = vmatpush.bf16.xpose.msra.mxu0 0
        %3698 = vmatpush.bf16.xpose.msra.mxu0 0
        %3699 = vmatpush.bf16.xpose.msra.mxu0 0
        %3700 = vmatpush.bf16.xpose.msra.mxu0 %v3691
        %3701 = vmatmul.bf16.gmra.mxu0 %v3688
        %v3702 = vpop.f32.mrf.mxu0
        %v3703 = vadd.f32 0.0, %v3702
        %v3704 = vpop.f32.mrf.mxu0
        %v3705 = vadd.f32 0.0, %v3704
        %3706 = vdwg.mxu0
        %v3709 = vunpack.c.l.b16 %v3671
        %v3710 = vunpack.c.l.b16 %v3672
        %v3711 = vpack.c.b16 %v3710, %v3709
        %v3713 = vsel %vm938, %v3711, 0
        %3715 = vmatpush.bf16.xpose.msra.mxu0 0
        %3716 = vmatpush.bf16.xpose.msra.mxu0 0
        %3717 = vmatpush.bf16.xpose.msra.mxu0 0
        %3718 = vmatpush.bf16.xpose.msra.mxu0 0
        %3719 = vmatpush.bf16.xpose.msra.mxu0 0
        %3720 = vmatpush.bf16.xpose.msra.mxu0 0
        %3721 = vmatpush.bf16.xpose.msra.mxu0 0
        %3722 = vmatpush.bf16.xpose.msra.mxu0 %v3691
        %3723 = vmatmul.bf16.gmra.mxu0 %v3713
        %v3724 = vpop.f32.mrf.mxu0
        %v3725 = vadd.f32 0.0, %v3724
        %v3726 = vpop.f32.mrf.mxu0
        %v3727 = vadd.f32 0.0, %v3726
        %3728 = vdwg.mxu0
        %v3731 = vunpack.c.l.b16 %v3673
        %v3732 = vunpack.c.l.b16 %v3674
        %v3733 = vpack.c.b16 %v3732, %v3731
        %v3735 = vsel %vm938, %v3733, 0
        %3737 = vmatpush.bf16.xpose.msra.mxu0 0
        %3738 = vmatpush.bf16.xpose.msra.mxu0 0
        %3739 = vmatpush.bf16.xpose.msra.mxu0 0
        %3740 = vmatpush.bf16.xpose.msra.mxu0 0
        %3741 = vmatpush.bf16.xpose.msra.mxu0 0
        %3742 = vmatpush.bf16.xpose.msra.mxu0 0
        %3743 = vmatpush.bf16.xpose.msra.mxu0 0
        %3744 = vmatpush.bf16.xpose.msra.mxu0 %v3691
        %3745 = vmatmul.bf16.gmra.mxu0 %v3735
        %v3746 = vpop.f32.mrf.mxu0
        %v3747 = vadd.f32 0.0, %v3746
        %v3748 = vpop.f32.mrf.mxu0
        %v3749 = vadd.f32 0.0, %v3748
        %3750 = vdwg.mxu0
        %v3753 = vunpack.c.l.b16 %v3675
        %v3754 = vunpack.c.l.b16 %v3676
        %v3755 = vpack.c.b16 %v3754, %v3753
        %v3757 = vsel %vm938, %v3755, 0
        %3759 = vmatpush.bf16.xpose.msra.mxu0 0
        %3760 = vmatpush.bf16.xpose.msra.mxu0 0
        %3761 = vmatpush.bf16.xpose.msra.mxu0 0
        %3762 = vmatpush.bf16.xpose.msra.mxu0 0
        %3763 = vmatpush.bf16.xpose.msra.mxu0 0
        %3764 = vmatpush.bf16.xpose.msra.mxu0 0
        %3765 = vmatpush.bf16.xpose.msra.mxu0 0
        %3766 = vmatpush.bf16.xpose.msra.mxu0 %v3691
        %3767 = vmatmul.bf16.gmra.mxu0 %v3757
        %v3768 = vpop.f32.mrf.mxu0
        %v3769 = vadd.f32 0.0, %v3768
        %v3770 = vpop.f32.mrf.mxu0
        %v3771 = vadd.f32 0.0, %v3770
        %3772 = vdwg.mxu0
        %v3773 = vsel %vm938, %v3703, -inf
        %3774 = vmax.xlane.f32.xlu0 %v3773
        %v3775 = vpop.xlane.xlu0 %3774
        %v3776 = vsel %vm938, %v3705, -inf
        %3777 = vmax.xlane.f32.xlu0 %v3776
        %v3778 = vpop.xlane.xlu0 %3777
        %v3779 = vsel %vm938, %v3725, -inf
        %3780 = vmax.xlane.f32.xlu0 %v3779
        %v3781 = vpop.xlane.xlu0 %3780
        %v3782 = vsel %vm938, %v3727, -inf
        %3783 = vmax.xlane.f32.xlu0 %v3782
        %v3784 = vpop.xlane.xlu0 %3783
        %v3785 = vsel %vm938, %v3747, -inf
        %3786 = vmax.xlane.f32.xlu0 %v3785
        %v3787 = vpop.xlane.xlu0 %3786
        %v3788 = vsel %vm938, %v3749, -inf
        %3789 = vmax.xlane.f32.xlu0 %v3788
        %v3790 = vpop.xlane.xlu0 %3789
        %v3791 = vsel %vm938, %v3769, -inf
        %3792 = vmax.xlane.f32.xlu0 %v3791
        %v3793 = vpop.xlane.xlu0 %3792
        %v3794 = vsel %vm938, %v3771, -inf
        %3795 = vmax.xlane.f32.xlu0 %v3794
        %v3796 = vpop.xlane.xlu0 %3795
        %v3797 = vsub.f32 %v3703, %v3775
        %v3798 = vsub.f32 %v3705, %v3778
        %v3799 = vsub.f32 %v3725, %v3781
        %v3800 = vsub.f32 %v3727, %v3784
        %v3801 = vsub.f32 %v3747, %v3787
        %v3802 = vsub.f32 %v3749, %v3790
        %v3803 = vsub.f32 %v3769, %v3793
        %v3804 = vsub.f32 %v3771, %v3796
        %v3805 = vmul.f32 %v3797, 1.442695
        %v3806 = vpow.pop %v3805
        %v3807 = vmul.f32 %v3798, 1.442695
        %v3808 = vpow.pop %v3807
        %v3809 = vmul.f32 %v3799, 1.442695
        %v3810 = vpow.pop %v3809
        %v3811 = vmul.f32 %v3800, 1.442695
        %v3812 = vpow.pop %v3811
        %v3813 = vmul.f32 %v3801, 1.442695
        %v3814 = vpow.pop %v3813
        %v3815 = vmul.f32 %v3802, 1.442695
        %v3816 = vpow.pop %v3815
        %v3817 = vmul.f32 %v3803, 1.442695
        %v3818 = vpow.pop %v3817
        %v3819 = vmul.f32 %v3804, 1.442695
        %v3820 = vpow.pop %v3819
        %v3821 = vsel %vm938, %v3806, 0.0
        %3822 = vadd.xlane.f32.xlu0 %v3821
        %v3823 = vpop.xlane.xlu0 %3822
        %v3824 = vsel %vm938, %v3808, 0.0
        %3825 = vadd.xlane.f32.xlu0 %v3824
        %v3826 = vpop.xlane.xlu0 %3825
        %v3827 = vsel %vm938, %v3810, 0.0
        %3828 = vadd.xlane.f32.xlu0 %v3827
        %v3829 = vpop.xlane.xlu0 %3828
        %v3830 = vsel %vm938, %v3812, 0.0
        %3831 = vadd.xlane.f32.xlu0 %v3830
        %v3832 = vpop.xlane.xlu0 %3831
        %v3833 = vsel %vm938, %v3814, 0.0
        %3834 = vadd.xlane.f32.xlu0 %v3833
        %v3835 = vpop.xlane.xlu0 %3834
        %v3836 = vsel %vm938, %v3816, 0.0
        %3837 = vadd.xlane.f32.xlu0 %v3836
        %v3838 = vpop.xlane.xlu0 %3837
        %v3839 = vsel %vm938, %v3818, 0.0
        %3840 = vadd.xlane.f32.xlu0 %v3839
        %v3841 = vpop.xlane.xlu0 %3840
        %v3842 = vsel %vm938, %v3820, 0.0
        %3843 = vadd.xlane.f32.xlu0 %v3842
        %v3844 = vpop.xlane.xlu0 %3843
        %v3845 = vrcp.pop %v3823
        %v3846 = vrcp.pop %v3826
        %v3847 = vrcp.pop %v3829
        %v3848 = vrcp.pop %v3832
        %v3849 = vrcp.pop %v3835
        %v3850 = vrcp.pop %v3838
        %v3851 = vrcp.pop %v3841
        %v3852 = vrcp.pop %v3844
        %v3853 = vmul.f32 %v3806, %v3845
        %v3854 = vmul.f32 %v3808, %v3846
        %v3855 = vmul.f32 %v3810, %v3847
        %v3856 = vmul.f32 %v3812, %v3848
        %v3857 = vmul.f32 %v3814, %v3849
        %v3858 = vmul.f32 %v3816, %v3850
        %v3859 = vmul.f32 %v3818, %v3851
        %v3860 = vmul.f32 %v3820, %v3852
        %v3861 = vpack.c.bf16 %v3853, %v3853
        %v3862 = vpack.c.bf16 %v3854, %v3854
        %v3863 = vpack.c.bf16 %v3855, %v3855
        %v3864 = vpack.c.bf16 %v3856, %v3856
        %v3865 = vpack.c.bf16 %v3857, %v3857
        %v3866 = vpack.c.bf16 %v3858, %v3858
        %v3867 = vpack.c.bf16 %v3859, %v3859
        %v3868 = vpack.c.bf16 %v3860, %v3860
        %v3871 = vunpack.c.l.b16 %v3861
        %v3872 = vunpack.c.l.b16 %v3862
        %v3873 = vpack.c.b16 %v3872, %v3871
        %3874 = vrot.lane.b32.xlu0 %v3686, 112
        %v3875 = vpop.permute.xlu0 %3874
        %v3878 = vsel %vm938, %v3873, 0
        %3880 = vmatpush.bf16.msra.mxu0 0
        %3881 = vmatpush.bf16.msra.mxu0 0
        %3882 = vmatpush.bf16.msra.mxu0 0
        %3883 = vmatpush.bf16.msra.mxu0 0
        %3884 = vmatpush.bf16.msra.mxu0 0
        %3885 = vmatpush.bf16.msra.mxu0 0
        %3886 = vmatpush.bf16.msra.mxu0 0
        %3887 = vmatpush.bf16.msra.mxu0 %v3875
        %3888 = vmatmul.bf16.gmra.mxu0 %v3878
        %v3889 = vpop.f32.mrf.mxu0
        %v3890 = vadd.f32 0.0, %v3889
        %v3891 = vpop.f32.mrf.mxu0
        %v3892 = vadd.f32 0.0, %v3891
        %3893 = vdwg.mxu0
        %v3896 = vunpack.c.l.b16 %v3863
        %v3897 = vunpack.c.l.b16 %v3864
        %v3898 = vpack.c.b16 %v3897, %v3896
        %v3900 = vsel %vm938, %v3898, 0
        %3902 = vmatpush.bf16.msra.mxu0 0
        %3903 = vmatpush.bf16.msra.mxu0 0
        %3904 = vmatpush.bf16.msra.mxu0 0
        %3905 = vmatpush.bf16.msra.mxu0 0
        %3906 = vmatpush.bf16.msra.mxu0 0
        %3907 = vmatpush.bf16.msra.mxu0 0
        %3908 = vmatpush.bf16.msra.mxu0 0
        %3909 = vmatpush.bf16.msra.mxu0 %v3875
        %3910 = vmatmul.bf16.gmra.mxu0 %v3900
        %v3911 = vpop.f32.mrf.mxu0
        %v3912 = vadd.f32 0.0, %v3911
        %v3913 = vpop.f32.mrf.mxu0
        %v3914 = vadd.f32 0.0, %v3913
        %3915 = vdwg.mxu0
        %v3918 = vunpack.c.l.b16 %v3865
        %v3919 = vunpack.c.l.b16 %v3866
        %v3920 = vpack.c.b16 %v3919, %v3918
        %v3922 = vsel %vm938, %v3920, 0
        %3924 = vmatpush.bf16.msra.mxu0 0
        %3925 = vmatpush.bf16.msra.mxu0 0
        %3926 = vmatpush.bf16.msra.mxu0 0
        %3927 = vmatpush.bf16.msra.mxu0 0
        %3928 = vmatpush.bf16.msra.mxu0 0
        %3929 = vmatpush.bf16.msra.mxu0 0
        %3930 = vmatpush.bf16.msra.mxu0 0
        %3931 = vmatpush.bf16.msra.mxu0 %v3875
        %3932 = vmatmul.bf16.gmra.mxu0 %v3922
        %v3933 = vpop.f32.mrf.mxu0
        %v3934 = vadd.f32 0.0, %v3933
        %v3935 = vpop.f32.mrf.mxu0
        %v3936 = vadd.f32 0.0, %v3935
        %3937 = vdwg.mxu0
        %v3940 = vunpack.c.l.b16 %v3867
        %v3941 = vunpack.c.l.b16 %v3868
        %v3942 = vpack.c.b16 %v3941, %v3940
        %v3944 = vsel %vm938, %v3942, 0
        %3946 = vmatpush.bf16.msra.mxu0 0
        %3947 = vmatpush.bf16.msra.mxu0 0
        %3948 = vmatpush.bf16.msra.mxu0 0
        %3949 = vmatpush.bf16.msra.mxu0 0
        %3950 = vmatpush.bf16.msra.mxu0 0
        %3951 = vmatpush.bf16.msra.mxu0 0
        %3952 = vmatpush.bf16.msra.mxu0 0
        %3953 = vmatpush.bf16.msra.mxu0 %v3875
        %3954 = vmatmul.bf16.gmra.mxu0 %v3944
        %v3955 = vpop.f32.mrf.mxu0
        %v3956 = vadd.f32 0.0, %v3955
        %v3957 = vpop.f32.mrf.mxu0
        %v3958 = vadd.f32 0.0, %v3957
        %3959 = vdwg.mxu0
        %3962 = vrot.lane.b32.xlu0 %v3912, 16
        %v3963 = vpop.permute.xlu0 %3962
        %3964 = vrot.lane.b32.xlu0 %v3914, 16
        %v3965 = vpop.permute.xlu0 %3964
        %3970 = vrot.lane.b32.xlu0 %v3934, 32
        %v3971 = vpop.permute.xlu0 %3970
        %3972 = vrot.lane.b32.xlu0 %v3936, 32
        %v3973 = vpop.permute.xlu0 %3972
        %3978 = vrot.lane.b32.xlu0 %v3956, 48
        %v3979 = vpop.permute.xlu0 %3978
        %3980 = vrot.lane.b32.xlu0 %v3958, 48
        %v3981 = vpop.permute.xlu0 %3980
        %v3984 = vsel %vm938, %v3890, %v3963
        %v3985 = vsel %vm938, %v3892, %v3965
        %v3986 = vsel %vm772, %v3984, %v3971
        %v3987 = vsel %vm772, %v3985, %v3973
        %v3988 = vsel %vm1671, %v3986, %v3979
        %v3989 = vsel %vm1671, %v3987, %v3981
        %v3990 = vpack.c.bf16 %v3989, %v3988
        %v3991 = vld [vmem:[%s15] sm:$0xf]
        %v3992 = vld [vmem:[%s15 + $0x4] sm:$0xf]
        %v3993 = vld [vmem:[%s15 + $0x8] sm:$0xf]
        %v3994 = vld [vmem:[%s15 + $0xc] sm:$0xf]
        %v3995 = vld [vmem:[%s15 + $0x10] sm:$0xf]
        %v3996 = vld [vmem:[%s15 + $0x14] sm:$0xf]
        %v3997 = vld [vmem:[%s15 + $0x18] sm:$0xf]
        %v3998 = vld [vmem:[%s15 + $0x1c] sm:$0xf]
        %v3999 = vld [vmem:[%s16] sm:$0xff]
        %v4000 = vld [vmem:[%s16 + $0x8] sm:$0xff]
        %v4001 = vld [vmem:[%s16 + $0x10] sm:$0xff]
        %v4002 = vld [vmem:[%s16 + $0x18] sm:$0xff]
        %v4007 = vunpack.c.l.b16 %v3999
        %v4008 = vunpack.c.h.b16 %v3999
        %v4009 = vunpack.c.l.b16 %v4000
        %v4010 = vunpack.c.h.b16 %v4000
        %v4011 = vunpack.c.l.b16 %v4001
        %v4012 = vunpack.c.h.b16 %v4001
        %v4013 = vunpack.c.l.b16 %v4002
        %v4014 = vunpack.c.h.b16 %v4002
        %v4015 = vpack.c.b16 %v4009, %v4007
        %v4016 = vpack.c.b16 %v4010, %v4008
        %v4017 = vpack.c.b16 %v4013, %v4011
        %v4018 = vpack.c.b16 %v4014, %v4012
        %4023 = vmatpush.bf16.msra.mxu0 0
        %4024 = vmatpush.bf16.msra.mxu0 0
        %4025 = vmatpush.bf16.msra.mxu0 0
        %4026 = vmatpush.bf16.msra.mxu0 0
        %4027 = vmatpush.bf16.msra.mxu0 0
        %4028 = vmatpush.bf16.msra.mxu0 0
        %4029 = vmatpush.bf16.msra.mxu0 %v4017
        %4030 = vmatpush.bf16.msra.mxu0 %v4015
        %4031 = vmatmul.bf16.gmra.mxu0 %v3596
        %v4032 = vpop.f32.mrf.mxu0
        %v4033 = vadd.f32 0.0, %v4032
        %v4034 = vpop.f32.mrf.mxu0
        %v4035 = vadd.f32 0.0, %v4034
        %4036 = vdwg.mxu0
        %4037 = vmatpush.bf16.msra.mxu0 0
        %4038 = vmatpush.bf16.msra.mxu0 0
        %4039 = vmatpush.bf16.msra.mxu0 0
        %4040 = vmatpush.bf16.msra.mxu0 0
        %4041 = vmatpush.bf16.msra.mxu0 0
        %4042 = vmatpush.bf16.msra.mxu0 0
        %4043 = vmatpush.bf16.msra.mxu0 %v4018
        %4044 = vmatpush.bf16.msra.mxu0 %v4016
        %4045 = vmatmul.bf16.gmra.mxu0 %v3596
        %v4046 = vpop.f32.mrf.mxu0
        %v4047 = vadd.f32 0.0, %v4046
        %v4048 = vpop.f32.mrf.mxu0
        %v4049 = vadd.f32 0.0, %v4048
        %4050 = vdwg.mxu0
        %v4051 = vxor.u32 %v4047, 2147483648
        %v4052 = vxor.u32 %v4049, 2147483648
        %v4053 = vmul.f32 %v4051, 1.442695
        %v4054 = vpow.pop %v4053
        %v4055 = vmul.f32 %v4052, 1.442695
        %v4056 = vpow.pop %v4055
        %v4057 = vadd.f32 %v4054, 1.0
        %v4058 = vadd.f32 %v4056, 1.0
        %v4059 = vrcp.pop %v4057
        %v4060 = vmul.f32 %v4057, %v4059
        %v4061 = vsub.f32 1.0, %v4060
        %v4062 = vmul.f32 %v4059, %v4061
        %v4063 = vadd.f32 %v4059, %v4062
        %vm4064 = vweird.f32 %v4057
        %vm4065 = vweird.f32 %v4059
        %vm4066 = vmor %vm4064, %vm4065
        %v4067 = vsel %vm4066, %v4059, %v4063
        %v4068 = vand.u32 2147483647, %v4057
        %vm4069 = vcmp.eq.f32.partialorder %v4068, 8.507059e+37
        %v4070 = vand.u32 %v4057, 2147483648
        %v4071 = vor.u32 1.1754944e-38, %v4070
        %v4072 = vsel %vm4069, %v4071, %v4067
        %v4073 = vmul.f32 1.0, %v4072
        %v4074 = vrcp.pop %v4058
        %v4075 = vmul.f32 %v4058, %v4074
        %v4076 = vsub.f32 1.0, %v4075
        %v4077 = vmul.f32 %v4074, %v4076
        %v4078 = vadd.f32 %v4074, %v4077
        %vm4079 = vweird.f32 %v4058
        %vm4080 = vweird.f32 %v4074
        %vm4081 = vmor %vm4079, %vm4080
        %v4082 = vsel %vm4081, %v4074, %v4078
        %v4083 = vand.u32 2147483647, %v4058
        %vm4084 = vcmp.eq.f32.partialorder %v4083, 8.507059e+37
        %v4085 = vand.u32 %v4058, 2147483648
        %v4086 = vor.u32 1.1754944e-38, %v4085
        %v4087 = vsel %vm4084, %v4086, %v4082
        %v4088 = vmul.f32 1.0, %v4087
        %v4089 = vmul.f32 %v4047, %v4073
        %v4090 = vmul.f32 %v4049, %v4088
        %v4091 = vmul.f32 %v4033, %v4089
        %v4092 = vmul.f32 %v4035, %v4090
        %v4093 = vpack.c.bf16 %v4092, %v4091
        %v4094 = vld [vmem:[%s17] sm:$0xf]
        %v4095 = vld [vmem:[%s17 + $0x4] sm:$0xf]
        %v4096 = vld [vmem:[%s17 + $0x8] sm:$0xf]
        %v4097 = vld [vmem:[%s17 + $0xc] sm:$0xf]
        %v4098 = vld [vmem:[%s17 + $0x10] sm:$0xf]
        %v4099 = vld [vmem:[%s17 + $0x14] sm:$0xf]
        %v4100 = vld [vmem:[%s17 + $0x18] sm:$0xf]
        %v4101 = vld [vmem:[%s17 + $0x1c] sm:$0xf]
        %v4102 = vld [vmem:[%s17 + $0x20] sm:$0xf]
        %v4103 = vld [vmem:[%s17 + $0x24] sm:$0xf]
        %v4104 = vld [vmem:[%s17 + $0x28] sm:$0xf]
        %v4105 = vld [vmem:[%s17 + $0x2c] sm:$0xf]
        %v4106 = vld [vmem:[%s17 + $0x30] sm:$0xf]
        %v4107 = vld [vmem:[%s17 + $0x34] sm:$0xf]
        %v4108 = vld [vmem:[%s17 + $0x38] sm:$0xf]
        %v4109 = vld [vmem:[%s17 + $0x3c] sm:$0xf]
        %v4126 = vunpack.c.l.b16 %v4094
        %v4127 = vunpack.c.l.b16 %v4095
        %v4128 = vunpack.c.l.b16 %v4096
        %v4129 = vunpack.c.l.b16 %v4097
        %v4130 = vunpack.c.l.b16 %v4098
        %v4131 = vunpack.c.l.b16 %v4099
        %v4132 = vunpack.c.l.b16 %v4100
        %v4133 = vunpack.c.l.b16 %v4101
        %v4134 = vunpack.c.l.b16 %v4102
        %v4135 = vunpack.c.l.b16 %v4103
        %v4136 = vunpack.c.l.b16 %v4104
        %v4137 = vunpack.c.l.b16 %v4105
        %v4138 = vunpack.c.l.b16 %v4106
        %v4139 = vunpack.c.l.b16 %v4107
        %v4140 = vunpack.c.l.b16 %v4108
        %v4141 = vunpack.c.l.b16 %v4109
        %v4142 = vpack.c.b16 %v4127, %v4126
        %v4143 = vpack.c.b16 %v4129, %v4128
        %v4144 = vpack.c.b16 %v4131, %v4130
        %v4145 = vpack.c.b16 %v4133, %v4132
        %v4146 = vpack.c.b16 %v4135, %v4134
        %v4147 = vpack.c.b16 %v4137, %v4136
        %v4148 = vpack.c.b16 %v4139, %v4138
        %v4149 = vpack.c.b16 %v4141, %v4140
        %4158 = vmatpush.bf16.msra.mxu0 %v4149
        %4159 = vmatpush.bf16.msra.mxu0 %v4148
        %4160 = vmatpush.bf16.msra.mxu0 %v4147
        %4161 = vmatpush.bf16.msra.mxu0 %v4146
        %4162 = vmatpush.bf16.msra.mxu0 %v4145
        %4163 = vmatpush.bf16.msra.mxu0 %v4144
        %4164 = vmatpush.bf16.msra.mxu0 %v4143
        %4165 = vmatpush.bf16.msra.mxu0 %v4142
        %4166 = vmatmul.bf16.gmra.mxu0 %v4093
        %v4167 = vpop.f32.mrf.mxu0
        %v4168 = vadd.f32 0.0, %v4167
        %v4169 = vpop.f32.mrf.mxu0
        %v4170 = vadd.f32 0.0, %v4169
        %4171 = vdwg.mxu0
        %v4180 = vunpack.c.l.b16 %v3991
        %v4181 = vunpack.c.l.b16 %v3992
        %v4182 = vunpack.c.l.b16 %v3993
        %v4183 = vunpack.c.l.b16 %v3994
        %v4184 = vunpack.c.l.b16 %v3995
        %v4185 = vunpack.c.l.b16 %v3996
        %v4186 = vunpack.c.l.b16 %v3997
        %v4187 = vunpack.c.l.b16 %v3998
        %v4188 = vpack.c.b16 %v4181, %v4180
        %v4189 = vpack.c.b16 %v4183, %v4182
        %v4190 = vpack.c.b16 %v4185, %v4184
        %v4191 = vpack.c.b16 %v4187, %v4186
        %v4197 = vsel %vm1707, %v3990, 0
        %4199 = vmatpush.bf16.msra.mxu0 0
        %4200 = vmatpush.bf16.msra.mxu0 0
        %4201 = vmatpush.bf16.msra.mxu0 0
        %4202 = vmatpush.bf16.msra.mxu0 0
        %4203 = vmatpush.bf16.msra.mxu0 %v4191
        %4204 = vmatpush.bf16.msra.mxu0 %v4190
        %4205 = vmatpush.bf16.msra.mxu0 %v4189
        %4206 = vmatpush.bf16.msra.mxu0 %v4188
        %4207 = vmatmul.bf16.gmra.mxu0 %v4197
        %v4208 = vpop.f32.mrf.mxu0
        %v4209 = vadd.f32 %v4168, %v4208
        %v4210 = vpop.f32.mrf.mxu0
        %v4211 = vadd.f32 %v4170, %v4210
        %4212 = vdwg.mxu0
        %v4213 = vld [vmem:[%s18] sm:$0x1]
        %v4214 = vld [vmem:[%s19] sm:$0x1]
        %v4215 = vsel %vm772, %v4209, 0.0
        %4216 = vadd.xlane.f32.xlu0 %v4215
        %v4217 = vpop.xlane.xlu0 %4216
        %v4218 = vsel %vm772, %v4211, 0.0
        %4219 = vadd.xlane.f32.xlu0 %v4218
        %v4220 = vpop.xlane.xlu0 %4219
        %v4221 = vmul.f32 %v4217, %v785
        %v4222 = vmul.f32 %v4220, %v785
        %v4223 = vsub.f32 %v4209, %v4221
        %v4224 = vsub.f32 %v4211, %v4222
        %v4225 = vmul.f32 %v4223, %v4223
        %v4226 = vmul.f32 %v4224, %v4224
        %v4227 = vsel %vm772, %v4225, 0.0
        %4228 = vadd.xlane.f32.xlu0 %v4227
        %v4229 = vpop.xlane.xlu0 %4228
        %v4230 = vsel %vm772, %v4226, 0.0
        %4231 = vadd.xlane.f32.xlu0 %v4230
        %v4232 = vpop.xlane.xlu0 %4231
        %v4233 = vmul.f32 %v4229, %v785
        %v4234 = vmul.f32 %v4232, %v785
        %v4235 = vadd.f32 %v4233, 1e-05
        %v4236 = vadd.f32 %v4234, 1e-05
        %v4237 = vrsqrt.pop %v4235
        %v4238 = vmul.f32 %v4237, %v4235
        %v4239 = vmul.f32 %v4238, %v4237
        %v4240 = vmul.f32 0.5, %v4239
        %v4241 = vsub.f32 1.5, %v4240
        %v4242 = vmul.f32 %v4237, %v4241
        %vm4243 = vweird.f32 %v4235
        %vm4244 = vweird.f32 %v4237
        %vm4245 = vmor %vm4243, %vm4244
        %v4246 = vsel %vm4245, %v4237, %v4242
        %v4247 = vrsqrt.pop %v4236
        %v4248 = vmul.f32 %v4247, %v4236
        %v4249 = vmul.f32 %v4248, %v4247
        %v4250 = vmul.f32 0.5, %v4249
        %v4251 = vsub.f32 1.5, %v4250
        %v4252 = vmul.f32 %v4247, %v4251
        %vm4253 = vweird.f32 %v4236
        %vm4254 = vweird.f32 %v4247
        %vm4255 = vmor %vm4253, %vm4254
        %v4256 = vsel %vm4255, %v4247, %v4252
        %v4257 = vmul.f32 %v4223, %v4246
        %v4258 = vmul.f32 %v4224, %v4256
        %v4260 = vperm.slane %v4213, 0
        %v4262 = vmul.f32 %v4257, %v4260
        %v4263 = vmul.f32 %v4258, %v4260
        %v4265 = vperm.slane %v4214, 0
        %v4267 = vadd.f32 %v4262, %v4265
        %v4268 = vadd.f32 %v4263, %v4265
        %v4269 = vtanh.pop %v4267
        %v4270 = vtanh.pop %v4268
        %v4271 = vadd.f32 %v4269, %v3505
        %v4272 = vadd.f32 %v4270, %v3507
        %v4273 = vpack.c.bf16 %v4272, %v4271
        %v4274 = vld [vmem:[%s20] sm:$0xf]
        %v4275 = vld [vmem:[%s20 + $0x4] sm:$0xf]
        %v4276 = vld [vmem:[%s20 + $0x8] sm:$0xf]
        %v4277 = vld [vmem:[%s20 + $0xc] sm:$0xf]
        %v4278 = vld [vmem:[%s21] sm:$0x1]
        %v4280 = vperm.slane %v4278, 0
        %v4286 = vunpack.c.l.b16 %v4274
        %v4287 = vunpack.c.l.b16 %v4275
        %v4288 = vunpack.c.l.b16 %v4276
        %v4289 = vunpack.c.l.b16 %v4277
        %v4290 = vpack.c.b16 %v4287, %v4286
        %v4291 = vpack.c.b16 %v4289, %v4288
        %v4295 = vsel %vm772, %v4273, 0
        %4297 = vmatpush.bf16.msra.mxu0 0
        %4298 = vmatpush.bf16.msra.mxu0 0
        %4299 = vmatpush.bf16.msra.mxu0 0
        %4300 = vmatpush.bf16.msra.mxu0 0
        %4301 = vmatpush.bf16.msra.mxu0 0
        %4302 = vmatpush.bf16.msra.mxu0 0
        %4303 = vmatpush.bf16.msra.mxu0 %v4291
        %4304 = vmatpush.bf16.msra.mxu0 %v4290
        %4305 = vmatmul.bf16.gmra.mxu0 %v4295
        %v4306 = vpop.f32.mrf.mxu0
        %v4307 = vadd.f32 %v4280, %v4306
        %v4308 = vpop.f32.mrf.mxu0
        %v4309 = vadd.f32 %v4280, %v4308
        %4310 = vdwg.mxu0
        %v4311 = vtanh.pop %v4307
        %v4312 = vtanh.pop %v4309
        %v4313 = vld [vmem:[%s22] sm:$0x1]
        %v4314 = vld [vmem:[%s23] sm:$0x1]
        %v4315 = vsel %vm772, %v4311, 0.0
        %4316 = vadd.xlane.f32.xlu0 %v4315
        %v4317 = vpop.xlane.xlu0 %4316
        %v4318 = vsel %vm772, %v4312, 0.0
        %4319 = vadd.xlane.f32.xlu0 %v4318
        %v4320 = vpop.xlane.xlu0 %4319
        %v4321 = vmul.f32 %v4317, %v785
        %v4322 = vmul.f32 %v4320, %v785
        %v4323 = vsub.f32 %v4311, %v4321
        %v4324 = vsub.f32 %v4312, %v4322
        %v4325 = vmul.f32 %v4323, %v4323
        %v4326 = vmul.f32 %v4324, %v4324
        %v4327 = vsel %vm772, %v4325, 0.0
        %4328 = vadd.xlane.f32.xlu0 %v4327
        %v4329 = vpop.xlane.xlu0 %4328
        %v4330 = vsel %vm772, %v4326, 0.0
        %4331 = vadd.xlane.f32.xlu0 %v4330
        %v4332 = vpop.xlane.xlu0 %4331
        %v4333 = vmul.f32 %v4329, %v785
        %v4334 = vmul.f32 %v4332, %v785
        %v4335 = vadd.f32 %v4333, 1e-05
        %v4336 = vadd.f32 %v4334, 1e-05
        %v4337 = vrsqrt.pop %v4335
        %v4338 = vmul.f32 %v4337, %v4335
        %v4339 = vmul.f32 %v4338, %v4337
        %v4340 = vmul.f32 0.5, %v4339
        %v4341 = vsub.f32 1.5, %v4340
        %v4342 = vmul.f32 %v4337, %v4341
        %vm4343 = vweird.f32 %v4335
        %vm4344 = vweird.f32 %v4337
        %vm4345 = vmor %vm4343, %vm4344
        %v4346 = vsel %vm4345, %v4337, %v4342
        %v4347 = vrsqrt.pop %v4336
        %v4348 = vmul.f32 %v4347, %v4336
        %v4349 = vmul.f32 %v4348, %v4347
        %v4350 = vmul.f32 0.5, %v4349
        %v4351 = vsub.f32 1.5, %v4350
        %v4352 = vmul.f32 %v4347, %v4351
        %vm4353 = vweird.f32 %v4336
        %vm4354 = vweird.f32 %v4347
        %vm4355 = vmor %vm4353, %vm4354
        %v4356 = vsel %vm4355, %v4347, %v4352
        %v4357 = vmul.f32 %v4323, %v4346
        %v4358 = vmul.f32 %v4324, %v4356
        %v4360 = vperm.slane %v4313, 0
        %v4362 = vmul.f32 %v4357, %v4360
        %v4363 = vmul.f32 %v4358, %v4360
        %v4365 = vperm.slane %v4314, 0
        %v4367 = vadd.f32 %v4362, %v4365
        %v4368 = vadd.f32 %v4363, %v4365
        %v4369 = vadd.f32 %v4367, %v832
        %v4370 = vadd.f32 %v4368, %v833
        %4371 = vst.msk [vmem:[%s730] sm:$0xff] %vm772, %v4369
        %4372 = vst.msk [vmem:[%s730 + $0x8] sm:$0xff] %vm772, %v4370
        %s4373 = sand.u32 %s555, 1
        %s4374 = scalar_lea.sflag [#allocation3], %s4373
        %s4375 = sand.u32 %s555, 1
        %s4376 = smul.addr %s4375, 16
        %s4377 = scalar_lea.vmem [#allocation2], %s4376
        // Predicated region
        $region117: #{tpu_custom_call.1} parent=115 // pred_check
          %p4378 = pneg %p565
        $region118: #{tpu_custom_call.1} parent=115 // pred_check_branch
          %4380 = sbr.rel (%p4378) target = $region120
        $region119: #{tpu_custom_call.1} parent=115 // pred_region
          %4382 = vsyncadd %s4374, 0
          %s4383 = smul.addr %s38, 2
          %s4384 = smul.addr %s4383, 8
          %s4385 = scalar_lea.hbm %s24, %s4384
          %s4386 = sshll.u32 %s4377, 4
          %s4387 = int_to_ptr.vmem [resolvable:$true] %s4386
          %s4388 = sshll.u32 %s4385, 4
          %s4389 = int_to_ptr.hbm [resolvable:$true] %s4388
          %4394 = dma.vmem_to_hbm [thread:$0]  %s4387, 256, %s4389, %s4374, 128, 128, 8
        $region120: #{tpu_custom_call.1} parent=115 // pred_fallthru
          _
      $region116: #{tpu_custom_call.1} parent=5 // pred_fallthru
        _
      %p4395 = scmp.le.s32.totalorder 2, %s33
      // Predicated region
      $region121: #{tpu_custom_call.1} parent=5 // pred_check
        %p4396 = pneg %p4395
      $region122: #{tpu_custom_call.1} parent=5 // pred_check_branch
        %4398 = sbr.rel (%p4396) target = $region124
      $region123: #{tpu_custom_call.1} parent=5 // pred_region
        %s4399 = ssub.s32 %s33, 2
        // Predicated region
        $region125: #{tpu_custom_call.1} parent=123 // pred_check
          %p4400 = pneg %p571
        $region126: #{tpu_custom_call.1} parent=123 // pred_check_branch
          %4402 = sbr.rel (%p4400) target = $region128
        $region127: #{tpu_custom_call.1} parent=123 // pred_region
          %s4403 = sand.u32 %s556, 1
          %s4404 = scalar_lea.sflag [#allocation3], %s4403
          %s4405 = sand.u32 %s556, 1
          %s4406 = smul.addr %s4405, 16
          %s4407 = scalar_lea.vmem [#allocation2], %s4406
          %4409 = dma.done %s4404, 256
        $region128: #{tpu_custom_call.1} parent=123 // pred_fallthru
          _
      $region124: #{tpu_custom_call.1} parent=5 // pred_fallthru
        _
    $region6: #{tpu_custom_call.1} parent=1 // loop_footer
      %s37 = sadd.s32 1, %s33
    $region7: #{tpu_custom_call.1} parent=1 // loop_footer_branch
      %32 = sbr.rel target = $region3
    $region8: #{tpu_custom_call.1} parent=1 // loop_exit
      _
    %4410 = vsyncpa [#allocation3], 1
    %s4411 = scalar_lea.sflag [#allocation3], 1
    %4412 = vsyncpa %s4411, 1

</llo_original>
